<compile_context>
chip_gen: v5e
topology: v5e:2x2
jax: 0.10.0
libtpu: 0.0.40
codegen_flags: <defaults>
</compile_context>

<pallas_src>
import functools

import jax
import jax.numpy as jnp
from jax.experimental import pallas as pl
from jax.experimental.pallas import tpu as pltpu

_LANE = 128
_NEG = -3.0e38
_RESIDENT_MAX_NPAD = 2048          # A (bf16) <= 8 MiB -> safe on 64 MiB v7x VMEM


def _round_up(x, m):
    return ((x + m - 1) // m) * m


@functools.lru_cache(maxsize=None)
def _vmem_limit_bytes():
    """Generation-aware scoped-VMEM limit (v5e/v6e have 128 MiB physical)."""
    try:
        kind = jax.devices()[0].device_kind.lower()
    except Exception:
        kind = ""
    if "v5" in kind or "v6" in kind:
        return 100 * 1024 * 1024
    return 48 * 1024 * 1024        # v7x: 64 MiB physical, leave headroom


def _pick_stream_tiles(n):
    """Row/K tiles for the streamed (N, N) adjacency matmuls.

    Pad only to a multiple of 512 (bounds padding waste), then use the
    largest square tile from {2048, 1024, 512} that divides N_pad so the
    bf16 tile transfer stays well above the ~0.35 us per-grid-step overhead.
    """
    n_pad = _round_up(max(n, 8), 512)
    for t in (2048, 1024, 512):
        if n_pad % t == 0:
            return n_pad, t, t
    return n_pad, 512, 512


def _pick_readout_tile(n_pad):
    for t in (512, 256, 128):
        if n_pad % t == 0:
            return t
    return 128


# --------------------------------------------------------------------------
# Kernel 1 (resident-A path): conv1..conv3 + score GCN + tanh scaling fused,
# A stays in VMEM across all four sweeps.
# --------------------------------------------------------------------------
def _fused_gcn_score_kernel(a_ref, x_ref, w1_ref, b1_ref, w2_ref, b2_ref,
                            w3_ref, b3_ref, ws_ref, bs_ref,
                            score_ref, xp_ref):
    a = a_ref[...]                                            # (Np, Np) bf16

    def gcn(h_in, w_ref, b_ref):
        xw = jnp.dot(h_in, w_ref[...], preferred_element_type=jnp.float32)
        ax = jnp.dot(a, xw.astype(jnp.bfloat16),
                     preferred_element_type=jnp.float32)
        return jnp.maximum(ax + b_ref[...], 0.0)

    x1 = gcn(x_ref[...], w1_ref, b1_ref)                     # relu(conv1)
    x2 = gcn(x1, w2_ref, b2_ref)                             # relu(conv2)
    x3 = gcn(x2, w3_ref, b3_ref)                             # relu(conv3)
    xcat = jnp.concatenate([x1, x2, x3], axis=1)              # (Np, 3H) f32

    # SAGPool score GCN (lane-padded to 128 so the store is lane-dense).
    xw_s = jnp.dot(xcat, ws_ref[...], preferred_element_type=jnp.float32)
    s = jnp.dot(a, xw_s.astype(jnp.bfloat16),
                preferred_element_type=jnp.float32) + bs_ref[...]
    score_ref[...] = s
    xp_ref[...] = xcat * jnp.tanh(s[:, 0:1])                  # x_cat * tanh(score)


def fused_gcn_score(a_pad, x_pad, params):
    n_pad = a_pad.shape[0]
    f_in = x_pad.shape[1]
    h = params["conv1_w"].shape[1]
    f3 = 3 * h
    ws_pad = jnp.zeros((f3, _LANE), jnp.float32).at[:, :1].set(params["score_w"])
    bs_pad = jnp.zeros((1, _LANE), jnp.float32).at[:, :1].set(
        params["score_b"].reshape(1, -1))

    def full(shape):
        return pl.BlockSpec(shape, lambda i, _n=len(shape): (0,) * _n)

    cost = pl.CostEstimate(
        flops=6 * n_pad * n_pad * h + 2 * n_pad * n_pad * _LANE,
        transcendentals=n_pad,
        bytes_accessed=a_pad.size * 2 + x_pad.size * 4
        + n_pad * (f3 + _LANE) * 4)
    return pl.pallas_call(
        _fused_gcn_score_kernel,
        out_shape=(jax.ShapeDtypeStruct((n_pad, _LANE), jnp.float32),
                   jax.ShapeDtypeStruct((n_pad, f3), jnp.float32)),
        grid_spec=pltpu.PrefetchScalarGridSpec(
            num_scalar_prefetch=0,
            grid=(1,),
            in_specs=[full((n_pad, n_pad)), full((n_pad, f_in)),
                      full((f_in, h)), full((1, h)),
                      full((h, h)), full((1, h)),
                      full((h, h)), full((1, h)),
                      full((f3, _LANE)), full((1, _LANE))],
            out_specs=(full((n_pad, _LANE)), full((n_pad, f3)))),
        compiler_params=pltpu.CompilerParams(
            dimension_semantics=("arbitrary",),
            vmem_limit_bytes=_vmem_limit_bytes()),
        cost_estimate=cost,
    )(a_pad, x_pad,
      params["conv1_w"], params["conv1_b"].reshape(1, -1),
      params["conv2_w"], params["conv2_b"].reshape(1, -1),
      params["conv3_w"], params["conv3_b"].reshape(1, -1),
      ws_pad, bs_pad)


# --------------------------------------------------------------------------
# Kernel 2 (streamed path): small row-tiled XW = x @ W in bf16 (hoisted out of
# the A loop).
# --------------------------------------------------------------------------
def _linear_bf16_kernel(x_ref, w_ref, o_ref):
    o_ref[...] = jnp.dot(x_ref[...].astype(jnp.float32), w_ref[...],
                         preferred_element_type=jnp.float32).astype(jnp.bfloat16)


def linear_bf16(x, w, *, tm):
    n_pad, f_in = x.shape
    f_out = w.shape[1]
    return pl.pallas_call(
        _linear_bf16_kernel,
        out_shape=jax.ShapeDtypeStruct((n_pad, f_out), jnp.bfloat16),
        grid_spec=pltpu.PrefetchScalarGridSpec(
            num_scalar_prefetch=0,
            grid=(n_pad // tm,),
            in_specs=[pl.BlockSpec((tm, f_in), lambda i: (i, 0)),
                      pl.BlockSpec((f_in, f_out), lambda i: (0, 0))],
            out_specs=pl.BlockSpec((tm, f_out), lambda i: (i, 0))),
        compiler_params=pltpu.CompilerParams(
            dimension_semantics=("parallel",),
            vmem_limit_bytes=_vmem_limit_bytes()),
    )(x, w)


# --------------------------------------------------------------------------
# Kernel 3 (streamed path): out = [relu]( A @ XW + b ), A streamed in bf16
# tiles, f32 VMEM accumulator, bf16 output.
# --------------------------------------------------------------------------
def _gcn_conv_kernel(a_ref, xw_ref, b_ref, o_ref, acc_ref, *, apply_relu):
    k = pl.program_id(1)

    @pl.when(k == 0)
    def _():
        acc_ref[...] = jnp.zeros_like(acc_ref)

    acc_ref[...] += jnp.dot(a_ref[...], xw_ref[...],
                            preferred_element_type=jnp.float32)

    @pl.when(k == pl.num_programs(1) - 1)
    def _():
        out = acc_ref[...] + b_ref[...]
        if apply_relu:
            out = jnp.maximum(out, 0.0)
        o_ref[...] = out.astype(o_ref.dtype)


def gcn_conv(a_pad, xw, b, *, tm, tk, apply_relu):
    n_pad = a_pad.shape[0]
    h = xw.shape[1]
    grid = (n_pad // tm, n_pad // tk)
    cost = pl.CostEstimate(
        flops=2 * n_pad * n_pad * h,
        transcendentals=0,
        bytes_accessed=a_pad.size * 2 + (n_pad // tm) * n_pad * h * 2
        + n_pad * h * 2)
    return pl.pallas_call(
        functools.partial(_gcn_conv_kernel, apply_relu=apply_relu),
        out_shape=jax.ShapeDtypeStruct((n_pad, h), jnp.bfloat16),
        grid_spec=pltpu.PrefetchScalarGridSpec(
            num_scalar_prefetch=0,
            grid=grid,
            in_specs=[pl.BlockSpec((tm, tk), lambda i, k: (i, k)),     # A bf16
                      pl.BlockSpec((tk, h), lambda i, k: (k, 0)),      # XW bf16
                      pl.BlockSpec((1, h), lambda i, k: (0, 0))],      # bias
            out_specs=pl.BlockSpec((tm, h), lambda i, k: (i, 0)),
            scratch_shapes=[pltpu.VMEM((tm, h), jnp.float32)]),
        compiler_params=pltpu.CompilerParams(
            dimension_semantics=("parallel", "arbitrary"),
            vmem_limit_bytes=_vmem_limit_bytes()),
        cost_estimate=cost,
    )(a_pad, xw, b.reshape(1, -1))


# --------------------------------------------------------------------------
# Kernel 4 (streamed path): SAGPool score GCN (A @ XWs + b) fused with
# x_pool = x_cat * tanh(score); score lane-padded to 128.
# --------------------------------------------------------------------------
def _score_scale_kernel(a_ref, xws_ref, bs_ref, xcat_ref,
                        score_ref, xp_ref, acc_ref):
    k = pl.program_id(1)

    @pl.when(k == 0)
    def _():
        acc_ref[...] = jnp.zeros_like(acc_ref)

    acc_ref[...] += jnp.dot(a_ref[...], xws_ref[...],
                            preferred_element_type=jnp.float32)

    @pl.when(k == pl.num_programs(1) - 1)
    def _():
        s = acc_ref[...] + bs_ref[...]           # (TM, 128); column 0 = score
        score_ref[...] = s                       # lane-dense store
        xp_ref[...] = xcat_ref[...].astype(jnp.float32) * jnp.tanh(s[:, 0:1])


def score_and_scale(a_pad, xw_s, bs_pad, x_cat, *, tm, tk):
    n_pad = a_pad.shape[0]
    f3 = x_cat.shape[1]
    grid = (n_pad // tm, n_pad // tk)
    cost = pl.CostEstimate(
        flops=2 * n_pad * n_pad * _LANE,
        transcendentals=n_pad,
        bytes_accessed=a_pad.size * 2 + (n_pad // tm) * n_pad * _LANE * 2
        + n_pad * f3 * 2 + n_pad * (f3 + _LANE) * 4)
    return pl.pallas_call(
        _score_scale_kernel,
        out_shape=(jax.ShapeDtypeStruct((n_pad, _LANE), jnp.float32),
                   jax.ShapeDtypeStruct((n_pad, f3), jnp.float32)),
        grid_spec=pltpu.PrefetchScalarGridSpec(
            num_scalar_prefetch=0,
            grid=grid,
            in_specs=[pl.BlockSpec((tm, tk), lambda i, k: (i, k)),       # A bf16
                      pl.BlockSpec((tk, _LANE), lambda i, k: (k, 0)),    # XWs bf16
                      pl.BlockSpec((1, _LANE), lambda i, k: (0, 0)),     # bias
                      pl.BlockSpec((tm, f3), lambda i, k: (i, 0))],      # x_cat
            out_specs=(pl.BlockSpec((tm, _LANE), lambda i, k: (i, 0)),
                       pl.BlockSpec((tm, f3), lambda i, k: (i, 0))),
            scratch_shapes=[pltpu.VMEM((tm, _LANE), jnp.float32)]),
        compiler_params=pltpu.CompilerParams(
            dimension_semantics=("parallel", "arbitrary"),
            vmem_limit_bytes=_vmem_limit_bytes()),
        cost_estimate=cost,
    )(a_pad, xw_s, bs_pad, x_cat)


# --------------------------------------------------------------------------
# Kernel 5: readout (gmp/gap over selected nodes) + MLP head + log_softmax.
# Max pool is vectorized over graphs and chunked over nodes (no per-graph
# unrolled loop, no sel_oh.T input); lin1_global is split so no concatenate.
# --------------------------------------------------------------------------
def _readout_head_kernel(xp_ref, seloh_ref,
                         w1m_ref, w1a_ref, b1_ref, w2_ref, b2_ref,
                         w3_ref, b3_ref,
                         o_ref, max_sc, sum_sc, cnt_sc, *, chunk):
    i = pl.program_id(0)
    neg = jnp.float32(_NEG)

    @pl.when(i == 0)
    def _():
        max_sc[...] = jnp.full(max_sc.shape, neg, max_sc.dtype)
        sum_sc[...] = jnp.zeros_like(sum_sc)
        cnt_sc[...] = jnp.zeros_like(cnt_sc)

    xp = xp_ref[...]                                   # (TN, 3H) f32
    seloh = seloh_ref[...]                             # (Bp, TN) f32 one-hot

    # global_mean_pool numerator / denominator: one MXU matmul + a lane reduce.
    sum_sc[...] += jnp.dot(seloh, xp, preferred_element_type=jnp.float32)
    cnt_sc[...] += jnp.sum(seloh, axis=1, keepdims=True)

    # global_max_pool: masked max vectorized over all graphs, chunked over
    # node rows to keep the (Bp, chunk, 3H) intermediate small.
    b_pad, tn = seloh.shape
    f3 = xp.shape[1]
    step = min(chunk, tn)
    gmax = jnp.full((b_pad, f3), neg, jnp.float32)
    for c0 in range(0, tn, step):
        xpc = xp[c0:c0 + step, :]                      # (chunk, 3H)
        sc = seloh[:, c0:c0 + step]                    # (Bp, chunk)
        m = jnp.where(sc[:, :, None] > 0.0, xpc[None, :, :], neg)
        gmax = jnp.maximum(gmax, jnp.max(m, axis=1))
    max_sc[...] = jnp.maximum(max_sc[...], gmax)

    @pl.when(i == pl.num_programs(0) - 1)
    def _():
        cnt = cnt_sc[...]                              # (Bp, 1)
        gap = sum_sc[...] / jnp.maximum(cnt, 1.0)
        gmp = jnp.where(cnt > 0.0, max_sc[...], 0.0)   # guard empty graphs
        # x = relu(lin1_global([gmp | gap]))  ==  relu(gmp@W1a + gap@W1b + b1)
        h1 = (jnp.dot(gmp, w1m_ref[...], preferred_element_type=jnp.float32)
              + jnp.dot(gap, w1a_ref[...], preferred_element_type=jnp.float32)
              + b1_ref[...])
        h1 = jnp.maximum(h1, 0.0)
        # F.dropout(training=False) is the identity.
        h2 = jnp.dot(h1, w2_ref[...], preferred_element_type=jnp.float32) + b2_ref[...]
        h2 = jnp.maximum(h2, 0.0)
        # log_softmax(lin3(x)); padded logit lanes carry a -1e30 bias so they
        # vanish in the normalization.
        logits = jnp.dot(h2, w3_ref[...], preferred_element_type=jnp.float32) + b3_ref[...]
        mx = jnp.max(logits, axis=-1, keepdims=True)
        lse = mx + jnp.log(jnp.sum(jnp.exp(logits - mx), axis=-1, keepdims=True))
        o_ref[...] = logits - lse


def readout_head(xp, sel_oh, params, *, tn, chunk=64):
    n_pad, f3 = xp.shape
    b_pad = sel_oh.shape[0]
    w1 = params["lin1g_w"]                             # (6H, H)
    w1_gmp, w1_gap = w1[:f3], w1[f3:]
    h = w1.shape[1]
    h2 = params["lin2_w"].shape[1]
    w3, b3 = params["lin3_w"], params["lin3_b"]
    c = w3.shape[1]
    w3_pad = jnp.zeros((w3.shape[0], _LANE), jnp.float32).at[:, :c].set(w3)
    b3_pad = jnp.full((1, _LANE), -1e30, jnp.float32).at[:, :c].set(
        b3.reshape(1, -1))
    grid = (n_pad // tn,)
    return pl.pallas_call(
        functools.partial(_readout_head_kernel, chunk=chunk),
        out_shape=jax.ShapeDtypeStruct((b_pad, _LANE), jnp.float32),
        grid_spec=pltpu.PrefetchScalarGridSpec(
            num_scalar_prefetch=0,
            grid=grid,
            in_specs=[
                pl.BlockSpec((tn, f3), lambda i: (i, 0)),        # xp node tile
                pl.BlockSpec((b_pad, tn), lambda i: (0, i)),     # sel one-hot
                pl.BlockSpec((f3, h), lambda i: (0, 0)),         # W1[:3H]
                pl.BlockSpec((f3, h), lambda i: (0, 0)),         # W1[3H:]
                pl.BlockSpec((1, h), lambda i: (0, 0)),
                pl.BlockSpec((h, h2), lambda i: (0, 0)),
                pl.BlockSpec((1, h2), lambda i: (0, 0)),
                pl.BlockSpec((h2, _LANE), lambda i: (0, 0)),
                pl.BlockSpec((1, _LANE), lambda i: (0, 0)),
            ],
            out_specs=pl.BlockSpec((b_pad, _LANE), lambda i: (0, 0)),
            scratch_shapes=[pltpu.VMEM((b_pad, f3), jnp.float32),   # running max
                            pltpu.VMEM((b_pad, f3), jnp.float32),   # running sum
                            pltpu.VMEM((b_pad, 1), jnp.float32)]),  # counts
        compiler_params=pltpu.CompilerParams(
            dimension_semantics=("arbitrary",),
            vmem_limit_bytes=_vmem_limit_bytes()),
    )(xp, sel_oh, w1_gmp, w1_gap, params["lin1g_b"].reshape(1, -1),
      params["lin2_w"], params["lin2_b"].reshape(1, -1), w3_pad, b3_pad)


# --------------------------------------------------------------------------
# JAX glue (graph preprocessing, per-graph top-k selection)
# --------------------------------------------------------------------------
def build_norm_adj(edge_index, num_nodes):
    """Dense GCN-normalized adjacency  D^-1/2 (A + I) D^-1/2 (rows = targets).

    Assumes the input edge list carries no explicit self loops (PyG
    add_self_loops semantics); duplicate edges collapse to a single edge.
    """
    src, dst = edge_index[0], edge_index[1]
    a = jnp.zeros((num_nodes, num_nodes), jnp.float32).at[dst, src].set(1.0)
    a = a + jnp.eye(num_nodes, dtype=jnp.float32)
    deg = jnp.sum(a, axis=1)
    dinv = 1.0 / jnp.sqrt(deg)
    return a * dinv[:, None] * dinv[None, :]


def sagpool_topk_mask(score, batch, ratio, num_graphs):
    """Per-graph top-k mask, k = ceil(ratio * nodes_in_graph).  O(N log N)."""
    n = score.shape[0]
    idx = jnp.arange(n, dtype=jnp.int32)
    # Sort by (graph asc, score desc, index asc) -> rank inside each graph.
    order = jnp.lexsort((idx, -score, batch))
    counts = jnp.bincount(batch, length=num_graphs).astype(jnp.int32)
    starts = jnp.cumsum(counts) - counts
    pos = idx - starts[batch[order]]
    rank = jnp.zeros((n,), jnp.int32).at[order].set(pos)
    k_per_graph = jnp.ceil(ratio * counts.astype(jnp.float32)).astype(jnp.int32)
    return rank < k_per_graph[batch]


def sagpool_net_forward(params, x, edge_index, batch, batch_size, edge_attr,
                        pooling_ratio, is_e=True, force_streamed=False):
    del edge_attr, is_e  # unused on the non-hierarchical path
    n = x.shape[0]
    num_classes = params["lin3_w"].shape[1]
    b_pad = _round_up(max(batch_size, 8), 8)

    n_pad_res = _round_up(max(n, 8), 128)
    use_resident = (not force_streamed) and (n_pad_res <= _RESIDENT_MAX_NPAD)

    if use_resident:
        # --- Resident-A fused path: A read from HBM once for all 4 sweeps. ---
        n_pad = n_pad_res
        a_pad = jnp.pad(build_norm_adj(edge_index, n),
                        ((0, n_pad - n), (0, n_pad - n))).astype(jnp.bfloat16)
        x_pad = jnp.pad(x, ((0, n_pad - n), (0, 0)))
        score_full, xp = fused_gcn_score(a_pad, x_pad, params)
    else:
        # --- Streamed path: hoisted bf16 XW, big bf16 A tiles. ---
        n_pad, tm, tk = _pick_stream_tiles(n)
        a_pad = jnp.pad(build_norm_adj(edge_index, n),
                        ((0, n_pad - n), (0, n_pad - n))).astype(jnp.bfloat16)
        x_pad = jnp.pad(x, ((0, n_pad - n), (0, 0)))

        xw1 = linear_bf16(x_pad, params["conv1_w"], tm=tm)
        x1 = gcn_conv(a_pad, xw1, params["conv1_b"], tm=tm, tk=tk, apply_relu=True)
        xw2 = linear_bf16(x1, params["conv2_w"], tm=tm)
        x2 = gcn_conv(a_pad, xw2, params["conv2_b"], tm=tm, tk=tk, apply_relu=True)
        xw3 = linear_bf16(x2, params["conv3_w"], tm=tm)
        x3 = gcn_conv(a_pad, xw3, params["conv3_b"], tm=tm, tk=tk, apply_relu=True)
        x_cat = jnp.concatenate([x1, x2, x3], axis=1)          # (N_pad, 3H) bf16

        f3 = x_cat.shape[1]
        ws_pad = jnp.zeros((f3, _LANE), jnp.float32).at[:, :1].set(params["score_w"])
        bs_pad = jnp.zeros((1, _LANE), jnp.float32).at[:, :1].set(
            params["score_b"].reshape(1, -1))
        xw_s = linear_bf16(x_cat, ws_pad, tm=tm)               # (N_pad, 128) bf16
        score_full, xp = score_and_scale(a_pad, xw_s, bs_pad, x_cat, tm=tm, tk=tk)

    score = score_full[:n, 0]
    sel = sagpool_topk_mask(score, batch, pooling_ratio, batch_size)
    batch_pad = jnp.pad(batch, (0, n_pad - n), constant_values=-1)
    sel_pad = jnp.pad(sel, (0, n_pad - n))
    graph_ids = jnp.arange(b_pad, dtype=batch.dtype)
    sel_oh = ((batch_pad[None, :] == graph_ids[:, None]) & sel_pad[None, :]
              ).astype(jnp.float32)                           # (B_pad, N_pad)

    # cat([gmp, gap]) -> relu(lin1_global) -> dropout(eval) -> relu(lin2)
    #   -> log_softmax(lin3)
    out = readout_head(xp, sel_oh, params, tn=_pick_readout_tile(n_pad))
    return out[:batch_size, :num_classes]


# --------------------------------------------------------------------------
# Example run
# --------------------------------------------------------------------------
def make_edges(num_graphs=2, nodes_per_graph=8):
    edges = []
    for g in range(num_graphs):
        off = g * nodes_per_graph
        for i in range(nodes_per_graph):
            a = off + i
            b = off + (i + 1) % nodes_per_graph
            edges.append((a, b))
            edges.append((b, a))
    return jnp.array(edges, dtype=jnp.int32).T                # (2, E)


if __name__ == "__main__":
    num_features, nhid, num_classes = 4, 32, 2
    pooling_ratio = 0.5
    num_graphs, nodes_per_graph = 2, 8
    N = num_graphs * nodes_per_graph

    key = jax.random.PRNGKey(0)
    keys = jax.random.split(key, 16)

    def init(k, shape, scale=0.1):
        return scale * jax.random.normal(k, shape, jnp.float32)

    params = {
        "conv1_w": init(keys[0], (num_features, nhid)), "conv1_b": init(keys[1], (nhid,)),
        "conv2_w": init(keys[2], (nhid, nhid)),         "conv2_b": init(keys[3], (nhid,)),
        "conv3_w": init(keys[4], (nhid, nhid)),         "conv3_b": init(keys[5], (nhid,)),
        "score_w": init(keys[6], (3 * nhid, 1)),        "score_b": init(keys[7], (1,)),
        "lin1g_w": init(keys[8], (6 * nhid, nhid)),     "lin1g_b": init(keys[9], (nhid,)),
        "lin2_w":  init(keys[10], (nhid, nhid // 2)),   "lin2_b":  init(keys[11], (nhid // 2,)),
        "lin3_w":  init(keys[12], (nhid // 2, num_classes)), "lin3_b": init(keys[13], (num_classes,)),
    }

    x = jax.random.normal(keys[14], (N, num_features), jnp.float32)
    edge_index = make_edges(num_graphs, nodes_per_graph)
    batch = jnp.repeat(jnp.arange(num_graphs, dtype=jnp.int32), nodes_per_graph)
    edge_attr = jnp.ones((edge_index.shape[1],), jnp.float32)

    fwd_resident = jax.jit(
        functools.partial(sagpool_net_forward, force_streamed=False),
        static_argnums=(4, 6))
    fwd_streamed = jax.jit(
        functools.partial(sagpool_net_forward, force_streamed=True),
        static_argnums=(4, 6))

    out_r = jax.block_until_ready(
        fwd_resident(params, x, edge_index, batch, num_graphs, edge_attr,
                     pooling_ratio))
    out_s = jax.block_until_ready(
        fwd_streamed(params, x, edge_index, batch, num_graphs, edge_attr,
                     pooling_ratio))

    for out in (out_r, out_s):
        assert out.shape == (num_graphs, num_classes)
        assert bool(jnp.all(jnp.isfinite(out)))
        # log_softmax rows must (approximately) exponentiate-sum to 1
        assert bool(jnp.all(jnp.abs(jnp.sum(jnp.exp(out), axis=-1) - 1.0) < 1e-4))
    print("KERNEL_OK")
</pallas_src>

<mosaic_0001>
module attributes {stable_mosaic.version = 11 : i64} {
  func.func @_fused_gcn_score_kernel(%arg0: i32, %arg1: memref<128x128xbf16, #tpu.memory_space<vmem>>, %arg2: memref<128x4xf32, #tpu.memory_space<vmem>>, %arg3: memref<4x32xf32, #tpu.memory_space<vmem>>, %arg4: memref<1x32xf32, #tpu.memory_space<vmem>>, %arg5: memref<32x32xf32, #tpu.memory_space<vmem>>, %arg6: memref<1x32xf32, #tpu.memory_space<vmem>>, %arg7: memref<32x32xf32, #tpu.memory_space<vmem>>, %arg8: memref<1x32xf32, #tpu.memory_space<vmem>>, %arg9: memref<96x128xf32, #tpu.memory_space<vmem>>, %arg10: memref<1x128xf32, #tpu.memory_space<vmem>>, %arg11: memref<128x128xf32, #tpu.memory_space<vmem>>, %arg12: memref<128x96xf32, #tpu.memory_space<vmem>>) attributes {dimension_semantics = [#tpu.dimension_semantics<arbitrary>], iteration_bounds = array<i64: 1>, scalar_prefetch = 0 : i64, scratch_operands = 0 : i64, tpu.core_type = #tpu.core_type<tc>, window_params = [{pipeline_mode = #tpu.pipeline_mode<synchronous>, transform_indices = @transform_0, window_bounds = array<i64: 128, 128>}, {pipeline_mode = #tpu.pipeline_mode<synchronous>, transform_indices = @transform_1, window_bounds = array<i64: 128, 4>}, {pipeline_mode = #tpu.pipeline_mode<synchronous>, transform_indices = @transform_2, window_bounds = array<i64: 4, 32>}, {pipeline_mode = #tpu.pipeline_mode<synchronous>, transform_indices = @transform_3, window_bounds = array<i64: 1, 32>}, {pipeline_mode = #tpu.pipeline_mode<synchronous>, transform_indices = @transform_4, window_bounds = array<i64: 32, 32>}, {pipeline_mode = #tpu.pipeline_mode<synchronous>, transform_indices = @transform_5, window_bounds = array<i64: 1, 32>}, {pipeline_mode = #tpu.pipeline_mode<synchronous>, transform_indices = @transform_6, window_bounds = array<i64: 32, 32>}, {pipeline_mode = #tpu.pipeline_mode<synchronous>, transform_indices = @transform_7, window_bounds = array<i64: 1, 32>}, {pipeline_mode = #tpu.pipeline_mode<synchronous>, transform_indices = @transform_8, window_bounds = array<i64: 96, 128>}, {pipeline_mode = #tpu.pipeline_mode<synchronous>, transform_indices = @transform_9, window_bounds = array<i64: 1, 128>}, {pipeline_mode = #tpu.pipeline_mode<synchronous>, transform_indices = @transform_10, window_bounds = array<i64: 128, 128>}, {pipeline_mode = #tpu.pipeline_mode<synchronous>, transform_indices = @transform_11, window_bounds = array<i64: 128, 96>}]} {
    %c0 = arith.constant 0 : index
    %c0_0 = arith.constant 0 : index
    %0 = vector.load %arg1[%c0, %c0_0] : memref<128x128xbf16, #tpu.memory_space<vmem>>, vector<128x128xbf16>
    %c0_1 = arith.constant 0 : index
    %c0_2 = arith.constant 0 : index
    %1 = vector.load %arg2[%c0_1, %c0_2] : memref<128x4xf32, #tpu.memory_space<vmem>>, vector<128x4xf32>
    %c0_3 = arith.constant 0 : index
    %c0_4 = arith.constant 0 : index
    %2 = vector.load %arg3[%c0_3, %c0_4] : memref<4x32xf32, #tpu.memory_space<vmem>>, vector<4x32xf32>
    %cst = arith.constant dense<0.000000e+00> : vector<128x32xf32>
    %3 = tpu.matmul %1, %2, %cst {dimension_numbers = #tpu.dot_dimension_numbers<[1], [0], [0], [1], [0, 0, 1, 1], [], []>} : vector<128x4xf32>, vector<4x32xf32>, vector<128x32xf32> -> vector<128x32xf32>
    %4 = arith.truncf %3 : vector<128x32xf32> to vector<128x32xbf16>
    %cst_5 = arith.constant dense<0.000000e+00> : vector<128x32xf32>
    %5 = tpu.matmul %0, %4, %cst_5 {dimension_numbers = #tpu.dot_dimension_numbers<[1], [0], [0], [1], [0, 0, 1, 1], [], []>} : vector<128x128xbf16>, vector<128x32xbf16>, vector<128x32xf32> -> vector<128x32xf32>
    %c0_6 = arith.constant 0 : index
    %c0_7 = arith.constant 0 : index
    %6 = vector.load %arg4[%c0_6, %c0_7] : memref<1x32xf32, #tpu.memory_space<vmem>>, vector<1x32xf32>
    %7 = vector.broadcast %6 : vector<1x32xf32> to vector<128x32xf32>
    %8 = arith.addf %5, %7 : vector<128x32xf32>
    %cst_8 = arith.constant 0.000000e+00 : f32
    %9 = vector.broadcast %cst_8 : f32 to vector<128x32xf32>
    %10 = arith.maximumf %8, %9 : vector<128x32xf32>
    %c0_9 = arith.constant 0 : index
    %c0_10 = arith.constant 0 : index
    %11 = vector.load %arg5[%c0_9, %c0_10] : memref<32x32xf32, #tpu.memory_space<vmem>>, vector<32x32xf32>
    %cst_11 = arith.constant dense<0.000000e+00> : vector<128x32xf32>
    %12 = tpu.matmul %10, %11, %cst_11 {dimension_numbers = #tpu.dot_dimension_numbers<[1], [0], [0], [1], [0, 0, 1, 1], [], []>} : vector<128x32xf32>, vector<32x32xf32>, vector<128x32xf32> -> vector<128x32xf32>
    %13 = arith.truncf %12 : vector<128x32xf32> to vector<128x32xbf16>
    %cst_12 = arith.constant dense<0.000000e+00> : vector<128x32xf32>
    %14 = tpu.matmul %0, %13, %cst_12 {dimension_numbers = #tpu.dot_dimension_numbers<[1], [0], [0], [1], [0, 0, 1, 1], [], []>} : vector<128x128xbf16>, vector<128x32xbf16>, vector<128x32xf32> -> vector<128x32xf32>
    %c0_13 = arith.constant 0 : index
    %c0_14 = arith.constant 0 : index
    %15 = vector.load %arg6[%c0_13, %c0_14] : memref<1x32xf32, #tpu.memory_space<vmem>>, vector<1x32xf32>
    %16 = vector.broadcast %15 : vector<1x32xf32> to vector<128x32xf32>
    %17 = arith.addf %14, %16 : vector<128x32xf32>
    %cst_15 = arith.constant 0.000000e+00 : f32
    %18 = vector.broadcast %cst_15 : f32 to vector<128x32xf32>
    %19 = arith.maximumf %17, %18 : vector<128x32xf32>
    %c0_16 = arith.constant 0 : index
    %c0_17 = arith.constant 0 : index
    %20 = vector.load %arg7[%c0_16, %c0_17] : memref<32x32xf32, #tpu.memory_space<vmem>>, vector<32x32xf32>
    %cst_18 = arith.constant dense<0.000000e+00> : vector<128x32xf32>
    %21 = tpu.matmul %19, %20, %cst_18 {dimension_numbers = #tpu.dot_dimension_numbers<[1], [0], [0], [1], [0, 0, 1, 1], [], []>} : vector<128x32xf32>, vector<32x32xf32>, vector<128x32xf32> -> vector<128x32xf32>
    %22 = arith.truncf %21 : vector<128x32xf32> to vector<128x32xbf16>
    %cst_19 = arith.constant dense<0.000000e+00> : vector<128x32xf32>
    %23 = tpu.matmul %0, %22, %cst_19 {dimension_numbers = #tpu.dot_dimension_numbers<[1], [0], [0], [1], [0, 0, 1, 1], [], []>} : vector<128x128xbf16>, vector<128x32xbf16>, vector<128x32xf32> -> vector<128x32xf32>
    %c0_20 = arith.constant 0 : index
    %c0_21 = arith.constant 0 : index
    %24 = vector.load %arg8[%c0_20, %c0_21] : memref<1x32xf32, #tpu.memory_space<vmem>>, vector<1x32xf32>
    %25 = vector.broadcast %24 : vector<1x32xf32> to vector<128x32xf32>
    %26 = arith.addf %23, %25 : vector<128x32xf32>
    %cst_22 = arith.constant 0.000000e+00 : f32
    %27 = vector.broadcast %cst_22 : f32 to vector<128x32xf32>
    %28 = arith.maximumf %26, %27 : vector<128x32xf32>
    %29 = tpu.concatenate %10, %19, %28 in 1 : vector<128x32xf32>, vector<128x32xf32>, vector<128x32xf32> -> vector<128x96xf32>
    %c0_23 = arith.constant 0 : index
    %c0_24 = arith.constant 0 : index
    %30 = vector.load %arg9[%c0_23, %c0_24] : memref<96x128xf32, #tpu.memory_space<vmem>>, vector<96x128xf32>
    %cst_25 = arith.constant dense<0.000000e+00> : vector<128x128xf32>
    %31 = tpu.matmul %29, %30, %cst_25 {dimension_numbers = #tpu.dot_dimension_numbers<[1], [0], [0], [1], [0, 0, 1, 1], [], []>} : vector<128x96xf32>, vector<96x128xf32>, vector<128x128xf32> -> vector<128x128xf32>
    %32 = arith.truncf %31 : vector<128x128xf32> to vector<128x128xbf16>
    %cst_26 = arith.constant dense<0.000000e+00> : vector<128x128xf32>
    %33 = tpu.matmul %0, %32, %cst_26 {dimension_numbers = #tpu.dot_dimension_numbers<[1], [0], [0], [1], [0, 0, 1, 1], [], []>} : vector<128x128xbf16>, vector<128x128xbf16>, vector<128x128xf32> -> vector<128x128xf32>
    %c0_27 = arith.constant 0 : index
    %c0_28 = arith.constant 0 : index
    %34 = vector.load %arg10[%c0_27, %c0_28] : memref<1x128xf32, #tpu.memory_space<vmem>>, vector<1x128xf32>
    %35 = vector.broadcast %34 : vector<1x128xf32> to vector<128x128xf32>
    %36 = arith.addf %33, %35 : vector<128x128xf32>
    %c0_29 = arith.constant 0 : index
    %c0_30 = arith.constant 0 : index
    %37 = vector.load %arg11[%c0_29, %c0_30] : memref<128x128xf32, #tpu.memory_space<vmem>>, vector<128x128xf32>
    tpu.vector_store %arg11[%c0_29, %c0_30], %36 {strides = array<i32>} : memref<128x128xf32, #tpu.memory_space<vmem>>, vector<128x128xf32>,
    %38 = vector.extract_strided_slice %36 {offsets = [0, 0], sizes = [128, 1], strides = [1, 1]} : vector<128x128xf32> to vector<128x1xf32>
    %39 = math.tanh %38 : vector<128x1xf32>
    %40 = vector.broadcast %39 : vector<128x1xf32> to vector<128x96xf32>
    %41 = arith.mulf %29, %40 : vector<128x96xf32>
    %c0_31 = arith.constant 0 : index
    %c0_32 = arith.constant 0 : index
    %42 = vector.load %arg12[%c0_31, %c0_32] : memref<128x96xf32, #tpu.memory_space<vmem>>, vector<128x96xf32>
    tpu.vector_store %arg12[%c0_31, %c0_32], %41 {strides = array<i32>} : memref<128x96xf32, #tpu.memory_space<vmem>>, vector<128x96xf32>,
    return
  }
  func.func @transform_0(%arg0: i32) -> (i32, i32) {
    %c0_i32 = arith.constant 0 : i32
    %c0_i32_0 = arith.constant 0 : i32
    %c0_i32_1 = arith.constant 0 : i32
    return %c0_i32, %c0_i32_0 : i32, i32
  }
  func.func @transform_1(%arg0: i32) -> (i32, i32) {
    %c0_i32 = arith.constant 0 : i32
    %c0_i32_0 = arith.constant 0 : i32
    %c0_i32_1 = arith.constant 0 : i32
    return %c0_i32, %c0_i32_0 : i32, i32
  }
  func.func @transform_2(%arg0: i32) -> (i32, i32) {
    %c0_i32 = arith.constant 0 : i32
    %c0_i32_0 = arith.constant 0 : i32
    %c0_i32_1 = arith.constant 0 : i32
    return %c0_i32, %c0_i32_0 : i32, i32
  }
  func.func @transform_3(%arg0: i32) -> (i32, i32) {
    %c0_i32 = arith.constant 0 : i32
    %c0_i32_0 = arith.constant 0 : i32
    %c0_i32_1 = arith.constant 0 : i32
    return %c0_i32, %c0_i32_0 : i32, i32
  }
  func.func @transform_4(%arg0: i32) -> (i32, i32) {
    %c0_i32 = arith.constant 0 : i32
    %c0_i32_0 = arith.constant 0 : i32
    %c0_i32_1 = arith.constant 0 : i32
    return %c0_i32, %c0_i32_0 : i32, i32
  }
  func.func @transform_5(%arg0: i32) -> (i32, i32) {
    %c0_i32 = arith.constant 0 : i32
    %c0_i32_0 = arith.constant 0 : i32
    %c0_i32_1 = arith.constant 0 : i32
    return %c0_i32, %c0_i32_0 : i32, i32
  }
  func.func @transform_6(%arg0: i32) -> (i32, i32) {
    %c0_i32 = arith.constant 0 : i32
    %c0_i32_0 = arith.constant 0 : i32
    %c0_i32_1 = arith.constant 0 : i32
    return %c0_i32, %c0_i32_0 : i32, i32
  }
  func.func @transform_7(%arg0: i32) -> (i32, i32) {
    %c0_i32 = arith.constant 0 : i32
    %c0_i32_0 = arith.constant 0 : i32
    %c0_i32_1 = arith.constant 0 : i32
    return %c0_i32, %c0_i32_0 : i32, i32
  }
  func.func @transform_8(%arg0: i32) -> (i32, i32) {
    %c0_i32 = arith.constant 0 : i32
    %c0_i32_0 = arith.constant 0 : i32
    %c0_i32_1 = arith.constant 0 : i32
    return %c0_i32, %c0_i32_0 : i32, i32
  }
  func.func @transform_9(%arg0: i32) -> (i32, i32) {
    %c0_i32 = arith.constant 0 : i32
    %c0_i32_0 = arith.constant 0 : i32
    %c0_i32_1 = arith.constant 0 : i32
    return %c0_i32, %c0_i32_0 : i32, i32
  }
  func.func @transform_10(%arg0: i32) -> (i32, i32) {
    %c0_i32 = arith.constant 0 : i32
    %c0_i32_0 = arith.constant 0 : i32
    %c0_i32_1 = arith.constant 0 : i32
    return %c0_i32, %c0_i32_0 : i32, i32
  }
  func.func @transform_11(%arg0: i32) -> (i32, i32) {
    %c0_i32 = arith.constant 0 : i32
    %c0_i32_0 = arith.constant 0 : i32
    %c0_i32_1 = arith.constant 0 : i32
    return %c0_i32, %c0_i32_0 : i32, i32
  }
}

module attributes {stable_mosaic.version = 11 : i64} {
  func.func @_readout_head_kernel(%arg0: i32, %arg1: memref<128x96xf32, #tpu.memory_space<vmem>>, %arg2: memref<8x128xf32, #tpu.memory_space<vmem>>, %arg3: memref<96x32xf32, #tpu.memory_space<vmem>>, %arg4: memref<96x32xf32, #tpu.memory_space<vmem>>, %arg5: memref<1x32xf32, #tpu.memory_space<vmem>>, %arg6: memref<32x16xf32, #tpu.memory_space<vmem>>, %arg7: memref<1x16xf32, #tpu.memory_space<vmem>>, %arg8: memref<16x128xf32, #tpu.memory_space<vmem>>, %arg9: memref<1x128xf32, #tpu.memory_space<vmem>>, %arg10: memref<8x128xf32, #tpu.memory_space<vmem>>, %arg11: memref<8x96xf32, #tpu.memory_space<vmem>>, %arg12: memref<8x96xf32, #tpu.memory_space<vmem>>, %arg13: memref<8x1xf32, #tpu.memory_space<vmem>>) attributes {dimension_semantics = [#tpu.dimension_semantics<arbitrary>], iteration_bounds = array<i64: 1>, scalar_prefetch = 0 : i64, scratch_operands = 3 : i64, tpu.core_type = #tpu.core_type<tc>, window_params = [{transform_indices = @transform_0, window_bounds = array<i64: 128, 96>}, {transform_indices = @transform_1, window_bounds = array<i64: 8, 128>}, {pipeline_mode = #tpu.pipeline_mode<synchronous>, transform_indices = @transform_2, window_bounds = array<i64: 96, 32>}, {pipeline_mode = #tpu.pipeline_mode<synchronous>, transform_indices = @transform_3, window_bounds = array<i64: 96, 32>}, {pipeline_mode = #tpu.pipeline_mode<synchronous>, transform_indices = @transform_4, window_bounds = array<i64: 1, 32>}, {pipeline_mode = #tpu.pipeline_mode<synchronous>, transform_indices = @transform_5, window_bounds = array<i64: 32, 16>}, {pipeline_mode = #tpu.pipeline_mode<synchronous>, transform_indices = @transform_6, window_bounds = array<i64: 1, 16>}, {pipeline_mode = #tpu.pipeline_mode<synchronous>, transform_indices = @transform_7, window_bounds = array<i64: 16, 128>}, {pipeline_mode = #tpu.pipeline_mode<synchronous>, transform_indices = @transform_8, window_bounds = array<i64: 1, 128>}, {pipeline_mode = #tpu.pipeline_mode<synchronous>, transform_indices = @transform_9, window_bounds = array<i64: 8, 128>}]} {
    %c0_i32 = arith.constant 0 : i32
    %0 = arith.cmpi eq, %arg0, %c0_i32 : i32
    %1 = arith.extui %0 : i1 to i32
    %cst = arith.constant -3.000000e+38 : f32
    %c0_i32_0 = arith.constant 0 : i32
    %2 = arith.cmpi ne, %1, %c0_i32_0 : i32
    scf.if %2 {
      %49 = vector.broadcast %cst : f32 to vector<8x96xf32>
      %c0_27 = arith.constant 0 : index
      %c0_28 = arith.constant 0 : index
      %50 = vector.load %arg11[%c0_27, %c0_28] : memref<8x96xf32, #tpu.memory_space<vmem>>, vector<8x96xf32>
      tpu.vector_store %arg11[%c0_27, %c0_28], %49 {strides = array<i32>} : memref<8x96xf32, #tpu.memory_space<vmem>>, vector<8x96xf32>,
      %cst_29 = arith.constant 0.000000e+00 : f32
      %51 = vector.broadcast %cst_29 : f32 to vector<8x96xf32>
      %c0_30 = arith.constant 0 : index
      %c0_31 = arith.constant 0 : index
      %52 = vector.load %arg12[%c0_30, %c0_31] : memref<8x96xf32, #tpu.memory_space<vmem>>, vector<8x96xf32>
      tpu.vector_store %arg12[%c0_30, %c0_31], %51 {strides = array<i32>} : memref<8x96xf32, #tpu.memory_space<vmem>>, vector<8x96xf32>,
      %cst_32 = arith.constant 0.000000e+00 : f32
      %53 = vector.broadcast %cst_32 : f32 to vector<8x1xf32>
      %c0_33 = arith.constant 0 : index
      %c0_34 = arith.constant 0 : index
      %54 = vector.load %arg13[%c0_33, %c0_34] : memref<8x1xf32, #tpu.memory_space<vmem>>, vector<8x1xf32>
      tpu.vector_store %arg13[%c0_33, %c0_34], %53 {strides = array<i32>} : memref<8x1xf32, #tpu.memory_space<vmem>>, vector<8x1xf32>,
    } else {
    }
    %c0 = arith.constant 0 : index
    %c0_1 = arith.constant 0 : index
    %3 = vector.load %arg1[%c0, %c0_1] : memref<128x96xf32, #tpu.memory_space<vmem>>, vector<128x96xf32>
    %c0_2 = arith.constant 0 : index
    %c0_3 = arith.constant 0 : index
    %4 = vector.load %arg2[%c0_2, %c0_3] : memref<8x128xf32, #tpu.memory_space<vmem>>, vector<8x128xf32>
    %c0_4 = arith.constant 0 : index
    %c0_5 = arith.constant 0 : index
    %5 = vector.load %arg12[%c0_4, %c0_5] : memref<8x96xf32, #tpu.memory_space<vmem>>, vector<8x96xf32>
    %cst_6 = arith.constant dense<0.000000e+00> : vector<8x96xf32>
    %6 = tpu.matmul %4, %3, %cst_6 {dimension_numbers = #tpu.dot_dimension_numbers<[1], [0], [0], [1], [0, 0, 1, 1], [], []>} : vector<8x128xf32>, vector<128x96xf32>, vector<8x96xf32> -> vector<8x96xf32>
    %7 = arith.addf %5, %6 : vector<8x96xf32>
    %c0_7 = arith.constant 0 : index
    %c0_8 = arith.constant 0 : index
    %8 = vector.load %arg12[%c0_7, %c0_8] : memref<8x96xf32, #tpu.memory_space<vmem>>, vector<8x96xf32>
    tpu.vector_store %arg12[%c0_7, %c0_8], %7 {strides = array<i32>} : memref<8x96xf32, #tpu.memory_space<vmem>>, vector<8x96xf32>,
    %c0_9 = arith.constant 0 : index
    %c0_10 = arith.constant 0 : index
    %9 = vector.load %arg13[%c0_9, %c0_10] : memref<8x1xf32, #tpu.memory_space<vmem>>, vector<8x1xf32>
    %cst_11 = arith.constant dense<0.000000e+00> : vector<8xf32>
    %10 = vector.multi_reduction <add>, %4, %cst_11 [1] : vector<8x128xf32> to vector<8xf32>
    %11 = vector.shape_cast %10 : vector<8xf32> to vector<8x1xf32>
    %12 = arith.addf %9, %11 : vector<8x1xf32>
    %c0_12 = arith.constant 0 : index
    %c0_13 = arith.constant 0 : index
    %13 = vector.load %arg13[%c0_12, %c0_13] : memref<8x1xf32, #tpu.memory_space<vmem>>, vector<8x1xf32>
    tpu.vector_store %arg13[%c0_12, %c0_13], %12 {strides = array<i32>} : memref<8x1xf32, #tpu.memory_space<vmem>>, vector<8x1xf32>,
    %cst_14 = arith.constant -3.000000e+38 : f32
    %14 = vector.broadcast %cst_14 : f32 to vector<8x96xf32>
    %15 = vector.extract_strided_slice %3 {offsets = [0, 0], sizes = [64, 96], strides = [1, 1]} : vector<128x96xf32> to vector<64x96xf32>
    %16 = vector.extract_strided_slice %4 {offsets = [0, 0], sizes = [8, 64], strides = [1, 1]} : vector<8x128xf32> to vector<8x64xf32>
    %17 = vector.shape_cast %16 : vector<8x64xf32> to vector<8x64x1xf32>
    %cst_15 = arith.constant 0.000000e+00 : f32
    %18 = vector.broadcast %cst_15 : f32 to vector<8x64x1xf32>
    %19 = arith.cmpf ogt, %17, %18 : vector<8x64x1xf32>
    %20 = vector.shape_cast %15 : vector<64x96xf32> to vector<1x64x96xf32>
    %cst_16 = arith.constant -3.000000e+38 : f32
    %21 = vector.shape_cast %19 : vector<8x64x1xi1> to vector<8x64x1xi1>
    %22 = vector.broadcast %21 : vector<8x64x1xi1> to vector<8x64x96xi1>
    %23 = vector.shape_cast %20 : vector<1x64x96xf32> to vector<1x64x96xf32>
    %24 = vector.broadcast %23 : vector<1x64x96xf32> to vector<8x64x96xf32>
    %25 = vector.broadcast %cst_16 : f32 to vector<8x64x96xf32>
    %26 = arith.select %22, %24, %25 : vector<8x64x96xi1>, vector<8x64x96xf32>
    %cst_17 = arith.constant dense<0xFF800000> : vector<8x96xf32>
    %27 = vector.multi_reduction <maximumf>, %26, %cst_17 [1] : vector<8x64x96xf32> to vector<8x96xf32>
    %28 = arith.maximumf %14, %27 : vector<8x96xf32>
    %29 = vector.extract_strided_slice %3 {offsets = [64, 0], sizes = [64, 96], strides = [1, 1]} : vector<128x96xf32> to vector<64x96xf32>
    %30 = vector.extract_strided_slice %4 {offsets = [0, 64], sizes = [8, 64], strides = [1, 1]} : vector<8x128xf32> to vector<8x64xf32>
    %31 = vector.shape_cast %30 : vector<8x64xf32> to vector<8x64x1xf32>
    %cst_18 = arith.constant 0.000000e+00 : f32
    %32 = vector.broadcast %cst_18 : f32 to vector<8x64x1xf32>
    %33 = arith.cmpf ogt, %31, %32 : vector<8x64x1xf32>
    %34 = vector.shape_cast %29 : vector<64x96xf32> to vector<1x64x96xf32>
    %cst_19 = arith.constant -3.000000e+38 : f32
    %35 = vector.shape_cast %33 : vector<8x64x1xi1> to vector<8x64x1xi1>
    %36 = vector.broadcast %35 : vector<8x64x1xi1> to vector<8x64x96xi1>
    %37 = vector.shape_cast %34 : vector<1x64x96xf32> to vector<1x64x96xf32>
    %38 = vector.broadcast %37 : vector<1x64x96xf32> to vector<8x64x96xf32>
    %39 = vector.broadcast %cst_19 : f32 to vector<8x64x96xf32>
    %40 = arith.select %36, %38, %39 : vector<8x64x96xi1>, vector<8x64x96xf32>
    %cst_20 = arith.constant dense<0xFF800000> : vector<8x96xf32>
    %41 = vector.multi_reduction <maximumf>, %40, %cst_20 [1] : vector<8x64x96xf32> to vector<8x96xf32>
    %42 = arith.maximumf %28, %41 : vector<8x96xf32>
    %c0_21 = arith.constant 0 : index
    %c0_22 = arith.constant 0 : index
    %43 = vector.load %arg11[%c0_21, %c0_22] : memref<8x96xf32, #tpu.memory_space<vmem>>, vector<8x96xf32>
    %44 = arith.maximumf %43, %42 : vector<8x96xf32>
    %c0_23 = arith.constant 0 : index
    %c0_24 = arith.constant 0 : index
    %45 = vector.load %arg11[%c0_23, %c0_24] : memref<8x96xf32, #tpu.memory_space<vmem>>, vector<8x96xf32>
    tpu.vector_store %arg11[%c0_23, %c0_24], %44 {strides = array<i32>} : memref<8x96xf32, #tpu.memory_space<vmem>>, vector<8x96xf32>,
    %c0_i32_25 = arith.constant 0 : i32
    %46 = arith.cmpi eq, %arg0, %c0_i32_25 : i32
    %47 = arith.extui %46 : i1 to i32
    %c0_i32_26 = arith.constant 0 : i32
    %48 = arith.cmpi ne, %47, %c0_i32_26 : i32
    scf.if %48 {
      %c0_27 = arith.constant 0 : index
      %c0_28 = arith.constant 0 : index
      %49 = vector.load %arg13[%c0_27, %c0_28] : memref<8x1xf32, #tpu.memory_space<vmem>>, vector<8x1xf32>
      %c0_29 = arith.constant 0 : index
      %c0_30 = arith.constant 0 : index
      %50 = vector.load %arg12[%c0_29, %c0_30] : memref<8x96xf32, #tpu.memory_space<vmem>>, vector<8x96xf32>
      %cst_31 = arith.constant 1.000000e+00 : f32
      %51 = vector.broadcast %cst_31 : f32 to vector<8x1xf32>
      %52 = arith.maximumf %49, %51 : vector<8x1xf32>
      %53 = vector.broadcast %52 : vector<8x1xf32> to vector<8x96xf32>
      %54 = arith.divf %50, %53 : vector<8x96xf32>
      %cst_32 = arith.constant 0.000000e+00 : f32
      %55 = vector.broadcast %cst_32 : f32 to vector<8x1xf32>
      %56 = arith.cmpf ogt, %49, %55 : vector<8x1xf32>
      %c0_33 = arith.constant 0 : index
      %c0_34 = arith.constant 0 : index
      %57 = vector.load %arg11[%c0_33, %c0_34] : memref<8x96xf32, #tpu.memory_space<vmem>>, vector<8x96xf32>
      %cst_35 = arith.constant 0.000000e+00 : f32
      %58 = vector.shape_cast %56 : vector<8x1xi1> to vector<8x1xi1>
      %59 = vector.broadcast %58 : vector<8x1xi1> to vector<8x96xi1>
      %60 = vector.broadcast %cst_35 : f32 to vector<8x96xf32>
      %61 = arith.select %59, %57, %60 : vector<8x96xi1>, vector<8x96xf32>
      %c0_36 = arith.constant 0 : index
      %c0_37 = arith.constant 0 : index
      %62 = vector.load %arg3[%c0_36, %c0_37] : memref<96x32xf32, #tpu.memory_space<vmem>>, vector<96x32xf32>
      %cst_38 = arith.constant dense<0.000000e+00> : vector<8x32xf32>
      %63 = tpu.matmul %61, %62, %cst_38 {dimension_numbers = #tpu.dot_dimension_numbers<[1], [0], [0], [1], [0, 0, 1, 1], [], []>} : vector<8x96xf32>, vector<96x32xf32>, vector<8x32xf32> -> vector<8x32xf32>
      %c0_39 = arith.constant 0 : index
      %c0_40 = arith.constant 0 : index
      %64 = vector.load %arg4[%c0_39, %c0_40] : memref<96x32xf32, #tpu.memory_space<vmem>>, vector<96x32xf32>
      %cst_41 = arith.constant dense<0.000000e+00> : vector<8x32xf32>
      %65 = tpu.matmul %54, %64, %cst_41 {dimension_numbers = #tpu.dot_dimension_numbers<[1], [0], [0], [1], [0, 0, 1, 1], [], []>} : vector<8x96xf32>, vector<96x32xf32>, vector<8x32xf32> -> vector<8x32xf32>
      %66 = arith.addf %63, %65 : vector<8x32xf32>
      %c0_42 = arith.constant 0 : index
      %c0_43 = arith.constant 0 : index
      %67 = vector.load %arg5[%c0_42, %c0_43] : memref<1x32xf32, #tpu.memory_space<vmem>>, vector<1x32xf32>
      %68 = vector.broadcast %67 : vector<1x32xf32> to vector<8x32xf32>
      %69 = arith.addf %66, %68 : vector<8x32xf32>
      %cst_44 = arith.constant 0.000000e+00 : f32
      %70 = vector.broadcast %cst_44 : f32 to vector<8x32xf32>
      %71 = arith.maximumf %69, %70 : vector<8x32xf32>
      %c0_45 = arith.constant 0 : index
      %c0_46 = arith.constant 0 : index
      %72 = vector.load %arg6[%c0_45, %c0_46] : memref<32x16xf32, #tpu.memory_space<vmem>>, vector<32x16xf32>
      %cst_47 = arith.constant dense<0.000000e+00> : vector<8x16xf32>
      %73 = tpu.matmul %71, %72, %cst_47 {dimension_numbers = #tpu.dot_dimension_numbers<[1], [0], [0], [1], [0, 0, 1, 1], [], []>} : vector<8x32xf32>, vector<32x16xf32>, vector<8x16xf32> -> vector<8x16xf32>
      %c0_48 = arith.constant 0 : index
      %c0_49 = arith.constant 0 : index
      %74 = vector.load %arg7[%c0_48, %c0_49] : memref<1x16xf32, #tpu.memory_space<vmem>>, vector<1x16xf32>
      %75 = vector.broadcast %74 : vector<1x16xf32> to vector<8x16xf32>
      %76 = arith.addf %73, %75 : vector<8x16xf32>
      %cst_50 = arith.constant 0.000000e+00 : f32
      %77 = vector.broadcast %cst_50 : f32 to vector<8x16xf32>
      %78 = arith.maximumf %76, %77 : vector<8x16xf32>
      %c0_51 = arith.constant 0 : index
      %c0_52 = arith.constant 0 : index
      %79 = vector.load %arg8[%c0_51, %c0_52] : memref<16x128xf32, #tpu.memory_space<vmem>>, vector<16x128xf32>
      %cst_53 = arith.constant dense<0.000000e+00> : vector<8x128xf32>
      %80 = tpu.matmul %78, %79, %cst_53 {dimension_numbers = #tpu.dot_dimension_numbers<[1], [0], [0], [1], [0, 0, 1, 1], [], []>} : vector<8x16xf32>, vector<16x128xf32>, vector<8x128xf32> -> vector<8x128xf32>
      %c0_54 = arith.constant 0 : index
      %c0_55 = arith.constant 0 : index
      %81 = vector.load %arg9[%c0_54, %c0_55] : memref<1x128xf32, #tpu.memory_space<vmem>>, vector<1x128xf32>
      %82 = vector.broadcast %81 : vector<1x128xf32> to vector<8x128xf32>
      %83 = arith.addf %80, %82 : vector<8x128xf32>
      %cst_56 = arith.constant dense<0xFF800000> : vector<8xf32>
      %84 = vector.multi_reduction <maximumf>, %83, %cst_56 [1] : vector<8x128xf32> to vector<8xf32>
      %85 = vector.shape_cast %84 : vector<8xf32> to vector<8x1xf32>
      %86 = vector.broadcast %85 : vector<8x1xf32> to vector<8x128xf32>
      %87 = arith.subf %83, %86 : vector<8x128xf32>
      %88 = math.exp %87 : vector<8x128xf32>
      %cst_57 = arith.constant dense<0.000000e+00> : vector<8xf32>
      %89 = vector.multi_reduction <add>, %88, %cst_57 [1] : vector<8x128xf32> to vector<8xf32>
      %90 = vector.shape_cast %89 : vector<8xf32> to vector<8x1xf32>
      %91 = math.log %90 : vector<8x1xf32>
      %92 = arith.addf %85, %91 : vector<8x1xf32>
      %93 = vector.broadcast %92 : vector<8x1xf32> to vector<8x128xf32>
      %94 = arith.subf %83, %93 : vector<8x128xf32>
      %c0_58 = arith.constant 0 : index
      %c0_59 = arith.constant 0 : index
      %95 = vector.load %arg10[%c0_58, %c0_59] : memref<8x128xf32, #tpu.memory_space<vmem>>, vector<8x128xf32>
      tpu.vector_store %arg10[%c0_58, %c0_59], %94 {strides = array<i32>} : memref<8x128xf32, #tpu.memory_space<vmem>>, vector<8x128xf32>,
    } else {
    }
    return
  }
  func.func @transform_0(%arg0: i32) -> (i32, i32) {
    %c0_i32 = arith.constant 0 : i32
    %c0_i32_0 = arith.constant 0 : i32
    return %arg0, %c0_i32 : i32, i32
  }
  func.func @transform_1(%arg0: i32) -> (i32, i32) {
    %c0_i32 = arith.constant 0 : i32
    %c0_i32_0 = arith.constant 0 : i32
    return %c0_i32, %arg0 : i32, i32
  }
  func.func @transform_2(%arg0: i32) -> (i32, i32) {
    %c0_i32 = arith.constant 0 : i32
    %c0_i32_0 = arith.constant 0 : i32
    %c0_i32_1 = arith.constant 0 : i32
    return %c0_i32, %c0_i32_0 : i32, i32
  }
  func.func @transform_3(%arg0: i32) -> (i32, i32) {
    %c0_i32 = arith.constant 0 : i32
    %c0_i32_0 = arith.constant 0 : i32
    %c0_i32_1 = arith.constant 0 : i32
    return %c0_i32, %c0_i32_0 : i32, i32
  }
  func.func @transform_4(%arg0: i32) -> (i32, i32) {
    %c0_i32 = arith.constant 0 : i32
    %c0_i32_0 = arith.constant 0 : i32
    %c0_i32_1 = arith.constant 0 : i32
    return %c0_i32, %c0_i32_0 : i32, i32
  }
  func.func @transform_5(%arg0: i32) -> (i32, i32) {
    %c0_i32 = arith.constant 0 : i32
    %c0_i32_0 = arith.constant 0 : i32
    %c0_i32_1 = arith.constant 0 : i32
    return %c0_i32, %c0_i32_0 : i32, i32
  }
  func.func @transform_6(%arg0: i32) -> (i32, i32) {
    %c0_i32 = arith.constant 0 : i32
    %c0_i32_0 = arith.constant 0 : i32
    %c0_i32_1 = arith.constant 0 : i32
    return %c0_i32, %c0_i32_0 : i32, i32
  }
  func.func @transform_7(%arg0: i32) -> (i32, i32) {
    %c0_i32 = arith.constant 0 : i32
    %c0_i32_0 = arith.constant 0 : i32
    %c0_i32_1 = arith.constant 0 : i32
    return %c0_i32, %c0_i32_0 : i32, i32
  }
  func.func @transform_8(%arg0: i32) -> (i32, i32) {
    %c0_i32 = arith.constant 0 : i32
    %c0_i32_0 = arith.constant 0 : i32
    %c0_i32_1 = arith.constant 0 : i32
    return %c0_i32, %c0_i32_0 : i32, i32
  }
  func.func @transform_9(%arg0: i32) -> (i32, i32) {
    %c0_i32 = arith.constant 0 : i32
    %c0_i32_0 = arith.constant 0 : i32
    %c0_i32_1 = arith.constant 0 : i32
    return %c0_i32, %c0_i32_0 : i32, i32
  }
}

</mosaic_0001>

<llo_original>
// kernel: sagpool_net_forward.2
$region0: #{sagpool_net_forward.2}
  #allocation0 [shape = 'u32[]', space=smem, size = 0x4, offset = 0x4, fixed_abs, tag = 'smem constant byte address 0x4 - core index']
  #allocation1 [shape = 'u32[72,128]{1,0:T(1,128)}', space=vmem, size = 0x9000, scoped, tag = 'internal scratch']
  %s0 = inlined_call_operand.vmem [shape: bf16[128,128], index: 0, kind: input, shape index: {}]
  %s1 = inlined_call_operand.vmem [shape: f32[128,4], index: 1, kind: input, shape index: {}]
  %s2 = inlined_call_operand.vmem [shape: f32[4,32], index: 2, kind: input, shape index: {}]
  %s3 = inlined_call_operand.vmem [shape: f32[1,32], index: 3, kind: input, shape index: {}]
  %s4 = inlined_call_operand.vmem [shape: f32[32,32], index: 4, kind: input, shape index: {}]
  %s5 = inlined_call_operand.vmem [shape: f32[1,32], index: 5, kind: input, shape index: {}]
  %s6 = inlined_call_operand.vmem [shape: f32[32,32], index: 6, kind: input, shape index: {}]
  %s7 = inlined_call_operand.vmem [shape: f32[1,32], index: 7, kind: input, shape index: {}]
  %s8 = inlined_call_operand.vmem [shape: f32[96,128], index: 8, kind: input, shape index: {}]
  %s9 = inlined_call_operand.vmem [shape: f32[1,128], index: 9, kind: input, shape index: {}]
  %s10 = inlined_call_operand.vmem [shape: f32[128,128], index: 10, kind: output, shape index: {0}]
  %s11 = inlined_call_operand.vmem [shape: f32[128,96], index: 11, kind: output, shape index: {1}]
  %12 = xla_tuple %s10, %s11
  %s13 = sld [smem:[#allocation0]]
  $region58: #{sagpool_net_forward.2} parent=0
    _
  %s15 = ssub.s32 1, %s13
  %s16 = scalar_select 0, %s15, %s13
  // Predicated region
  $region2: #{sagpool_net_forward.2} parent=0 // pred_check
    _
  $region3: #{sagpool_net_forward.2} parent=0 // pred_check_branch
    %18 = sbr.rel (0) target = $region5
  $region4: #{sagpool_net_forward.2} parent=0 // pred_region
    _
  $region5: #{sagpool_net_forward.2} parent=0 // pred_fallthru
    _
  // Predicated region
  $region6: #{sagpool_net_forward.2} parent=0 // pred_check
    _
  $region7: #{sagpool_net_forward.2} parent=0 // pred_check_branch
    %20 = sbr.rel (0) target = $region9
  $region8: #{sagpool_net_forward.2} parent=0 // pred_region
    _
  $region9: #{sagpool_net_forward.2} parent=0 // pred_fallthru
    _
  // Predicated region
  $region10: #{sagpool_net_forward.2} parent=0 // pred_check
    _
  $region11: #{sagpool_net_forward.2} parent=0 // pred_check_branch
    %22 = sbr.rel (0) target = $region13
  $region12: #{sagpool_net_forward.2} parent=0 // pred_region
    _
  $region13: #{sagpool_net_forward.2} parent=0 // pred_fallthru
    _
  // Predicated region
  $region14: #{sagpool_net_forward.2} parent=0 // pred_check
    _
  $region15: #{sagpool_net_forward.2} parent=0 // pred_check_branch
    %24 = sbr.rel (0) target = $region17
  $region16: #{sagpool_net_forward.2} parent=0 // pred_region
    _
  $region17: #{sagpool_net_forward.2} parent=0 // pred_fallthru
    _
  // Predicated region
  $region18: #{sagpool_net_forward.2} parent=0 // pred_check
    _
  $region19: #{sagpool_net_forward.2} parent=0 // pred_check_branch
    %26 = sbr.rel (0) target = $region21
  $region20: #{sagpool_net_forward.2} parent=0 // pred_region
    _
  $region21: #{sagpool_net_forward.2} parent=0 // pred_fallthru
    _
  // Predicated region
  $region22: #{sagpool_net_forward.2} parent=0 // pred_check
    _
  $region23: #{sagpool_net_forward.2} parent=0 // pred_check_branch
    %28 = sbr.rel (0) target = $region25
  $region24: #{sagpool_net_forward.2} parent=0 // pred_region
    _
  $region25: #{sagpool_net_forward.2} parent=0 // pred_fallthru
    _
  // Predicated region
  $region26: #{sagpool_net_forward.2} parent=0 // pred_check
    _
  $region27: #{sagpool_net_forward.2} parent=0 // pred_check_branch
    %30 = sbr.rel (0) target = $region29
  $region28: #{sagpool_net_forward.2} parent=0 // pred_region
    _
  $region29: #{sagpool_net_forward.2} parent=0 // pred_fallthru
    _
  // Predicated region
  $region30: #{sagpool_net_forward.2} parent=0 // pred_check
    _
  $region31: #{sagpool_net_forward.2} parent=0 // pred_check_branch
    %32 = sbr.rel (0) target = $region33
  $region32: #{sagpool_net_forward.2} parent=0 // pred_region
    _
  $region33: #{sagpool_net_forward.2} parent=0 // pred_fallthru
    _
  // Predicated region
  $region34: #{sagpool_net_forward.2} parent=0 // pred_check
    _
  $region35: #{sagpool_net_forward.2} parent=0 // pred_check_branch
    %34 = sbr.rel (0) target = $region37
  $region36: #{sagpool_net_forward.2} parent=0 // pred_region
    _
  $region37: #{sagpool_net_forward.2} parent=0 // pred_fallthru
    _
  // Predicated region
  $region38: #{sagpool_net_forward.2} parent=0 // pred_check
    _
  $region39: #{sagpool_net_forward.2} parent=0 // pred_check_branch
    %36 = sbr.rel (0) target = $region41
  $region40: #{sagpool_net_forward.2} parent=0 // pred_region
    _
  $region41: #{sagpool_net_forward.2} parent=0 // pred_fallthru
    _
  %v37 = vld [vmem:[%s0] sm:$0xf]
  %v38 = vld [vmem:[%s0 + $0x4] sm:$0xf]
  %v39 = vld [vmem:[%s0 + $0x8] sm:$0xf]
  %v40 = vld [vmem:[%s0 + $0xc] sm:$0xf]
  %v41 = vld [vmem:[%s0 + $0x10] sm:$0xf]
  %v42 = vld [vmem:[%s0 + $0x14] sm:$0xf]
  %v43 = vld [vmem:[%s0 + $0x18] sm:$0xf]
  %v44 = vld [vmem:[%s0 + $0x1c] sm:$0xf]
  %v45 = vld [vmem:[%s0 + $0x20] sm:$0xf]
  %v46 = vld [vmem:[%s0 + $0x24] sm:$0xf]
  %v47 = vld [vmem:[%s0 + $0x28] sm:$0xf]
  %v48 = vld [vmem:[%s0 + $0x2c] sm:$0xf]
  %v49 = vld [vmem:[%s0 + $0x30] sm:$0xf]
  %v50 = vld [vmem:[%s0 + $0x34] sm:$0xf]
  %v51 = vld [vmem:[%s0 + $0x38] sm:$0xf]
  %v52 = vld [vmem:[%s0 + $0x3c] sm:$0xf]
  %v53 = vld [vmem:[%s1] sm:$0xff]
  %v54 = vld [vmem:[%s1 + $0x8] sm:$0xff]
  %v55 = vld [vmem:[%s1 + $0x10] sm:$0xff]
  %v56 = vld [vmem:[%s1 + $0x18] sm:$0xff]
  %v57 = vld [vmem:[%s1 + $0x20] sm:$0xff]
  %v58 = vld [vmem:[%s1 + $0x28] sm:$0xff]
  %v59 = vld [vmem:[%s1 + $0x30] sm:$0xff]
  %v60 = vld [vmem:[%s1 + $0x38] sm:$0xff]
  %v61 = vld [vmem:[%s1 + $0x40] sm:$0xff]
  %v62 = vld [vmem:[%s1 + $0x48] sm:$0xff]
  %v63 = vld [vmem:[%s1 + $0x50] sm:$0xff]
  %v64 = vld [vmem:[%s1 + $0x58] sm:$0xff]
  %v65 = vld [vmem:[%s1 + $0x60] sm:$0xff]
  %v66 = vld [vmem:[%s1 + $0x68] sm:$0xff]
  %v67 = vld [vmem:[%s1 + $0x70] sm:$0xff]
  %v68 = vld [vmem:[%s1 + $0x78] sm:$0xff]
  %v69 = vld [vmem:[%s2] sm:$0xf]
  %vm70 = vcmask 31744
  %v72 = vsel %vm70, %v53, 0
  %v75 = vsel %vm70, %v54, 0
  %v78 = vsel %vm70, %v55, 0
  %v81 = vsel %vm70, %v56, 0
  %v84 = vsel %vm70, %v57, 0
  %v87 = vsel %vm70, %v58, 0
  %v90 = vsel %vm70, %v59, 0
  %v93 = vsel %vm70, %v60, 0
  %v96 = vsel %vm70, %v61, 0
  %v99 = vsel %vm70, %v62, 0
  %v102 = vsel %vm70, %v63, 0
  %v105 = vsel %vm70, %v64, 0
  %v108 = vsel %vm70, %v65, 0
  %v111 = vsel %vm70, %v66, 0
  %v114 = vsel %vm70, %v67, 0
  %v117 = vsel %vm70, %v68, 0
  %vm119 = vcmask 1043456
  %v121 = vsel %vm119, %v69, 0
  %123 = vmatpush.msra.mxu0 0.0
  %124 = vmatpush.msra.mxu0 0.0
  %125 = vmatpush.msra.mxu0 0.0
  %126 = vmatpush.msra.mxu0 0.0
  %127 = vmatpush.msra.mxu0 0.0
  %128 = vmatpush.msra.mxu0 0.0
  %129 = vmatpush.msra.mxu0 0.0
  %130 = vmatpush.msra.mxu0 0.0
  %131 = vmatpush.msra.mxu0 0.0
  %132 = vmatpush.msra.mxu0 0.0
  %133 = vmatpush.msra.mxu0 0.0
  %134 = vmatpush.msra.mxu0 0.0
  %135 = vmatpush.msra.mxu0 0.0
  %136 = vmatpush.msra.mxu0 0.0
  %137 = vmatpush.msra.mxu0 0.0
  %138 = vmatpush.msra.mxu0 %v121
  %139 = vmatmul.f32.gmra.mxu0 %v72
  %v140 = vpop.f32.mrf.mxu0
  %v141 = vadd.f32 0.0, %v140
  %142 = vmatmul.f32.gmra.mxu0 %v75
  %v143 = vpop.f32.mrf.mxu0
  %v144 = vadd.f32 0.0, %v143
  %145 = vmatmul.f32.gmra.mxu0 %v78
  %v146 = vpop.f32.mrf.mxu0
  %v147 = vadd.f32 0.0, %v146
  %148 = vmatmul.f32.gmra.mxu0 %v81
  %v149 = vpop.f32.mrf.mxu0
  %v150 = vadd.f32 0.0, %v149
  %151 = vmatmul.f32.gmra.mxu0 %v84
  %v152 = vpop.f32.mrf.mxu0
  %v153 = vadd.f32 0.0, %v152
  %154 = vmatmul.f32.gmra.mxu0 %v87
  %v155 = vpop.f32.mrf.mxu0
  %v156 = vadd.f32 0.0, %v155
  %157 = vmatmul.f32.gmra.mxu0 %v90
  %v158 = vpop.f32.mrf.mxu0
  %v159 = vadd.f32 0.0, %v158
  %160 = vmatmul.f32.gmra.mxu0 %v93
  %v161 = vpop.f32.mrf.mxu0
  %v162 = vadd.f32 0.0, %v161
  %163 = vmatmul.f32.gmra.mxu0 %v96
  %v164 = vpop.f32.mrf.mxu0
  %v165 = vadd.f32 0.0, %v164
  %166 = vmatmul.f32.gmra.mxu0 %v99
  %v167 = vpop.f32.mrf.mxu0
  %v168 = vadd.f32 0.0, %v167
  %169 = vmatmul.f32.gmra.mxu0 %v102
  %v170 = vpop.f32.mrf.mxu0
  %v171 = vadd.f32 0.0, %v170
  %172 = vmatmul.f32.gmra.mxu0 %v105
  %v173 = vpop.f32.mrf.mxu0
  %v174 = vadd.f32 0.0, %v173
  %175 = vmatmul.f32.gmra.mxu0 %v108
  %v176 = vpop.f32.mrf.mxu0
  %v177 = vadd.f32 0.0, %v176
  %178 = vmatmul.f32.gmra.mxu0 %v111
  %v179 = vpop.f32.mrf.mxu0
  %v180 = vadd.f32 0.0, %v179
  %181 = vmatmul.f32.gmra.mxu0 %v114
  %v182 = vpop.f32.mrf.mxu0
  %v183 = vadd.f32 0.0, %v182
  %184 = vmatmul.f32.gmra.mxu0 %v117
  %v185 = vpop.f32.mrf.mxu0
  %v186 = vadd.f32 0.0, %v185
  %187 = vdwg.mxu0
  %v188 = vpack.c.bf16 %v144, %v141
  %v189 = vpack.c.bf16 %v150, %v147
  %v190 = vpack.c.bf16 %v156, %v153
  %v191 = vpack.c.bf16 %v162, %v159
  %v192 = vpack.c.bf16 %v168, %v165
  %v193 = vpack.c.bf16 %v174, %v171
  %v194 = vpack.c.bf16 %v180, %v177
  %v195 = vpack.c.bf16 %v186, %v183
  %v196 = vld [vmem:[%s3] sm:$0x1]
  %v198 = vperm.slane %v196, 0
  %v216 = vunpack.c.l.b16 %v37
  %v217 = vunpack.c.l.b16 %v38
  %v218 = vunpack.c.l.b16 %v39
  %v219 = vunpack.c.l.b16 %v40
  %v220 = vunpack.c.l.b16 %v41
  %v221 = vunpack.c.l.b16 %v42
  %v222 = vunpack.c.l.b16 %v43
  %v223 = vunpack.c.l.b16 %v44
  %v224 = vunpack.c.l.b16 %v45
  %v225 = vunpack.c.l.b16 %v46
  %v226 = vunpack.c.l.b16 %v47
  %v227 = vunpack.c.l.b16 %v48
  %v228 = vunpack.c.l.b16 %v49
  %v229 = vunpack.c.l.b16 %v50
  %v230 = vunpack.c.l.b16 %v51
  %v231 = vunpack.c.l.b16 %v52
  %v232 = vpack.c.b16 %v217, %v216
  %v233 = vpack.c.b16 %v219, %v218
  %v234 = vpack.c.b16 %v221, %v220
  %v235 = vpack.c.b16 %v223, %v222
  %v236 = vpack.c.b16 %v225, %v224
  %v237 = vpack.c.b16 %v227, %v226
  %v238 = vpack.c.b16 %v229, %v228
  %v239 = vpack.c.b16 %v231, %v230
  %248 = vmatpush.bf16.msra.mxu0 %v195
  %249 = vmatpush.bf16.msra.mxu0 %v194
  %250 = vmatpush.bf16.msra.mxu0 %v193
  %251 = vmatpush.bf16.msra.mxu0 %v192
  %252 = vmatpush.bf16.msra.mxu0 %v191
  %253 = vmatpush.bf16.msra.mxu0 %v190
  %254 = vmatpush.bf16.msra.mxu0 %v189
  %255 = vmatpush.bf16.msra.mxu0 %v188
  %256 = vmatmul.bf16.gmra.mxu0 %v232
  %v257 = vpop.f32.mrf.mxu0
  %v258 = vadd.f32 %v198, %v257
  %v259 = vpop.f32.mrf.mxu0
  %v260 = vadd.f32 %v198, %v259
  %261 = vmatmul.bf16.gmra.mxu0 %v233
  %v262 = vpop.f32.mrf.mxu0
  %v263 = vadd.f32 %v198, %v262
  %v264 = vpop.f32.mrf.mxu0
  %v265 = vadd.f32 %v198, %v264
  %266 = vmatmul.bf16.gmra.mxu0 %v234
  %v267 = vpop.f32.mrf.mxu0
  %v268 = vadd.f32 %v198, %v267
  %v269 = vpop.f32.mrf.mxu0
  %v270 = vadd.f32 %v198, %v269
  %271 = vmatmul.bf16.gmra.mxu0 %v235
  %v272 = vpop.f32.mrf.mxu0
  %v273 = vadd.f32 %v198, %v272
  %v274 = vpop.f32.mrf.mxu0
  %v275 = vadd.f32 %v198, %v274
  %276 = vmatmul.bf16.gmra.mxu0 %v236
  %v277 = vpop.f32.mrf.mxu0
  %v278 = vadd.f32 %v198, %v277
  %v279 = vpop.f32.mrf.mxu0
  %v280 = vadd.f32 %v198, %v279
  %281 = vmatmul.bf16.gmra.mxu0 %v237
  %v282 = vpop.f32.mrf.mxu0
  %v283 = vadd.f32 %v198, %v282
  %v284 = vpop.f32.mrf.mxu0
  %v285 = vadd.f32 %v198, %v284
  %286 = vmatmul.bf16.gmra.mxu0 %v238
  %v287 = vpop.f32.mrf.mxu0
  %v288 = vadd.f32 %v198, %v287
  %v289 = vpop.f32.mrf.mxu0
  %v290 = vadd.f32 %v198, %v289
  %291 = vmatmul.bf16.gmra.mxu0 %v239
  %v292 = vpop.f32.mrf.mxu0
  %v293 = vadd.f32 %v198, %v292
  %v294 = vpop.f32.mrf.mxu0
  %v295 = vadd.f32 %v198, %v294
  %296 = vdwg.mxu0
  %v297 = vmax.f32 %v258, 0.0
  %v298 = vmax.f32 %v260, 0.0
  %v299 = vmax.f32 %v263, 0.0
  %v300 = vmax.f32 %v265, 0.0
  %v301 = vmax.f32 %v268, 0.0
  %v302 = vmax.f32 %v270, 0.0
  %v303 = vmax.f32 %v273, 0.0
  %v304 = vmax.f32 %v275, 0.0
  %v305 = vmax.f32 %v278, 0.0
  %v306 = vmax.f32 %v280, 0.0
  %v307 = vmax.f32 %v283, 0.0
  %v308 = vmax.f32 %v285, 0.0
  %v309 = vmax.f32 %v288, 0.0
  %v310 = vmax.f32 %v290, 0.0
  %v311 = vmax.f32 %v293, 0.0
  %v312 = vmax.f32 %v295, 0.0
  %v313 = vld [vmem:[%s4] sm:$0xff]
  %v314 = vld [vmem:[%s4 + $0x8] sm:$0xff]
  %v315 = vld [vmem:[%s4 + $0x10] sm:$0xff]
  %v316 = vld [vmem:[%s4 + $0x18] sm:$0xff]
  %vm317 = vcmask 261120
  %v319 = vsel %vm317, %v297, 0
  %v322 = vsel %vm317, %v298, 0
  %v325 = vsel %vm317, %v299, 0
  %v328 = vsel %vm317, %v300, 0
  %v331 = vsel %vm317, %v301, 0
  %v334 = vsel %vm317, %v302, 0
  %v337 = vsel %vm317, %v303, 0
  %v340 = vsel %vm317, %v304, 0
  %v343 = vsel %vm317, %v305, 0
  %v346 = vsel %vm317, %v306, 0
  %v349 = vsel %vm317, %v307, 0
  %v352 = vsel %vm317, %v308, 0
  %v355 = vsel %vm317, %v309, 0
  %v358 = vsel %vm317, %v310, 0
  %v361 = vsel %vm317, %v311, 0
  %v364 = vsel %vm317, %v312, 0
  %366 = vmatpush.msra.mxu0 0.0
  %367 = vmatpush.msra.mxu0 0.0
  %368 = vmatpush.msra.mxu0 0.0
  %369 = vmatpush.msra.mxu0 0.0
  %370 = vmatpush.msra.mxu0 0.0
  %371 = vmatpush.msra.mxu0 0.0
  %372 = vmatpush.msra.mxu0 0.0
  %373 = vmatpush.msra.mxu0 0.0
  %374 = vmatpush.msra.mxu0 0.0
  %375 = vmatpush.msra.mxu0 0.0
  %376 = vmatpush.msra.mxu0 0.0
  %377 = vmatpush.msra.mxu0 0.0
  %378 = vmatpush.msra.mxu0 %v316
  %379 = vmatpush.msra.mxu0 %v315
  %380 = vmatpush.msra.mxu0 %v314
  %381 = vmatpush.msra.mxu0 %v313
  %382 = vmatmul.f32.gmra.mxu0 %v319
  %v383 = vpop.f32.mrf.mxu0
  %v384 = vadd.f32 0.0, %v383
  %385 = vmatmul.f32.gmra.mxu0 %v322
  %v386 = vpop.f32.mrf.mxu0
  %v387 = vadd.f32 0.0, %v386
  %388 = vmatmul.f32.gmra.mxu0 %v325
  %v389 = vpop.f32.mrf.mxu0
  %v390 = vadd.f32 0.0, %v389
  %391 = vmatmul.f32.gmra.mxu0 %v328
  %v392 = vpop.f32.mrf.mxu0
  %v393 = vadd.f32 0.0, %v392
  %394 = vmatmul.f32.gmra.mxu0 %v331
  %v395 = vpop.f32.mrf.mxu0
  %v396 = vadd.f32 0.0, %v395
  %397 = vmatmul.f32.gmra.mxu0 %v334
  %v398 = vpop.f32.mrf.mxu0
  %v399 = vadd.f32 0.0, %v398
  %400 = vmatmul.f32.gmra.mxu0 %v337
  %v401 = vpop.f32.mrf.mxu0
  %v402 = vadd.f32 0.0, %v401
  %403 = vmatmul.f32.gmra.mxu0 %v340
  %v404 = vpop.f32.mrf.mxu0
  %v405 = vadd.f32 0.0, %v404
  %406 = vmatmul.f32.gmra.mxu0 %v343
  %v407 = vpop.f32.mrf.mxu0
  %v408 = vadd.f32 0.0, %v407
  %409 = vmatmul.f32.gmra.mxu0 %v346
  %v410 = vpop.f32.mrf.mxu0
  %v411 = vadd.f32 0.0, %v410
  %412 = vmatmul.f32.gmra.mxu0 %v349
  %v413 = vpop.f32.mrf.mxu0
  %v414 = vadd.f32 0.0, %v413
  %415 = vmatmul.f32.gmra.mxu0 %v352
  %v416 = vpop.f32.mrf.mxu0
  %v417 = vadd.f32 0.0, %v416
  %418 = vmatmul.f32.gmra.mxu0 %v355
  %v419 = vpop.f32.mrf.mxu0
  %v420 = vadd.f32 0.0, %v419
  %421 = vmatmul.f32.gmra.mxu0 %v358
  %v422 = vpop.f32.mrf.mxu0
  %v423 = vadd.f32 0.0, %v422
  %424 = vmatmul.f32.gmra.mxu0 %v361
  %v425 = vpop.f32.mrf.mxu0
  %v426 = vadd.f32 0.0, %v425
  %427 = vmatmul.f32.gmra.mxu0 %v364
  %v428 = vpop.f32.mrf.mxu0
  %v429 = vadd.f32 0.0, %v428
  %430 = vdwg.mxu0
  %v431 = vpack.c.bf16 %v387, %v384
  %v432 = vpack.c.bf16 %v393, %v390
  %v433 = vpack.c.bf16 %v399, %v396
  %v434 = vpack.c.bf16 %v405, %v402
  %v435 = vpack.c.bf16 %v411, %v408
  %v436 = vpack.c.bf16 %v417, %v414
  %v437 = vpack.c.bf16 %v423, %v420
  %v438 = vpack.c.bf16 %v429, %v426
  %v439 = vld [vmem:[%s5] sm:$0x1]
  %v441 = vperm.slane %v439, 0
  %443 = vmatpush.bf16.msra.mxu0 %v438
  %444 = vmatpush.bf16.msra.mxu0 %v437
  %445 = vmatpush.bf16.msra.mxu0 %v436
  %446 = vmatpush.bf16.msra.mxu0 %v435
  %447 = vmatpush.bf16.msra.mxu0 %v434
  %448 = vmatpush.bf16.msra.mxu0 %v433
  %449 = vmatpush.bf16.msra.mxu0 %v432
  %450 = vmatpush.bf16.msra.mxu0 %v431
  %451 = vmatmul.bf16.gmra.mxu0 %v232
  %v452 = vpop.f32.mrf.mxu0
  %v453 = vadd.f32 %v441, %v452
  %v454 = vpop.f32.mrf.mxu0
  %v455 = vadd.f32 %v441, %v454
  %456 = vmatmul.bf16.gmra.mxu0 %v233
  %v457 = vpop.f32.mrf.mxu0
  %v458 = vadd.f32 %v441, %v457
  %v459 = vpop.f32.mrf.mxu0
  %v460 = vadd.f32 %v441, %v459
  %461 = vmatmul.bf16.gmra.mxu0 %v234
  %v462 = vpop.f32.mrf.mxu0
  %v463 = vadd.f32 %v441, %v462
  %v464 = vpop.f32.mrf.mxu0
  %v465 = vadd.f32 %v441, %v464
  %466 = vmatmul.bf16.gmra.mxu0 %v235
  %v467 = vpop.f32.mrf.mxu0
  %v468 = vadd.f32 %v441, %v467
  %v469 = vpop.f32.mrf.mxu0
  %v470 = vadd.f32 %v441, %v469
  %471 = vmatmul.bf16.gmra.mxu0 %v236
  %v472 = vpop.f32.mrf.mxu0
  %v473 = vadd.f32 %v441, %v472
  %v474 = vpop.f32.mrf.mxu0
  %v475 = vadd.f32 %v441, %v474
  %476 = vmatmul.bf16.gmra.mxu0 %v237
  %v477 = vpop.f32.mrf.mxu0
  %v478 = vadd.f32 %v441, %v477
  %v479 = vpop.f32.mrf.mxu0
  %v480 = vadd.f32 %v441, %v479
  %481 = vmatmul.bf16.gmra.mxu0 %v238
  %v482 = vpop.f32.mrf.mxu0
  %v483 = vadd.f32 %v441, %v482
  %v484 = vpop.f32.mrf.mxu0
  %v485 = vadd.f32 %v441, %v484
  %486 = vmatmul.bf16.gmra.mxu0 %v239
  %v487 = vpop.f32.mrf.mxu0
  %v488 = vadd.f32 %v441, %v487
  %v489 = vpop.f32.mrf.mxu0
  %v490 = vadd.f32 %v441, %v489
  %491 = vdwg.mxu0
  %v492 = vmax.f32 %v453, 0.0
  %v493 = vmax.f32 %v455, 0.0
  %v494 = vmax.f32 %v458, 0.0
  %v495 = vmax.f32 %v460, 0.0
  %v496 = vmax.f32 %v463, 0.0
  %v497 = vmax.f32 %v465, 0.0
  %v498 = vmax.f32 %v468, 0.0
  %v499 = vmax.f32 %v470, 0.0
  %v500 = vmax.f32 %v473, 0.0
  %v501 = vmax.f32 %v475, 0.0
  %v502 = vmax.f32 %v478, 0.0
  %v503 = vmax.f32 %v480, 0.0
  %v504 = vmax.f32 %v483, 0.0
  %v505 = vmax.f32 %v485, 0.0
  %v506 = vmax.f32 %v488, 0.0
  %v507 = vmax.f32 %v490, 0.0
  %v508 = vld [vmem:[%s6] sm:$0xff]
  %v509 = vld [vmem:[%s6 + $0x8] sm:$0xff]
  %v510 = vld [vmem:[%s6 + $0x10] sm:$0xff]
  %v511 = vld [vmem:[%s6 + $0x18] sm:$0xff]
  %v513 = vsel %vm317, %v492, 0
  %v516 = vsel %vm317, %v493, 0
  %v519 = vsel %vm317, %v494, 0
  %v522 = vsel %vm317, %v495, 0
  %v525 = vsel %vm317, %v496, 0
  %v528 = vsel %vm317, %v497, 0
  %v531 = vsel %vm317, %v498, 0
  %v534 = vsel %vm317, %v499, 0
  %v537 = vsel %vm317, %v500, 0
  %v540 = vsel %vm317, %v501, 0
  %v543 = vsel %vm317, %v502, 0
  %v546 = vsel %vm317, %v503, 0
  %v549 = vsel %vm317, %v504, 0
  %v552 = vsel %vm317, %v505, 0
  %v555 = vsel %vm317, %v506, 0
  %v558 = vsel %vm317, %v507, 0
  %560 = vmatpush.msra.mxu0 0.0
  %561 = vmatpush.msra.mxu0 0.0
  %562 = vmatpush.msra.mxu0 0.0
  %563 = vmatpush.msra.mxu0 0.0
  %564 = vmatpush.msra.mxu0 0.0
  %565 = vmatpush.msra.mxu0 0.0
  %566 = vmatpush.msra.mxu0 0.0
  %567 = vmatpush.msra.mxu0 0.0
  %568 = vmatpush.msra.mxu0 0.0
  %569 = vmatpush.msra.mxu0 0.0
  %570 = vmatpush.msra.mxu0 0.0
  %571 = vmatpush.msra.mxu0 0.0
  %572 = vmatpush.msra.mxu0 %v511
  %573 = vmatpush.msra.mxu0 %v510
  %574 = vmatpush.msra.mxu0 %v509
  %575 = vmatpush.msra.mxu0 %v508
  %576 = vmatmul.f32.gmra.mxu0 %v513
  %v577 = vpop.f32.mrf.mxu0
  %v578 = vadd.f32 0.0, %v577
  %579 = vmatmul.f32.gmra.mxu0 %v516
  %v580 = vpop.f32.mrf.mxu0
  %v581 = vadd.f32 0.0, %v580
  %582 = vmatmul.f32.gmra.mxu0 %v519
  %v583 = vpop.f32.mrf.mxu0
  %v584 = vadd.f32 0.0, %v583
  %585 = vmatmul.f32.gmra.mxu0 %v522
  %v586 = vpop.f32.mrf.mxu0
  %v587 = vadd.f32 0.0, %v586
  %588 = vmatmul.f32.gmra.mxu0 %v525
  %v589 = vpop.f32.mrf.mxu0
  %v590 = vadd.f32 0.0, %v589
  %591 = vmatmul.f32.gmra.mxu0 %v528
  %v592 = vpop.f32.mrf.mxu0
  %v593 = vadd.f32 0.0, %v592
  %594 = vmatmul.f32.gmra.mxu0 %v531
  %v595 = vpop.f32.mrf.mxu0
  %v596 = vadd.f32 0.0, %v595
  %597 = vmatmul.f32.gmra.mxu0 %v534
  %v598 = vpop.f32.mrf.mxu0
  %v599 = vadd.f32 0.0, %v598
  %600 = vmatmul.f32.gmra.mxu0 %v537
  %v601 = vpop.f32.mrf.mxu0
  %v602 = vadd.f32 0.0, %v601
  %603 = vmatmul.f32.gmra.mxu0 %v540
  %v604 = vpop.f32.mrf.mxu0
  %v605 = vadd.f32 0.0, %v604
  %606 = vmatmul.f32.gmra.mxu0 %v543
  %v607 = vpop.f32.mrf.mxu0
  %v608 = vadd.f32 0.0, %v607
  %609 = vmatmul.f32.gmra.mxu0 %v546
  %v610 = vpop.f32.mrf.mxu0
  %v611 = vadd.f32 0.0, %v610
  %612 = vmatmul.f32.gmra.mxu0 %v549
  %v613 = vpop.f32.mrf.mxu0
  %v614 = vadd.f32 0.0, %v613
  %615 = vmatmul.f32.gmra.mxu0 %v552
  %v616 = vpop.f32.mrf.mxu0
  %v617 = vadd.f32 0.0, %v616
  %618 = vmatmul.f32.gmra.mxu0 %v555
  %v619 = vpop.f32.mrf.mxu0
  %v620 = vadd.f32 0.0, %v619
  %621 = vmatmul.f32.gmra.mxu0 %v558
  %v622 = vpop.f32.mrf.mxu0
  %v623 = vadd.f32 0.0, %v622
  %624 = vdwg.mxu0
  %v625 = vpack.c.bf16 %v581, %v578
  %v626 = vpack.c.bf16 %v587, %v584
  %v627 = vpack.c.bf16 %v593, %v590
  %v628 = vpack.c.bf16 %v599, %v596
  %v629 = vpack.c.bf16 %v605, %v602
  %v630 = vpack.c.bf16 %v611, %v608
  %v631 = vpack.c.bf16 %v617, %v614
  %v632 = vpack.c.bf16 %v623, %v620
  %v633 = vld [vmem:[%s7] sm:$0x1]
  %v635 = vperm.slane %v633, 0
  %637 = vmatpush.bf16.msra.mxu0 %v632
  %638 = vmatpush.bf16.msra.mxu0 %v631
  %639 = vmatpush.bf16.msra.mxu0 %v630
  %640 = vmatpush.bf16.msra.mxu0 %v629
  %641 = vmatpush.bf16.msra.mxu0 %v628
  %642 = vmatpush.bf16.msra.mxu0 %v627
  %643 = vmatpush.bf16.msra.mxu0 %v626
  %644 = vmatpush.bf16.msra.mxu0 %v625
  %645 = vmatmul.bf16.gmra.mxu0 %v232
  %v646 = vpop.f32.mrf.mxu0
  %v647 = vadd.f32 %v635, %v646
  %v648 = vpop.f32.mrf.mxu0
  %v649 = vadd.f32 %v635, %v648
  %650 = vmatmul.bf16.gmra.mxu0 %v233
  %v651 = vpop.f32.mrf.mxu0
  %v652 = vadd.f32 %v635, %v651
  %v653 = vpop.f32.mrf.mxu0
  %v654 = vadd.f32 %v635, %v653
  %655 = vmatmul.bf16.gmra.mxu0 %v234
  %v656 = vpop.f32.mrf.mxu0
  %v657 = vadd.f32 %v635, %v656
  %v658 = vpop.f32.mrf.mxu0
  %v659 = vadd.f32 %v635, %v658
  %660 = vmatmul.bf16.gmra.mxu0 %v235
  %v661 = vpop.f32.mrf.mxu0
  %v662 = vadd.f32 %v635, %v661
  %v663 = vpop.f32.mrf.mxu0
  %v664 = vadd.f32 %v635, %v663
  %665 = vmatmul.bf16.gmra.mxu0 %v236
  %v666 = vpop.f32.mrf.mxu0
  %v667 = vadd.f32 %v635, %v666
  %v668 = vpop.f32.mrf.mxu0
  %v669 = vadd.f32 %v635, %v668
  %670 = vmatmul.bf16.gmra.mxu0 %v237
  %v671 = vpop.f32.mrf.mxu0
  %v672 = vadd.f32 %v635, %v671
  %v673 = vpop.f32.mrf.mxu0
  %v674 = vadd.f32 %v635, %v673
  %675 = vmatmul.bf16.gmra.mxu0 %v238
  %v676 = vpop.f32.mrf.mxu0
  %v677 = vadd.f32 %v635, %v676
  %v678 = vpop.f32.mrf.mxu0
  %v679 = vadd.f32 %v635, %v678
  %680 = vmatmul.bf16.gmra.mxu0 %v239
  %v681 = vpop.f32.mrf.mxu0
  %v682 = vadd.f32 %v635, %v681
  %v683 = vpop.f32.mrf.mxu0
  %v684 = vadd.f32 %v635, %v683
  %685 = vdwg.mxu0
  %v686 = vmax.f32 %v647, 0.0
  %v687 = vmax.f32 %v649, 0.0
  %v688 = vmax.f32 %v652, 0.0
  %v689 = vmax.f32 %v654, 0.0
  %v690 = vmax.f32 %v657, 0.0
  %v691 = vmax.f32 %v659, 0.0
  %v692 = vmax.f32 %v662, 0.0
  %v693 = vmax.f32 %v664, 0.0
  %v694 = vmax.f32 %v667, 0.0
  %v695 = vmax.f32 %v669, 0.0
  %v696 = vmax.f32 %v672, 0.0
  %v697 = vmax.f32 %v674, 0.0
  %v698 = vmax.f32 %v677, 0.0
  %v699 = vmax.f32 %v679, 0.0
  %v700 = vmax.f32 %v682, 0.0
  %v701 = vmax.f32 %v684, 0.0
  %702 = vrot.lane.b32.xlu0 %v492, 32
  %v703 = vpop.permute.xlu0 %702
  %704 = vrot.lane.b32.xlu0 %v493, 32
  %v705 = vpop.permute.xlu0 %704
  %706 = vrot.lane.b32.xlu0 %v494, 32
  %v707 = vpop.permute.xlu0 %706
  %708 = vrot.lane.b32.xlu0 %v495, 32
  %v709 = vpop.permute.xlu0 %708
  %710 = vrot.lane.b32.xlu0 %v496, 32
  %v711 = vpop.permute.xlu0 %710
  %712 = vrot.lane.b32.xlu0 %v497, 32
  %v713 = vpop.permute.xlu0 %712
  %714 = vrot.lane.b32.xlu0 %v498, 32
  %v715 = vpop.permute.xlu0 %714
  %716 = vrot.lane.b32.xlu0 %v499, 32
  %v717 = vpop.permute.xlu0 %716
  %718 = vrot.lane.b32.xlu0 %v500, 32
  %v719 = vpop.permute.xlu0 %718
  %720 = vrot.lane.b32.xlu0 %v501, 32
  %v721 = vpop.permute.xlu0 %720
  %722 = vrot.lane.b32.xlu0 %v502, 32
  %v723 = vpop.permute.xlu0 %722
  %724 = vrot.lane.b32.xlu0 %v503, 32
  %v725 = vpop.permute.xlu0 %724
  %726 = vrot.lane.b32.xlu0 %v504, 32
  %v727 = vpop.permute.xlu0 %726
  %728 = vrot.lane.b32.xlu0 %v505, 32
  %v729 = vpop.permute.xlu0 %728
  %730 = vrot.lane.b32.xlu0 %v506, 32
  %v731 = vpop.permute.xlu0 %730
  %732 = vrot.lane.b32.xlu0 %v507, 32
  %v733 = vpop.permute.xlu0 %732
  %766 = vrot.lane.b32.xlu0 %v686, 64
  %v767 = vpop.permute.xlu0 %766
  %768 = vrot.lane.b32.xlu0 %v687, 64
  %v769 = vpop.permute.xlu0 %768
  %770 = vrot.lane.b32.xlu0 %v688, 64
  %v771 = vpop.permute.xlu0 %770
  %772 = vrot.lane.b32.xlu0 %v689, 64
  %v773 = vpop.permute.xlu0 %772
  %774 = vrot.lane.b32.xlu0 %v690, 64
  %v775 = vpop.permute.xlu0 %774
  %776 = vrot.lane.b32.xlu0 %v691, 64
  %v777 = vpop.permute.xlu0 %776
  %778 = vrot.lane.b32.xlu0 %v692, 64
  %v779 = vpop.permute.xlu0 %778
  %780 = vrot.lane.b32.xlu0 %v693, 64
  %v781 = vpop.permute.xlu0 %780
  %782 = vrot.lane.b32.xlu0 %v694, 64
  %v783 = vpop.permute.xlu0 %782
  %784 = vrot.lane.b32.xlu0 %v695, 64
  %v785 = vpop.permute.xlu0 %784
  %786 = vrot.lane.b32.xlu0 %v696, 64
  %v787 = vpop.permute.xlu0 %786
  %788 = vrot.lane.b32.xlu0 %v697, 64
  %v789 = vpop.permute.xlu0 %788
  %790 = vrot.lane.b32.xlu0 %v698, 64
  %v791 = vpop.permute.xlu0 %790
  %792 = vrot.lane.b32.xlu0 %v699, 64
  %v793 = vpop.permute.xlu0 %792
  %794 = vrot.lane.b32.xlu0 %v700, 64
  %v795 = vpop.permute.xlu0 %794
  %796 = vrot.lane.b32.xlu0 %v701, 64
  %v797 = vpop.permute.xlu0 %796
  %v814 = vsel %vm317, %v297, %v703
  %v815 = vsel %vm317, %v298, %v705
  %v816 = vsel %vm317, %v299, %v707
  %v817 = vsel %vm317, %v300, %v709
  %v818 = vsel %vm317, %v301, %v711
  %v819 = vsel %vm317, %v302, %v713
  %v820 = vsel %vm317, %v303, %v715
  %v821 = vsel %vm317, %v304, %v717
  %v822 = vsel %vm317, %v305, %v719
  %v823 = vsel %vm317, %v306, %v721
  %v824 = vsel %vm317, %v307, %v723
  %v825 = vsel %vm317, %v308, %v725
  %v826 = vsel %vm317, %v309, %v727
  %v827 = vsel %vm317, %v310, %v729
  %v828 = vsel %vm317, %v311, %v731
  %v829 = vsel %vm317, %v312, %v733
  %vm830 = vcmask 523264
  %v831 = vsel %vm830, %v814, %v767
  %v832 = vsel %vm830, %v815, %v769
  %v833 = vsel %vm830, %v816, %v771
  %v834 = vsel %vm830, %v817, %v773
  %v835 = vsel %vm830, %v818, %v775
  %v836 = vsel %vm830, %v819, %v777
  %v837 = vsel %vm830, %v820, %v779
  %v838 = vsel %vm830, %v821, %v781
  %v839 = vsel %vm830, %v822, %v783
  %v840 = vsel %vm830, %v823, %v785
  %v841 = vsel %vm830, %v824, %v787
  %v842 = vsel %vm830, %v825, %v789
  %v843 = vsel %vm830, %v826, %v791
  %v844 = vsel %vm830, %v827, %v793
  %v845 = vsel %vm830, %v828, %v795
  %v846 = vsel %vm830, %v829, %v797
  %v847 = vld [vmem:[%s8] sm:$0xff]
  %v848 = vld [vmem:[%s8 + $0x8] sm:$0xff]
  %v849 = vld [vmem:[%s8 + $0x10] sm:$0xff]
  %v850 = vld [vmem:[%s8 + $0x18] sm:$0xff]
  %v851 = vld [vmem:[%s8 + $0x20] sm:$0xff]
  %v852 = vld [vmem:[%s8 + $0x28] sm:$0xff]
  %v853 = vld [vmem:[%s8 + $0x30] sm:$0xff]
  %v854 = vld [vmem:[%s8 + $0x38] sm:$0xff]
  %v855 = vld [vmem:[%s8 + $0x40] sm:$0xff]
  %v856 = vld [vmem:[%s8 + $0x48] sm:$0xff]
  %v857 = vld [vmem:[%s8 + $0x50] sm:$0xff]
  %v858 = vld [vmem:[%s8 + $0x58] sm:$0xff]
  %vm859 = vcmask 785408
  %v861 = vsel %vm859, %v831, 0
  %v864 = vsel %vm859, %v832, 0
  %v867 = vsel %vm859, %v833, 0
  %v870 = vsel %vm859, %v834, 0
  %v873 = vsel %vm859, %v835, 0
  %v876 = vsel %vm859, %v836, 0
  %v879 = vsel %vm859, %v837, 0
  %v882 = vsel %vm859, %v838, 0
  %v885 = vsel %vm859, %v839, 0
  %v888 = vsel %vm859, %v840, 0
  %v891 = vsel %vm859, %v841, 0
  %v894 = vsel %vm859, %v842, 0
  %v897 = vsel %vm859, %v843, 0
  %v900 = vsel %vm859, %v844, 0
  %v903 = vsel %vm859, %v845, 0
  %v906 = vsel %vm859, %v846, 0
  %908 = vmatpush.msra.mxu0 0.0
  %909 = vmatpush.msra.mxu0 0.0
  %910 = vmatpush.msra.mxu0 0.0
  %911 = vmatpush.msra.mxu0 0.0
  %912 = vmatpush.msra.mxu0 %v858
  %913 = vmatpush.msra.mxu0 %v857
  %914 = vmatpush.msra.mxu0 %v856
  %915 = vmatpush.msra.mxu0 %v855
  %916 = vmatpush.msra.mxu0 %v854
  %917 = vmatpush.msra.mxu0 %v853
  %918 = vmatpush.msra.mxu0 %v852
  %919 = vmatpush.msra.mxu0 %v851
  %920 = vmatpush.msra.mxu0 %v850
  %921 = vmatpush.msra.mxu0 %v849
  %922 = vmatpush.msra.mxu0 %v848
  %923 = vmatpush.msra.mxu0 %v847
  %924 = vmatmul.f32.gmra.mxu0 %v861
  %v925 = vpop.f32.mrf.mxu0
  %v926 = vadd.f32 0.0, %v925
  %927 = vmatmul.f32.gmra.mxu0 %v864
  %v928 = vpop.f32.mrf.mxu0
  %v929 = vadd.f32 0.0, %v928
  %930 = vmatmul.f32.gmra.mxu0 %v867
  %v931 = vpop.f32.mrf.mxu0
  %v932 = vadd.f32 0.0, %v931
  %933 = vmatmul.f32.gmra.mxu0 %v870
  %v934 = vpop.f32.mrf.mxu0
  %v935 = vadd.f32 0.0, %v934
  %936 = vmatmul.f32.gmra.mxu0 %v873
  %v937 = vpop.f32.mrf.mxu0
  %v938 = vadd.f32 0.0, %v937
  %939 = vmatmul.f32.gmra.mxu0 %v876
  %v940 = vpop.f32.mrf.mxu0
  %v941 = vadd.f32 0.0, %v940
  %942 = vmatmul.f32.gmra.mxu0 %v879
  %v943 = vpop.f32.mrf.mxu0
  %v944 = vadd.f32 0.0, %v943
  %945 = vmatmul.f32.gmra.mxu0 %v882
  %v946 = vpop.f32.mrf.mxu0
  %v947 = vadd.f32 0.0, %v946
  %948 = vmatmul.f32.gmra.mxu0 %v885
  %v949 = vpop.f32.mrf.mxu0
  %v950 = vadd.f32 0.0, %v949
  %951 = vmatmul.f32.gmra.mxu0 %v888
  %v952 = vpop.f32.mrf.mxu0
  %v953 = vadd.f32 0.0, %v952
  %954 = vmatmul.f32.gmra.mxu0 %v891
  %v955 = vpop.f32.mrf.mxu0
  %v956 = vadd.f32 0.0, %v955
  %957 = vmatmul.f32.gmra.mxu0 %v894
  %v958 = vpop.f32.mrf.mxu0
  %v959 = vadd.f32 0.0, %v958
  %960 = vmatmul.f32.gmra.mxu0 %v897
  %v961 = vpop.f32.mrf.mxu0
  %v962 = vadd.f32 0.0, %v961
  %963 = vmatmul.f32.gmra.mxu0 %v900
  %v964 = vpop.f32.mrf.mxu0
  %v965 = vadd.f32 0.0, %v964
  %966 = vmatmul.f32.gmra.mxu0 %v903
  %v967 = vpop.f32.mrf.mxu0
  %v968 = vadd.f32 0.0, %v967
  %969 = vmatmul.f32.gmra.mxu0 %v906
  %v970 = vpop.f32.mrf.mxu0
  %v971 = vadd.f32 0.0, %v970
  %972 = vdwg.mxu0
  %v973 = vpack.c.bf16 %v929, %v926
  %v974 = vpack.c.bf16 %v935, %v932
  %v975 = vpack.c.bf16 %v941, %v938
  %v976 = vpack.c.bf16 %v947, %v944
  %v977 = vpack.c.bf16 %v953, %v950
  %v978 = vpack.c.bf16 %v959, %v956
  %v979 = vpack.c.bf16 %v965, %v962
  %v980 = vpack.c.bf16 %v971, %v968
  %v981 = vld [vmem:[%s9] sm:$0x1]
  %v983 = vperm.slane %v981, 0
  %985 = vmatpush.bf16.msra.mxu0 %v980
  %986 = vmatpush.bf16.msra.mxu0 %v979
  %987 = vmatpush.bf16.msra.mxu0 %v978
  %988 = vmatpush.bf16.msra.mxu0 %v977
  %989 = vmatpush.bf16.msra.mxu0 %v976
  %990 = vmatpush.bf16.msra.mxu0 %v975
  %991 = vmatpush.bf16.msra.mxu0 %v974
  %992 = vmatpush.bf16.msra.mxu0 %v973
  %993 = vmatmul.bf16.gmra.mxu0 %v232
  %v994 = vpop.f32.mrf.mxu0
  %v995 = vadd.f32 %v983, %v994
  %v996 = vpop.f32.mrf.mxu0
  %v997 = vadd.f32 %v983, %v996
  %998 = vmatmul.bf16.gmra.mxu0 %v233
  %v999 = vpop.f32.mrf.mxu0
  %v1000 = vadd.f32 %v983, %v999
  %v1001 = vpop.f32.mrf.mxu0
  %v1002 = vadd.f32 %v983, %v1001
  %1003 = vmatmul.bf16.gmra.mxu0 %v234
  %v1004 = vpop.f32.mrf.mxu0
  %v1005 = vadd.f32 %v983, %v1004
  %v1006 = vpop.f32.mrf.mxu0
  %v1007 = vadd.f32 %v983, %v1006
  %1008 = vmatmul.bf16.gmra.mxu0 %v235
  %v1009 = vpop.f32.mrf.mxu0
  %v1010 = vadd.f32 %v983, %v1009
  %v1011 = vpop.f32.mrf.mxu0
  %v1012 = vadd.f32 %v983, %v1011
  %1013 = vmatmul.bf16.gmra.mxu0 %v236
  %v1014 = vpop.f32.mrf.mxu0
  %v1015 = vadd.f32 %v983, %v1014
  %v1016 = vpop.f32.mrf.mxu0
  %v1017 = vadd.f32 %v983, %v1016
  %1018 = vmatmul.bf16.gmra.mxu0 %v237
  %v1019 = vpop.f32.mrf.mxu0
  %v1020 = vadd.f32 %v983, %v1019
  %v1021 = vpop.f32.mrf.mxu0
  %v1022 = vadd.f32 %v983, %v1021
  %1023 = vmatmul.bf16.gmra.mxu0 %v238
  %v1024 = vpop.f32.mrf.mxu0
  %v1025 = vadd.f32 %v983, %v1024
  %v1026 = vpop.f32.mrf.mxu0
  %v1027 = vadd.f32 %v983, %v1026
  %1028 = vmatmul.bf16.gmra.mxu0 %v239
  %v1029 = vpop.f32.mrf.mxu0
  %v1030 = vadd.f32 %v983, %v1029
  %v1031 = vpop.f32.mrf.mxu0
  %v1032 = vadd.f32 %v983, %v1031
  %1033 = vdwg.mxu0
  %1034 = vst [vmem:[%s10] sm:$0xff] %v995
  %1035 = vst [vmem:[%s10 + $0x8] sm:$0xff] %v997
  %1036 = vst [vmem:[%s10 + $0x10] sm:$0xff] %v1000
  %1037 = vst [vmem:[%s10 + $0x18] sm:$0xff] %v1002
  %1038 = vst [vmem:[%s10 + $0x20] sm:$0xff] %v1005
  %1039 = vst [vmem:[%s10 + $0x28] sm:$0xff] %v1007
  %1040 = vst [vmem:[%s10 + $0x30] sm:$0xff] %v1010
  %1041 = vst [vmem:[%s10 + $0x38] sm:$0xff] %v1012
  %1042 = vst [vmem:[%s10 + $0x40] sm:$0xff] %v1015
  %1043 = vst [vmem:[%s10 + $0x48] sm:$0xff] %v1017
  %1044 = vst [vmem:[%s10 + $0x50] sm:$0xff] %v1020
  %1045 = vst [vmem:[%s10 + $0x58] sm:$0xff] %v1022
  %1046 = vst [vmem:[%s10 + $0x60] sm:$0xff] %v1025
  %1047 = vst [vmem:[%s10 + $0x68] sm:$0xff] %v1027
  %1048 = vst [vmem:[%s10 + $0x70] sm:$0xff] %v1030
  %1049 = vst [vmem:[%s10 + $0x78] sm:$0xff] %v1032
  %v1050 = vtanh.pop %v995
  %v1051 = vtanh.pop %v997
  %v1052 = vtanh.pop %v1000
  %v1053 = vtanh.pop %v1002
  %v1054 = vtanh.pop %v1005
  %v1055 = vtanh.pop %v1007
  %v1056 = vtanh.pop %v1010
  %v1057 = vtanh.pop %v1012
  %v1058 = vtanh.pop %v1015
  %v1059 = vtanh.pop %v1017
  %v1060 = vtanh.pop %v1020
  %v1061 = vtanh.pop %v1022
  %v1062 = vtanh.pop %v1025
  %v1063 = vtanh.pop %v1027
  %v1064 = vtanh.pop %v1030
  %v1065 = vtanh.pop %v1032
  %1067 = vset.pattern.permute.xlu0 0
  %1068 = vperm.xlu0 %1067, %v1050
  %v1069 = vpop.permute.xlu0 %1068
  %1072 = vset.pattern.permute.xlu0 0
  %1073 = vperm.xlu0 %1072, %v1051
  %v1074 = vpop.permute.xlu0 %1073
  %1077 = vset.pattern.permute.xlu0 0
  %1078 = vperm.xlu0 %1077, %v1052
  %v1079 = vpop.permute.xlu0 %1078
  %1082 = vset.pattern.permute.xlu0 0
  %1083 = vperm.xlu0 %1082, %v1053
  %v1084 = vpop.permute.xlu0 %1083
  %1087 = vset.pattern.permute.xlu0 0
  %1088 = vperm.xlu0 %1087, %v1054
  %v1089 = vpop.permute.xlu0 %1088
  %1092 = vset.pattern.permute.xlu0 0
  %1093 = vperm.xlu0 %1092, %v1055
  %v1094 = vpop.permute.xlu0 %1093
  %1097 = vset.pattern.permute.xlu0 0
  %1098 = vperm.xlu0 %1097, %v1056
  %v1099 = vpop.permute.xlu0 %1098
  %1102 = vset.pattern.permute.xlu0 0
  %1103 = vperm.xlu0 %1102, %v1057
  %v1104 = vpop.permute.xlu0 %1103
  %1107 = vset.pattern.permute.xlu0 0
  %1108 = vperm.xlu0 %1107, %v1058
  %v1109 = vpop.permute.xlu0 %1108
  %1112 = vset.pattern.permute.xlu0 0
  %1113 = vperm.xlu0 %1112, %v1059
  %v1114 = vpop.permute.xlu0 %1113
  %1117 = vset.pattern.permute.xlu0 0
  %1118 = vperm.xlu0 %1117, %v1060
  %v1119 = vpop.permute.xlu0 %1118
  %1122 = vset.pattern.permute.xlu0 0
  %1123 = vperm.xlu0 %1122, %v1061
  %v1124 = vpop.permute.xlu0 %1123
  %1127 = vset.pattern.permute.xlu0 0
  %1128 = vperm.xlu0 %1127, %v1062
  %v1129 = vpop.permute.xlu0 %1128
  %1132 = vset.pattern.permute.xlu0 0
  %1133 = vperm.xlu0 %1132, %v1063
  %v1134 = vpop.permute.xlu0 %1133
  %1137 = vset.pattern.permute.xlu0 0
  %1138 = vperm.xlu0 %1137, %v1064
  %v1139 = vpop.permute.xlu0 %1138
  %1142 = vset.pattern.permute.xlu0 0
  %1143 = vperm.xlu0 %1142, %v1065
  %v1144 = vpop.permute.xlu0 %1143
  %v1146 = vmul.f32 %v831, %v1069
  %v1147 = vmul.f32 %v832, %v1074
  %v1148 = vmul.f32 %v833, %v1079
  %v1149 = vmul.f32 %v834, %v1084
  %v1150 = vmul.f32 %v835, %v1089
  %v1151 = vmul.f32 %v836, %v1094
  %v1152 = vmul.f32 %v837, %v1099
  %v1153 = vmul.f32 %v838, %v1104
  %v1154 = vmul.f32 %v839, %v1109
  %v1155 = vmul.f32 %v840, %v1114
  %v1156 = vmul.f32 %v841, %v1119
  %v1157 = vmul.f32 %v842, %v1124
  %v1158 = vmul.f32 %v843, %v1129
  %v1159 = vmul.f32 %v844, %v1134
  %v1160 = vmul.f32 %v845, %v1139
  %v1161 = vmul.f32 %v846, %v1144
  %1162 = vst.msk [vmem:[%s11] sm:$0xff] %vm859, %v1146
  %1163 = vst.msk [vmem:[%s11 + $0x8] sm:$0xff] %vm859, %v1147
  %1164 = vst.msk [vmem:[%s11 + $0x10] sm:$0xff] %vm859, %v1148
  %1165 = vst.msk [vmem:[%s11 + $0x18] sm:$0xff] %vm859, %v1149
  %1166 = vst.msk [vmem:[%s11 + $0x20] sm:$0xff] %vm859, %v1150
  %1167 = vst.msk [vmem:[%s11 + $0x28] sm:$0xff] %vm859, %v1151
  %1168 = vst.msk [vmem:[%s11 + $0x30] sm:$0xff] %vm859, %v1152
  %1169 = vst.msk [vmem:[%s11 + $0x38] sm:$0xff] %vm859, %v1153
  %1170 = vst.msk [vmem:[%s11 + $0x40] sm:$0xff] %vm859, %v1154
  %1171 = vst.msk [vmem:[%s11 + $0x48] sm:$0xff] %vm859, %v1155
  %1172 = vst.msk [vmem:[%s11 + $0x50] sm:$0xff] %vm859, %v1156
  %1173 = vst.msk [vmem:[%s11 + $0x58] sm:$0xff] %vm859, %v1157
  %1174 = vst.msk [vmem:[%s11 + $0x60] sm:$0xff] %vm859, %v1158
  %1175 = vst.msk [vmem:[%s11 + $0x68] sm:$0xff] %vm859, %v1159
  %1176 = vst.msk [vmem:[%s11 + $0x70] sm:$0xff] %vm859, %v1160
  %1177 = vst.msk [vmem:[%s11 + $0x78] sm:$0xff] %vm859, %v1161
  // Predicated region
  $region42: #{sagpool_net_forward.2} parent=0 // pred_check
    _
  $region43: #{sagpool_net_forward.2} parent=0 // pred_check_branch
    %1179 = sbr.rel (0) target = $region45
  $region44: #{sagpool_net_forward.2} parent=0 // pred_region
    _
  $region45: #{sagpool_net_forward.2} parent=0 // pred_fallthru
    _
  // Predicated region
  $region46: #{sagpool_net_forward.2} parent=0 // pred_check
    _
  $region47: #{sagpool_net_forward.2} parent=0 // pred_check_branch
    %1181 = sbr.rel (0) target = $region49
  $region48: #{sagpool_net_forward.2} parent=0 // pred_region
    _
  $region49: #{sagpool_net_forward.2} parent=0 // pred_fallthru
    _
  // Predicated region
  $region50: #{sagpool_net_forward.2} parent=0 // pred_check
    _
  $region51: #{sagpool_net_forward.2} parent=0 // pred_check_branch
    %1183 = sbr.rel (0) target = $region53
  $region52: #{sagpool_net_forward.2} parent=0 // pred_region
    _
  $region53: #{sagpool_net_forward.2} parent=0 // pred_fallthru
    _
  // Predicated region
  $region54: #{sagpool_net_forward.2} parent=0 // pred_check
    _
  $region55: #{sagpool_net_forward.2} parent=0 // pred_check_branch
    %1185 = sbr.rel (0) target = $region57
  $region56: #{sagpool_net_forward.2} parent=0 // pred_region
    _
  $region57: #{sagpool_net_forward.2} parent=0 // pred_fallthru
    _

// kernel: sagpool_net_forward.3
$region0: #{sagpool_net_forward.3}
  #allocation0 [shape = 'u32[]', space=smem, size = 0x4, offset = 0x4, fixed_abs, tag = 'smem constant byte address 0x4 - core index']
  #allocation1 [shape = 'u32[72,128]{1,0:T(1,128)}', space=vmem, size = 0x9000, scoped, tag = 'internal scratch']
  #allocation2 [shape = 'f32[8,96]{1,0:T(8,128)}', space=vmem, size = 0x1000, scoped, tag = 'scratch operand']
  #allocation3 [shape = 'f32[8,96]{1,0:T(8,128)}', space=vmem, size = 0x1000, scoped, tag = 'scratch operand']
  #allocation4 [shape = 'f32[8,1]{1,0:T(8,128)}', space=vmem, size = 0x1000, scoped, tag = 'scratch operand']
  %s0 = inlined_call_operand.vmem [shape: f32[128,96], index: 0, kind: input, shape index: {}]
  %s1 = inlined_call_operand.vmem [shape: f32[8,128], index: 1, kind: input, shape index: {}]
  %s2 = inlined_call_operand.vmem [shape: f32[96,32], index: 2, kind: input, shape index: {}]
  %s3 = inlined_call_operand.vmem [shape: f32[96,32], index: 3, kind: input, shape index: {}]
  %s4 = inlined_call_operand.vmem [shape: f32[1,32], index: 4, kind: input, shape index: {}]
  %s5 = inlined_call_operand.vmem [shape: f32[32,16], index: 5, kind: input, shape index: {}]
  %s6 = inlined_call_operand.vmem [shape: f32[1,16], index: 6, kind: input, shape index: {}]
  %s7 = inlined_call_operand.vmem [shape: f32[16,128], index: 7, kind: input, shape index: {}]
  %s8 = inlined_call_operand.vmem [shape: f32[1,128], index: 8, kind: input, shape index: {}]
  %s9 = inlined_call_operand.vmem [shape: f32[8,128], index: 9, kind: output, shape index: {}]
  %s10 = sld [smem:[#allocation0]]
  $region54: #{sagpool_net_forward.3} parent=0
    _
  %s12 = ssub.s32 1, %s10
  %s13 = scalar_select 0, %s12, %s10
  // Predicated region
  $region2: #{sagpool_net_forward.3} parent=0 // pred_check
    _
  $region3: #{sagpool_net_forward.3} parent=0 // pred_check_branch
    %15 = sbr.rel (0) target = $region5
  $region4: #{sagpool_net_forward.3} parent=0 // pred_region
    _
  $region5: #{sagpool_net_forward.3} parent=0 // pred_fallthru
    _
  // Predicated region
  $region6: #{sagpool_net_forward.3} parent=0 // pred_check
    _
  $region7: #{sagpool_net_forward.3} parent=0 // pred_check_branch
    %17 = sbr.rel (0) target = $region9
  $region8: #{sagpool_net_forward.3} parent=0 // pred_region
    _
  $region9: #{sagpool_net_forward.3} parent=0 // pred_fallthru
    _
  // Predicated region
  $region10: #{sagpool_net_forward.3} parent=0 // pred_check
    _
  $region11: #{sagpool_net_forward.3} parent=0 // pred_check_branch
    %19 = sbr.rel (0) target = $region13
  $region12: #{sagpool_net_forward.3} parent=0 // pred_region
    _
  $region13: #{sagpool_net_forward.3} parent=0 // pred_fallthru
    _
  // Predicated region
  $region14: #{sagpool_net_forward.3} parent=0 // pred_check
    _
  $region15: #{sagpool_net_forward.3} parent=0 // pred_check_branch
    %21 = sbr.rel (0) target = $region17
  $region16: #{sagpool_net_forward.3} parent=0 // pred_region
    _
  $region17: #{sagpool_net_forward.3} parent=0 // pred_fallthru
    _
  // Predicated region
  $region18: #{sagpool_net_forward.3} parent=0 // pred_check
    _
  $region19: #{sagpool_net_forward.3} parent=0 // pred_check_branch
    %23 = sbr.rel (0) target = $region21
  $region20: #{sagpool_net_forward.3} parent=0 // pred_region
    _
  $region21: #{sagpool_net_forward.3} parent=0 // pred_fallthru
    _
  // Predicated region
  $region22: #{sagpool_net_forward.3} parent=0 // pred_check
    _
  $region23: #{sagpool_net_forward.3} parent=0 // pred_check_branch
    %25 = sbr.rel (0) target = $region25
  $region24: #{sagpool_net_forward.3} parent=0 // pred_region
    _
  $region25: #{sagpool_net_forward.3} parent=0 // pred_fallthru
    _
  // Predicated region
  $region26: #{sagpool_net_forward.3} parent=0 // pred_check
    _
  $region27: #{sagpool_net_forward.3} parent=0 // pred_check_branch
    %27 = sbr.rel (0) target = $region29
  $region28: #{sagpool_net_forward.3} parent=0 // pred_region
    _
  $region29: #{sagpool_net_forward.3} parent=0 // pred_fallthru
    _
  // Predicated region
  $region30: #{sagpool_net_forward.3} parent=0 // pred_check
    _
  $region31: #{sagpool_net_forward.3} parent=0 // pred_check_branch
    %29 = sbr.rel (0) target = $region33
  $region32: #{sagpool_net_forward.3} parent=0 // pred_region
    _
  $region33: #{sagpool_net_forward.3} parent=0 // pred_fallthru
    _
  // Predicated region
  $region34: #{sagpool_net_forward.3} parent=0 // pred_check
    _
  $region35: #{sagpool_net_forward.3} parent=0 // pred_check_branch
    %31 = sbr.rel (0) target = $region37
  $region36: #{sagpool_net_forward.3} parent=0 // pred_region
    _
  $region37: #{sagpool_net_forward.3} parent=0 // pred_fallthru
    _
  %p32 = scmp.eq.s32.totalorder 0, 0
  // Predicated region
  $region38: #{sagpool_net_forward.3} parent=0 // pred_check
    %p33 = pneg %p32
  $region39: #{sagpool_net_forward.3} parent=0 // pred_check_branch
    %35 = sbr.rel (%p33) target = $region41
  $region40: #{sagpool_net_forward.3} parent=0 // pred_region
    %vm36 = vcmask 785408
    %37 = vst.msk [vmem:[#allocation2] sm:$0xff] %vm36, -3e+38
    %38 = vst.msk [vmem:[#allocation3] sm:$0xff] %vm36, 0.0
    %vm39 = vcmask 7168
    %40 = vst.msk [vmem:[#allocation4] sm:$0xff] %vm39, 0.0
  $region41: #{sagpool_net_forward.3} parent=0 // pred_fallthru
    _
  %v41 = vld [vmem:[%s0] sm:$0xff]
  %v42 = vld [vmem:[%s0 + $0x8] sm:$0xff]
  %v43 = vld [vmem:[%s0 + $0x10] sm:$0xff]
  %v44 = vld [vmem:[%s0 + $0x18] sm:$0xff]
  %v45 = vld [vmem:[%s0 + $0x20] sm:$0xff]
  %v46 = vld [vmem:[%s0 + $0x28] sm:$0xff]
  %v47 = vld [vmem:[%s0 + $0x30] sm:$0xff]
  %v48 = vld [vmem:[%s0 + $0x38] sm:$0xff]
  %v49 = vld [vmem:[%s0 + $0x40] sm:$0xff]
  %v50 = vld [vmem:[%s0 + $0x48] sm:$0xff]
  %v51 = vld [vmem:[%s0 + $0x50] sm:$0xff]
  %v52 = vld [vmem:[%s0 + $0x58] sm:$0xff]
  %v53 = vld [vmem:[%s0 + $0x60] sm:$0xff]
  %v54 = vld [vmem:[%s0 + $0x68] sm:$0xff]
  %v55 = vld [vmem:[%s0 + $0x70] sm:$0xff]
  %v56 = vld [vmem:[%s0 + $0x78] sm:$0xff]
  %v57 = vld [vmem:[%s1] sm:$0xff]
  %v58 = vld [vmem:[#allocation3] sm:$0xff]
  %59 = vmatpush.msra.mxu0 %v56
  %60 = vmatpush.msra.mxu0 %v55
  %61 = vmatpush.msra.mxu0 %v54
  %62 = vmatpush.msra.mxu0 %v53
  %63 = vmatpush.msra.mxu0 %v52
  %64 = vmatpush.msra.mxu0 %v51
  %65 = vmatpush.msra.mxu0 %v50
  %66 = vmatpush.msra.mxu0 %v49
  %67 = vmatpush.msra.mxu0 %v48
  %68 = vmatpush.msra.mxu0 %v47
  %69 = vmatpush.msra.mxu0 %v46
  %70 = vmatpush.msra.mxu0 %v45
  %71 = vmatpush.msra.mxu0 %v44
  %72 = vmatpush.msra.mxu0 %v43
  %73 = vmatpush.msra.mxu0 %v42
  %74 = vmatpush.msra.mxu0 %v41
  %75 = vmatmul.f32.gmra.mxu0 %v57
  %v76 = vpop.f32.mrf.mxu0
  %v77 = vadd.f32 0.0, %v76
  %78 = vdwg.mxu0
  %v79 = vadd.f32 %v58, %v77
  %vm80 = vcmask 785408
  %81 = vst.msk [vmem:[#allocation3] sm:$0xff] %vm80, %v79
  %v82 = vld [vmem:[#allocation4] sm:$0xff]
  %83 = vadd.xlane.f32.xlu0 %v57
  %v84 = vpop.xlane.xlu0 %83
  %v85 = vadd.f32 %v82, %v84
  %vm86 = vcmask 7168
  %87 = vst.msk [vmem:[#allocation4] sm:$0xff] %vm86, %v85
  %v88 = vperm.slane %v57, 0
  %v89 = vlaneseq
  %v90 = vshrl.u32 %v89, 7
  %92 = vset.pattern.permute.xlu0 %v90
  %93 = vperm.xlu0 %92, %v88
  %v94 = vpop.permute.xlu0 %93
  %v95 = vlaneseq
  %v96 = vshrl.u32 %v95, 7
  %v97 = vadd.s32 %v96, 8
  %98 = vset.pattern.permute.xlu0 %v97
  %99 = vperm.xlu0 %98, %v88
  %v100 = vpop.permute.xlu0 %99
  %v101 = vlaneseq
  %v102 = vshrl.u32 %v101, 7
  %v103 = vadd.s32 %v102, 16
  %104 = vset.pattern.permute.xlu0 %v103
  %105 = vperm.xlu0 %104, %v88
  %v106 = vpop.permute.xlu0 %105
  %v107 = vlaneseq
  %v108 = vshrl.u32 %v107, 7
  %v109 = vadd.s32 %v108, 24
  %110 = vset.pattern.permute.xlu0 %v109
  %111 = vperm.xlu0 %110, %v88
  %v112 = vpop.permute.xlu0 %111
  %v113 = vlaneseq
  %v114 = vshrl.u32 %v113, 7
  %v115 = vadd.s32 %v114, 32
  %116 = vset.pattern.permute.xlu0 %v115
  %117 = vperm.xlu0 %116, %v88
  %v118 = vpop.permute.xlu0 %117
  %v119 = vlaneseq
  %v120 = vshrl.u32 %v119, 7
  %v121 = vadd.s32 %v120, 40
  %122 = vset.pattern.permute.xlu0 %v121
  %123 = vperm.xlu0 %122, %v88
  %v124 = vpop.permute.xlu0 %123
  %v125 = vlaneseq
  %v126 = vshrl.u32 %v125, 7
  %v127 = vadd.s32 %v126, 48
  %128 = vset.pattern.permute.xlu0 %v127
  %129 = vperm.xlu0 %128, %v88
  %v130 = vpop.permute.xlu0 %129
  %v131 = vlaneseq
  %v132 = vshrl.u32 %v131, 7
  %v133 = vadd.s32 %v132, 56
  %134 = vset.pattern.permute.xlu0 %v133
  %135 = vperm.xlu0 %134, %v88
  %v136 = vpop.permute.xlu0 %135
  %v137 = vperm.slane %v57, 1
  %v138 = vlaneseq
  %v139 = vshrl.u32 %v138, 7
  %141 = vset.pattern.permute.xlu0 %v139
  %142 = vperm.xlu0 %141, %v137
  %v143 = vpop.permute.xlu0 %142
  %v144 = vlaneseq
  %v145 = vshrl.u32 %v144, 7
  %v146 = vadd.s32 %v145, 8
  %147 = vset.pattern.permute.xlu0 %v146
  %148 = vperm.xlu0 %147, %v137
  %v149 = vpop.permute.xlu0 %148
  %v150 = vlaneseq
  %v151 = vshrl.u32 %v150, 7
  %v152 = vadd.s32 %v151, 16
  %153 = vset.pattern.permute.xlu0 %v152
  %154 = vperm.xlu0 %153, %v137
  %v155 = vpop.permute.xlu0 %154
  %v156 = vlaneseq
  %v157 = vshrl.u32 %v156, 7
  %v158 = vadd.s32 %v157, 24
  %159 = vset.pattern.permute.xlu0 %v158
  %160 = vperm.xlu0 %159, %v137
  %v161 = vpop.permute.xlu0 %160
  %v162 = vlaneseq
  %v163 = vshrl.u32 %v162, 7
  %v164 = vadd.s32 %v163, 32
  %165 = vset.pattern.permute.xlu0 %v164
  %166 = vperm.xlu0 %165, %v137
  %v167 = vpop.permute.xlu0 %166
  %v168 = vlaneseq
  %v169 = vshrl.u32 %v168, 7
  %v170 = vadd.s32 %v169, 40
  %171 = vset.pattern.permute.xlu0 %v170
  %172 = vperm.xlu0 %171, %v137
  %v173 = vpop.permute.xlu0 %172
  %v174 = vlaneseq
  %v175 = vshrl.u32 %v174, 7
  %v176 = vadd.s32 %v175, 48
  %177 = vset.pattern.permute.xlu0 %v176
  %178 = vperm.xlu0 %177, %v137
  %v179 = vpop.permute.xlu0 %178
  %v180 = vlaneseq
  %v181 = vshrl.u32 %v180, 7
  %v182 = vadd.s32 %v181, 56
  %183 = vset.pattern.permute.xlu0 %v182
  %184 = vperm.xlu0 %183, %v137
  %v185 = vpop.permute.xlu0 %184
  %v186 = vperm.slane %v57, 2
  %v187 = vlaneseq
  %v188 = vshrl.u32 %v187, 7
  %190 = vset.pattern.permute.xlu0 %v188
  %191 = vperm.xlu0 %190, %v186
  %v192 = vpop.permute.xlu0 %191
  %v193 = vlaneseq
  %v194 = vshrl.u32 %v193, 7
  %v195 = vadd.s32 %v194, 8
  %196 = vset.pattern.permute.xlu0 %v195
  %197 = vperm.xlu0 %196, %v186
  %v198 = vpop.permute.xlu0 %197
  %v199 = vlaneseq
  %v200 = vshrl.u32 %v199, 7
  %v201 = vadd.s32 %v200, 16
  %202 = vset.pattern.permute.xlu0 %v201
  %203 = vperm.xlu0 %202, %v186
  %v204 = vpop.permute.xlu0 %203
  %v205 = vlaneseq
  %v206 = vshrl.u32 %v205, 7
  %v207 = vadd.s32 %v206, 24
  %208 = vset.pattern.permute.xlu0 %v207
  %209 = vperm.xlu0 %208, %v186
  %v210 = vpop.permute.xlu0 %209
  %v211 = vlaneseq
  %v212 = vshrl.u32 %v211, 7
  %v213 = vadd.s32 %v212, 32
  %214 = vset.pattern.permute.xlu0 %v213
  %215 = vperm.xlu0 %214, %v186
  %v216 = vpop.permute.xlu0 %215
  %v217 = vlaneseq
  %v218 = vshrl.u32 %v217, 7
  %v219 = vadd.s32 %v218, 40
  %220 = vset.pattern.permute.xlu0 %v219
  %221 = vperm.xlu0 %220, %v186
  %v222 = vpop.permute.xlu0 %221
  %v223 = vlaneseq
  %v224 = vshrl.u32 %v223, 7
  %v225 = vadd.s32 %v224, 48
  %226 = vset.pattern.permute.xlu0 %v225
  %227 = vperm.xlu0 %226, %v186
  %v228 = vpop.permute.xlu0 %227
  %v229 = vlaneseq
  %v230 = vshrl.u32 %v229, 7
  %v231 = vadd.s32 %v230, 56
  %232 = vset.pattern.permute.xlu0 %v231
  %233 = vperm.xlu0 %232, %v186
  %v234 = vpop.permute.xlu0 %233
  %v235 = vperm.slane %v57, 3
  %v236 = vlaneseq
  %v237 = vshrl.u32 %v236, 7
  %239 = vset.pattern.permute.xlu0 %v237
  %240 = vperm.xlu0 %239, %v235
  %v241 = vpop.permute.xlu0 %240
  %v242 = vlaneseq
  %v243 = vshrl.u32 %v242, 7
  %v244 = vadd.s32 %v243, 8
  %245 = vset.pattern.permute.xlu0 %v244
  %246 = vperm.xlu0 %245, %v235
  %v247 = vpop.permute.xlu0 %246
  %v248 = vlaneseq
  %v249 = vshrl.u32 %v248, 7
  %v250 = vadd.s32 %v249, 16
  %251 = vset.pattern.permute.xlu0 %v250
  %252 = vperm.xlu0 %251, %v235
  %v253 = vpop.permute.xlu0 %252
  %v254 = vlaneseq
  %v255 = vshrl.u32 %v254, 7
  %v256 = vadd.s32 %v255, 24
  %257 = vset.pattern.permute.xlu0 %v256
  %258 = vperm.xlu0 %257, %v235
  %v259 = vpop.permute.xlu0 %258
  %v260 = vlaneseq
  %v261 = vshrl.u32 %v260, 7
  %v262 = vadd.s32 %v261, 32
  %263 = vset.pattern.permute.xlu0 %v262
  %264 = vperm.xlu0 %263, %v235
  %v265 = vpop.permute.xlu0 %264
  %v266 = vlaneseq
  %v267 = vshrl.u32 %v266, 7
  %v268 = vadd.s32 %v267, 40
  %269 = vset.pattern.permute.xlu0 %v268
  %270 = vperm.xlu0 %269, %v235
  %v271 = vpop.permute.xlu0 %270
  %v272 = vlaneseq
  %v273 = vshrl.u32 %v272, 7
  %v274 = vadd.s32 %v273, 48
  %275 = vset.pattern.permute.xlu0 %v274
  %276 = vperm.xlu0 %275, %v235
  %v277 = vpop.permute.xlu0 %276
  %v278 = vlaneseq
  %v279 = vshrl.u32 %v278, 7
  %v280 = vadd.s32 %v279, 56
  %281 = vset.pattern.permute.xlu0 %v280
  %282 = vperm.xlu0 %281, %v235
  %v283 = vpop.permute.xlu0 %282
  %v284 = vperm.slane %v57, 4
  %v285 = vlaneseq
  %v286 = vshrl.u32 %v285, 7
  %288 = vset.pattern.permute.xlu0 %v286
  %289 = vperm.xlu0 %288, %v284
  %v290 = vpop.permute.xlu0 %289
  %v291 = vlaneseq
  %v292 = vshrl.u32 %v291, 7
  %v293 = vadd.s32 %v292, 8
  %294 = vset.pattern.permute.xlu0 %v293
  %295 = vperm.xlu0 %294, %v284
  %v296 = vpop.permute.xlu0 %295
  %v297 = vlaneseq
  %v298 = vshrl.u32 %v297, 7
  %v299 = vadd.s32 %v298, 16
  %300 = vset.pattern.permute.xlu0 %v299
  %301 = vperm.xlu0 %300, %v284
  %v302 = vpop.permute.xlu0 %301
  %v303 = vlaneseq
  %v304 = vshrl.u32 %v303, 7
  %v305 = vadd.s32 %v304, 24
  %306 = vset.pattern.permute.xlu0 %v305
  %307 = vperm.xlu0 %306, %v284
  %v308 = vpop.permute.xlu0 %307
  %v309 = vlaneseq
  %v310 = vshrl.u32 %v309, 7
  %v311 = vadd.s32 %v310, 32
  %312 = vset.pattern.permute.xlu0 %v311
  %313 = vperm.xlu0 %312, %v284
  %v314 = vpop.permute.xlu0 %313
  %v315 = vlaneseq
  %v316 = vshrl.u32 %v315, 7
  %v317 = vadd.s32 %v316, 40
  %318 = vset.pattern.permute.xlu0 %v317
  %319 = vperm.xlu0 %318, %v284
  %v320 = vpop.permute.xlu0 %319
  %v321 = vlaneseq
  %v322 = vshrl.u32 %v321, 7
  %v323 = vadd.s32 %v322, 48
  %324 = vset.pattern.permute.xlu0 %v323
  %325 = vperm.xlu0 %324, %v284
  %v326 = vpop.permute.xlu0 %325
  %v327 = vlaneseq
  %v328 = vshrl.u32 %v327, 7
  %v329 = vadd.s32 %v328, 56
  %330 = vset.pattern.permute.xlu0 %v329
  %331 = vperm.xlu0 %330, %v284
  %v332 = vpop.permute.xlu0 %331
  %v333 = vperm.slane %v57, 5
  %v334 = vlaneseq
  %v335 = vshrl.u32 %v334, 7
  %337 = vset.pattern.permute.xlu0 %v335
  %338 = vperm.xlu0 %337, %v333
  %v339 = vpop.permute.xlu0 %338
  %v340 = vlaneseq
  %v341 = vshrl.u32 %v340, 7
  %v342 = vadd.s32 %v341, 8
  %343 = vset.pattern.permute.xlu0 %v342
  %344 = vperm.xlu0 %343, %v333
  %v345 = vpop.permute.xlu0 %344
  %v346 = vlaneseq
  %v347 = vshrl.u32 %v346, 7
  %v348 = vadd.s32 %v347, 16
  %349 = vset.pattern.permute.xlu0 %v348
  %350 = vperm.xlu0 %349, %v333
  %v351 = vpop.permute.xlu0 %350
  %v352 = vlaneseq
  %v353 = vshrl.u32 %v352, 7
  %v354 = vadd.s32 %v353, 24
  %355 = vset.pattern.permute.xlu0 %v354
  %356 = vperm.xlu0 %355, %v333
  %v357 = vpop.permute.xlu0 %356
  %v358 = vlaneseq
  %v359 = vshrl.u32 %v358, 7
  %v360 = vadd.s32 %v359, 32
  %361 = vset.pattern.permute.xlu0 %v360
  %362 = vperm.xlu0 %361, %v333
  %v363 = vpop.permute.xlu0 %362
  %v364 = vlaneseq
  %v365 = vshrl.u32 %v364, 7
  %v366 = vadd.s32 %v365, 40
  %367 = vset.pattern.permute.xlu0 %v366
  %368 = vperm.xlu0 %367, %v333
  %v369 = vpop.permute.xlu0 %368
  %v370 = vlaneseq
  %v371 = vshrl.u32 %v370, 7
  %v372 = vadd.s32 %v371, 48
  %373 = vset.pattern.permute.xlu0 %v372
  %374 = vperm.xlu0 %373, %v333
  %v375 = vpop.permute.xlu0 %374
  %v376 = vlaneseq
  %v377 = vshrl.u32 %v376, 7
  %v378 = vadd.s32 %v377, 56
  %379 = vset.pattern.permute.xlu0 %v378
  %380 = vperm.xlu0 %379, %v333
  %v381 = vpop.permute.xlu0 %380
  %v382 = vperm.slane %v57, 6
  %v383 = vlaneseq
  %v384 = vshrl.u32 %v383, 7
  %386 = vset.pattern.permute.xlu0 %v384
  %387 = vperm.xlu0 %386, %v382
  %v388 = vpop.permute.xlu0 %387
  %v389 = vlaneseq
  %v390 = vshrl.u32 %v389, 7
  %v391 = vadd.s32 %v390, 8
  %392 = vset.pattern.permute.xlu0 %v391
  %393 = vperm.xlu0 %392, %v382
  %v394 = vpop.permute.xlu0 %393
  %v395 = vlaneseq
  %v396 = vshrl.u32 %v395, 7
  %v397 = vadd.s32 %v396, 16
  %398 = vset.pattern.permute.xlu0 %v397
  %399 = vperm.xlu0 %398, %v382
  %v400 = vpop.permute.xlu0 %399
  %v401 = vlaneseq
  %v402 = vshrl.u32 %v401, 7
  %v403 = vadd.s32 %v402, 24
  %404 = vset.pattern.permute.xlu0 %v403
  %405 = vperm.xlu0 %404, %v382
  %v406 = vpop.permute.xlu0 %405
  %v407 = vlaneseq
  %v408 = vshrl.u32 %v407, 7
  %v409 = vadd.s32 %v408, 32
  %410 = vset.pattern.permute.xlu0 %v409
  %411 = vperm.xlu0 %410, %v382
  %v412 = vpop.permute.xlu0 %411
  %v413 = vlaneseq
  %v414 = vshrl.u32 %v413, 7
  %v415 = vadd.s32 %v414, 40
  %416 = vset.pattern.permute.xlu0 %v415
  %417 = vperm.xlu0 %416, %v382
  %v418 = vpop.permute.xlu0 %417
  %v419 = vlaneseq
  %v420 = vshrl.u32 %v419, 7
  %v421 = vadd.s32 %v420, 48
  %422 = vset.pattern.permute.xlu0 %v421
  %423 = vperm.xlu0 %422, %v382
  %v424 = vpop.permute.xlu0 %423
  %v425 = vlaneseq
  %v426 = vshrl.u32 %v425, 7
  %v427 = vadd.s32 %v426, 56
  %428 = vset.pattern.permute.xlu0 %v427
  %429 = vperm.xlu0 %428, %v382
  %v430 = vpop.permute.xlu0 %429
  %v431 = vperm.slane %v57, 7
  %v432 = vlaneseq
  %v433 = vshrl.u32 %v432, 7
  %435 = vset.pattern.permute.xlu0 %v433
  %436 = vperm.xlu0 %435, %v431
  %v437 = vpop.permute.xlu0 %436
  %v438 = vlaneseq
  %v439 = vshrl.u32 %v438, 7
  %v440 = vadd.s32 %v439, 8
  %441 = vset.pattern.permute.xlu0 %v440
  %442 = vperm.xlu0 %441, %v431
  %v443 = vpop.permute.xlu0 %442
  %v444 = vlaneseq
  %v445 = vshrl.u32 %v444, 7
  %v446 = vadd.s32 %v445, 16
  %447 = vset.pattern.permute.xlu0 %v446
  %448 = vperm.xlu0 %447, %v431
  %v449 = vpop.permute.xlu0 %448
  %v450 = vlaneseq
  %v451 = vshrl.u32 %v450, 7
  %v452 = vadd.s32 %v451, 24
  %453 = vset.pattern.permute.xlu0 %v452
  %454 = vperm.xlu0 %453, %v431
  %v455 = vpop.permute.xlu0 %454
  %v456 = vlaneseq
  %v457 = vshrl.u32 %v456, 7
  %v458 = vadd.s32 %v457, 32
  %459 = vset.pattern.permute.xlu0 %v458
  %460 = vperm.xlu0 %459, %v431
  %v461 = vpop.permute.xlu0 %460
  %v462 = vlaneseq
  %v463 = vshrl.u32 %v462, 7
  %v464 = vadd.s32 %v463, 40
  %465 = vset.pattern.permute.xlu0 %v464
  %466 = vperm.xlu0 %465, %v431
  %v467 = vpop.permute.xlu0 %466
  %v468 = vlaneseq
  %v469 = vshrl.u32 %v468, 7
  %v470 = vadd.s32 %v469, 48
  %471 = vset.pattern.permute.xlu0 %v470
  %472 = vperm.xlu0 %471, %v431
  %v473 = vpop.permute.xlu0 %472
  %v474 = vlaneseq
  %v475 = vshrl.u32 %v474, 7
  %v476 = vadd.s32 %v475, 56
  %477 = vset.pattern.permute.xlu0 %v476
  %478 = vperm.xlu0 %477, %v431
  %v479 = vpop.permute.xlu0 %478
  %vm480 = vcmp.gt.f32.partialorder %v94, 0.0
  %vm481 = vcmp.gt.f32.partialorder %v100, 0.0
  %vm482 = vcmp.gt.f32.partialorder %v106, 0.0
  %vm483 = vcmp.gt.f32.partialorder %v112, 0.0
  %vm484 = vcmp.gt.f32.partialorder %v118, 0.0
  %vm485 = vcmp.gt.f32.partialorder %v124, 0.0
  %vm486 = vcmp.gt.f32.partialorder %v130, 0.0
  %vm487 = vcmp.gt.f32.partialorder %v136, 0.0
  %vm488 = vcmp.gt.f32.partialorder %v143, 0.0
  %vm489 = vcmp.gt.f32.partialorder %v149, 0.0
  %vm490 = vcmp.gt.f32.partialorder %v155, 0.0
  %vm491 = vcmp.gt.f32.partialorder %v161, 0.0
  %vm492 = vcmp.gt.f32.partialorder %v167, 0.0
  %vm493 = vcmp.gt.f32.partialorder %v173, 0.0
  %vm494 = vcmp.gt.f32.partialorder %v179, 0.0
  %vm495 = vcmp.gt.f32.partialorder %v185, 0.0
  %vm496 = vcmp.gt.f32.partialorder %v192, 0.0
  %vm497 = vcmp.gt.f32.partialorder %v198, 0.0
  %vm498 = vcmp.gt.f32.partialorder %v204, 0.0
  %vm499 = vcmp.gt.f32.partialorder %v210, 0.0
  %vm500 = vcmp.gt.f32.partialorder %v216, 0.0
  %vm501 = vcmp.gt.f32.partialorder %v222, 0.0
  %vm502 = vcmp.gt.f32.partialorder %v228, 0.0
  %vm503 = vcmp.gt.f32.partialorder %v234, 0.0
  %vm504 = vcmp.gt.f32.partialorder %v241, 0.0
  %vm505 = vcmp.gt.f32.partialorder %v247, 0.0
  %vm506 = vcmp.gt.f32.partialorder %v253, 0.0
  %vm507 = vcmp.gt.f32.partialorder %v259, 0.0
  %vm508 = vcmp.gt.f32.partialorder %v265, 0.0
  %vm509 = vcmp.gt.f32.partialorder %v271, 0.0
  %vm510 = vcmp.gt.f32.partialorder %v277, 0.0
  %vm511 = vcmp.gt.f32.partialorder %v283, 0.0
  %vm512 = vcmp.gt.f32.partialorder %v290, 0.0
  %vm513 = vcmp.gt.f32.partialorder %v296, 0.0
  %vm514 = vcmp.gt.f32.partialorder %v302, 0.0
  %vm515 = vcmp.gt.f32.partialorder %v308, 0.0
  %vm516 = vcmp.gt.f32.partialorder %v314, 0.0
  %vm517 = vcmp.gt.f32.partialorder %v320, 0.0
  %vm518 = vcmp.gt.f32.partialorder %v326, 0.0
  %vm519 = vcmp.gt.f32.partialorder %v332, 0.0
  %vm520 = vcmp.gt.f32.partialorder %v339, 0.0
  %vm521 = vcmp.gt.f32.partialorder %v345, 0.0
  %vm522 = vcmp.gt.f32.partialorder %v351, 0.0
  %vm523 = vcmp.gt.f32.partialorder %v357, 0.0
  %vm524 = vcmp.gt.f32.partialorder %v363, 0.0
  %vm525 = vcmp.gt.f32.partialorder %v369, 0.0
  %vm526 = vcmp.gt.f32.partialorder %v375, 0.0
  %vm527 = vcmp.gt.f32.partialorder %v381, 0.0
  %vm528 = vcmp.gt.f32.partialorder %v388, 0.0
  %vm529 = vcmp.gt.f32.partialorder %v394, 0.0
  %vm530 = vcmp.gt.f32.partialorder %v400, 0.0
  %vm531 = vcmp.gt.f32.partialorder %v406, 0.0
  %vm532 = vcmp.gt.f32.partialorder %v412, 0.0
  %vm533 = vcmp.gt.f32.partialorder %v418, 0.0
  %vm534 = vcmp.gt.f32.partialorder %v424, 0.0
  %vm535 = vcmp.gt.f32.partialorder %v430, 0.0
  %vm536 = vcmp.gt.f32.partialorder %v437, 0.0
  %vm537 = vcmp.gt.f32.partialorder %v443, 0.0
  %vm538 = vcmp.gt.f32.partialorder %v449, 0.0
  %vm539 = vcmp.gt.f32.partialorder %v455, 0.0
  %vm540 = vcmp.gt.f32.partialorder %v461, 0.0
  %vm541 = vcmp.gt.f32.partialorder %v467, 0.0
  %vm542 = vcmp.gt.f32.partialorder %v473, 0.0
  %vm543 = vcmp.gt.f32.partialorder %v479, 0.0
  %v544 = vsel %vm480, 1, 0
  %v545 = vsel %vm481, 1, 0
  %v546 = vsel %vm482, 1, 0
  %v547 = vsel %vm483, 1, 0
  %v548 = vsel %vm484, 1, 0
  %v549 = vsel %vm485, 1, 0
  %v550 = vsel %vm486, 1, 0
  %v551 = vsel %vm487, 1, 0
  %v552 = vsel %vm488, 1, 0
  %v553 = vsel %vm489, 1, 0
  %v554 = vsel %vm490, 1, 0
  %v555 = vsel %vm491, 1, 0
  %v556 = vsel %vm492, 1, 0
  %v557 = vsel %vm493, 1, 0
  %v558 = vsel %vm494, 1, 0
  %v559 = vsel %vm495, 1, 0
  %v560 = vsel %vm496, 1, 0
  %v561 = vsel %vm497, 1, 0
  %v562 = vsel %vm498, 1, 0
  %v563 = vsel %vm499, 1, 0
  %v564 = vsel %vm500, 1, 0
  %v565 = vsel %vm501, 1, 0
  %v566 = vsel %vm502, 1, 0
  %v567 = vsel %vm503, 1, 0
  %v568 = vsel %vm504, 1, 0
  %v569 = vsel %vm505, 1, 0
  %v570 = vsel %vm506, 1, 0
  %v571 = vsel %vm507, 1, 0
  %v572 = vsel %vm508, 1, 0
  %v573 = vsel %vm509, 1, 0
  %v574 = vsel %vm510, 1, 0
  %v575 = vsel %vm511, 1, 0
  %v576 = vsel %vm512, 1, 0
  %v577 = vsel %vm513, 1, 0
  %v578 = vsel %vm514, 1, 0
  %v579 = vsel %vm515, 1, 0
  %v580 = vsel %vm516, 1, 0
  %v581 = vsel %vm517, 1, 0
  %v582 = vsel %vm518, 1, 0
  %v583 = vsel %vm519, 1, 0
  %v584 = vsel %vm520, 1, 0
  %v585 = vsel %vm521, 1, 0
  %v586 = vsel %vm522, 1, 0
  %v587 = vsel %vm523, 1, 0
  %v588 = vsel %vm524, 1, 0
  %v589 = vsel %vm525, 1, 0
  %v590 = vsel %vm526, 1, 0
  %v591 = vsel %vm527, 1, 0
  %v592 = vsel %vm528, 1, 0
  %v593 = vsel %vm529, 1, 0
  %v594 = vsel %vm530, 1, 0
  %v595 = vsel %vm531, 1, 0
  %v596 = vsel %vm532, 1, 0
  %v597 = vsel %vm533, 1, 0
  %v598 = vsel %vm534, 1, 0
  %v599 = vsel %vm535, 1, 0
  %v600 = vsel %vm536, 1, 0
  %v601 = vsel %vm537, 1, 0
  %v602 = vsel %vm538, 1, 0
  %v603 = vsel %vm539, 1, 0
  %v604 = vsel %vm540, 1, 0
  %v605 = vsel %vm541, 1, 0
  %v606 = vsel %vm542, 1, 0
  %v607 = vsel %vm543, 1, 0
  %vm608 = vcmp.eq.s32.totalorder %v544, 1
  %vm609 = vcmp.eq.s32.totalorder %v545, 1
  %vm610 = vcmp.eq.s32.totalorder %v546, 1
  %vm611 = vcmp.eq.s32.totalorder %v547, 1
  %vm612 = vcmp.eq.s32.totalorder %v548, 1
  %vm613 = vcmp.eq.s32.totalorder %v549, 1
  %vm614 = vcmp.eq.s32.totalorder %v550, 1
  %vm615 = vcmp.eq.s32.totalorder %v551, 1
  %vm616 = vcmp.eq.s32.totalorder %v552, 1
  %vm617 = vcmp.eq.s32.totalorder %v553, 1
  %vm618 = vcmp.eq.s32.totalorder %v554, 1
  %vm619 = vcmp.eq.s32.totalorder %v555, 1
  %vm620 = vcmp.eq.s32.totalorder %v556, 1
  %vm621 = vcmp.eq.s32.totalorder %v557, 1
  %vm622 = vcmp.eq.s32.totalorder %v558, 1
  %vm623 = vcmp.eq.s32.totalorder %v559, 1
  %vm624 = vcmp.eq.s32.totalorder %v560, 1
  %vm625 = vcmp.eq.s32.totalorder %v561, 1
  %vm626 = vcmp.eq.s32.totalorder %v562, 1
  %vm627 = vcmp.eq.s32.totalorder %v563, 1
  %vm628 = vcmp.eq.s32.totalorder %v564, 1
  %vm629 = vcmp.eq.s32.totalorder %v565, 1
  %vm630 = vcmp.eq.s32.totalorder %v566, 1
  %vm631 = vcmp.eq.s32.totalorder %v567, 1
  %vm632 = vcmp.eq.s32.totalorder %v568, 1
  %vm633 = vcmp.eq.s32.totalorder %v569, 1
  %vm634 = vcmp.eq.s32.totalorder %v570, 1
  %vm635 = vcmp.eq.s32.totalorder %v571, 1
  %vm636 = vcmp.eq.s32.totalorder %v572, 1
  %vm637 = vcmp.eq.s32.totalorder %v573, 1
  %vm638 = vcmp.eq.s32.totalorder %v574, 1
  %vm639 = vcmp.eq.s32.totalorder %v575, 1
  %vm640 = vcmp.eq.s32.totalorder %v576, 1
  %vm641 = vcmp.eq.s32.totalorder %v577, 1
  %vm642 = vcmp.eq.s32.totalorder %v578, 1
  %vm643 = vcmp.eq.s32.totalorder %v579, 1
  %vm644 = vcmp.eq.s32.totalorder %v580, 1
  %vm645 = vcmp.eq.s32.totalorder %v581, 1
  %vm646 = vcmp.eq.s32.totalorder %v582, 1
  %vm647 = vcmp.eq.s32.totalorder %v583, 1
  %vm648 = vcmp.eq.s32.totalorder %v584, 1
  %vm649 = vcmp.eq.s32.totalorder %v585, 1
  %vm650 = vcmp.eq.s32.totalorder %v586, 1
  %vm651 = vcmp.eq.s32.totalorder %v587, 1
  %vm652 = vcmp.eq.s32.totalorder %v588, 1
  %vm653 = vcmp.eq.s32.totalorder %v589, 1
  %vm654 = vcmp.eq.s32.totalorder %v590, 1
  %vm655 = vcmp.eq.s32.totalorder %v591, 1
  %vm656 = vcmp.eq.s32.totalorder %v592, 1
  %vm657 = vcmp.eq.s32.totalorder %v593, 1
  %vm658 = vcmp.eq.s32.totalorder %v594, 1
  %vm659 = vcmp.eq.s32.totalorder %v595, 1
  %vm660 = vcmp.eq.s32.totalorder %v596, 1
  %vm661 = vcmp.eq.s32.totalorder %v597, 1
  %vm662 = vcmp.eq.s32.totalorder %v598, 1
  %vm663 = vcmp.eq.s32.totalorder %v599, 1
  %vm664 = vcmp.eq.s32.totalorder %v600, 1
  %vm665 = vcmp.eq.s32.totalorder %v601, 1
  %vm666 = vcmp.eq.s32.totalorder %v602, 1
  %vm667 = vcmp.eq.s32.totalorder %v603, 1
  %vm668 = vcmp.eq.s32.totalorder %v604, 1
  %vm669 = vcmp.eq.s32.totalorder %v605, 1
  %vm670 = vcmp.eq.s32.totalorder %v606, 1
  %vm671 = vcmp.eq.s32.totalorder %v607, 1
  %v672 = vsel %vm608, %v41, -3e+38
  %v673 = vsel %vm609, %v42, -3e+38
  %v674 = vsel %vm610, %v43, -3e+38
  %v675 = vsel %vm611, %v44, -3e+38
  %v676 = vsel %vm612, %v45, -3e+38
  %v677 = vsel %vm613, %v46, -3e+38
  %v678 = vsel %vm614, %v47, -3e+38
  %v679 = vsel %vm615, %v48, -3e+38
  %v680 = vsel %vm616, %v41, -3e+38
  %v681 = vsel %vm617, %v42, -3e+38
  %v682 = vsel %vm618, %v43, -3e+38
  %v683 = vsel %vm619, %v44, -3e+38
  %v684 = vsel %vm620, %v45, -3e+38
  %v685 = vsel %vm621, %v46, -3e+38
  %v686 = vsel %vm622, %v47, -3e+38
  %v687 = vsel %vm623, %v48, -3e+38
  %v688 = vsel %vm624, %v41, -3e+38
  %v689 = vsel %vm625, %v42, -3e+38
  %v690 = vsel %vm626, %v43, -3e+38
  %v691 = vsel %vm627, %v44, -3e+38
  %v692 = vsel %vm628, %v45, -3e+38
  %v693 = vsel %vm629, %v46, -3e+38
  %v694 = vsel %vm630, %v47, -3e+38
  %v695 = vsel %vm631, %v48, -3e+38
  %v696 = vsel %vm632, %v41, -3e+38
  %v697 = vsel %vm633, %v42, -3e+38
  %v698 = vsel %vm634, %v43, -3e+38
  %v699 = vsel %vm635, %v44, -3e+38
  %v700 = vsel %vm636, %v45, -3e+38
  %v701 = vsel %vm637, %v46, -3e+38
  %v702 = vsel %vm638, %v47, -3e+38
  %v703 = vsel %vm639, %v48, -3e+38
  %v704 = vsel %vm640, %v41, -3e+38
  %v705 = vsel %vm641, %v42, -3e+38
  %v706 = vsel %vm642, %v43, -3e+38
  %v707 = vsel %vm643, %v44, -3e+38
  %v708 = vsel %vm644, %v45, -3e+38
  %v709 = vsel %vm645, %v46, -3e+38
  %v710 = vsel %vm646, %v47, -3e+38
  %v711 = vsel %vm647, %v48, -3e+38
  %v712 = vsel %vm648, %v41, -3e+38
  %v713 = vsel %vm649, %v42, -3e+38
  %v714 = vsel %vm650, %v43, -3e+38
  %v715 = vsel %vm651, %v44, -3e+38
  %v716 = vsel %vm652, %v45, -3e+38
  %v717 = vsel %vm653, %v46, -3e+38
  %v718 = vsel %vm654, %v47, -3e+38
  %v719 = vsel %vm655, %v48, -3e+38
  %v720 = vsel %vm656, %v41, -3e+38
  %v721 = vsel %vm657, %v42, -3e+38
  %v722 = vsel %vm658, %v43, -3e+38
  %v723 = vsel %vm659, %v44, -3e+38
  %v724 = vsel %vm660, %v45, -3e+38
  %v725 = vsel %vm661, %v46, -3e+38
  %v726 = vsel %vm662, %v47, -3e+38
  %v727 = vsel %vm663, %v48, -3e+38
  %v728 = vsel %vm664, %v41, -3e+38
  %v729 = vsel %vm665, %v42, -3e+38
  %v730 = vsel %vm666, %v43, -3e+38
  %v731 = vsel %vm667, %v44, -3e+38
  %v732 = vsel %vm668, %v45, -3e+38
  %v733 = vsel %vm669, %v46, -3e+38
  %v734 = vsel %vm670, %v47, -3e+38
  %v735 = vsel %vm671, %v48, -3e+38
  %v736 = vsel %vm80, %v672, -inf
  %v737 = vsel %vm80, %v673, -inf
  %v738 = vmax.f32 %v736, %v737
  %v739 = vsel %vm80, %v674, -inf
  %v740 = vmax.f32 %v738, %v739
  %v741 = vsel %vm80, %v675, -inf
  %v742 = vmax.f32 %v740, %v741
  %v743 = vsel %vm80, %v676, -inf
  %v744 = vmax.f32 %v742, %v743
  %v745 = vsel %vm80, %v677, -inf
  %v746 = vmax.f32 %v744, %v745
  %v747 = vsel %vm80, %v678, -inf
  %v748 = vmax.f32 %v746, %v747
  %v749 = vsel %vm80, %v679, -inf
  %v750 = vmax.f32 %v748, %v749
  %v751 = vrot.slane %v750, 4
  %v752 = vmax.f32 %v750, %v751
  %v753 = vrot.slane %v752, 2
  %v754 = vmax.f32 %v752, %v753
  %v755 = vrot.slane %v754, 1
  %v756 = vmax.f32 %v754, %v755
  %v757 = vsel %vm80, %v680, -inf
  %v758 = vsel %vm80, %v681, -inf
  %v759 = vmax.f32 %v757, %v758
  %v760 = vsel %vm80, %v682, -inf
  %v761 = vmax.f32 %v759, %v760
  %v762 = vsel %vm80, %v683, -inf
  %v763 = vmax.f32 %v761, %v762
  %v764 = vsel %vm80, %v684, -inf
  %v765 = vmax.f32 %v763, %v764
  %v766 = vsel %vm80, %v685, -inf
  %v767 = vmax.f32 %v765, %v766
  %v768 = vsel %vm80, %v686, -inf
  %v769 = vmax.f32 %v767, %v768
  %v770 = vsel %vm80, %v687, -inf
  %v771 = vmax.f32 %v769, %v770
  %v772 = vrot.slane %v771, 4
  %v773 = vmax.f32 %v771, %v772
  %v774 = vrot.slane %v773, 2
  %v775 = vmax.f32 %v773, %v774
  %v776 = vrot.slane %v775, 1
  %v777 = vmax.f32 %v775, %v776
  %v778 = vsel %vm80, %v688, -inf
  %v779 = vsel %vm80, %v689, -inf
  %v780 = vmax.f32 %v778, %v779
  %v781 = vsel %vm80, %v690, -inf
  %v782 = vmax.f32 %v780, %v781
  %v783 = vsel %vm80, %v691, -inf
  %v784 = vmax.f32 %v782, %v783
  %v785 = vsel %vm80, %v692, -inf
  %v786 = vmax.f32 %v784, %v785
  %v787 = vsel %vm80, %v693, -inf
  %v788 = vmax.f32 %v786, %v787
  %v789 = vsel %vm80, %v694, -inf
  %v790 = vmax.f32 %v788, %v789
  %v791 = vsel %vm80, %v695, -inf
  %v792 = vmax.f32 %v790, %v791
  %v793 = vrot.slane %v792, 4
  %v794 = vmax.f32 %v792, %v793
  %v795 = vrot.slane %v794, 2
  %v796 = vmax.f32 %v794, %v795
  %v797 = vrot.slane %v796, 1
  %v798 = vmax.f32 %v796, %v797
  %v799 = vsel %vm80, %v696, -inf
  %v800 = vsel %vm80, %v697, -inf
  %v801 = vmax.f32 %v799, %v800
  %v802 = vsel %vm80, %v698, -inf
  %v803 = vmax.f32 %v801, %v802
  %v804 = vsel %vm80, %v699, -inf
  %v805 = vmax.f32 %v803, %v804
  %v806 = vsel %vm80, %v700, -inf
  %v807 = vmax.f32 %v805, %v806
  %v808 = vsel %vm80, %v701, -inf
  %v809 = vmax.f32 %v807, %v808
  %v810 = vsel %vm80, %v702, -inf
  %v811 = vmax.f32 %v809, %v810
  %v812 = vsel %vm80, %v703, -inf
  %v813 = vmax.f32 %v811, %v812
  %v814 = vrot.slane %v813, 4
  %v815 = vmax.f32 %v813, %v814
  %v816 = vrot.slane %v815, 2
  %v817 = vmax.f32 %v815, %v816
  %v818 = vrot.slane %v817, 1
  %v819 = vmax.f32 %v817, %v818
  %v820 = vsel %vm80, %v704, -inf
  %v821 = vsel %vm80, %v705, -inf
  %v822 = vmax.f32 %v820, %v821
  %v823 = vsel %vm80, %v706, -inf
  %v824 = vmax.f32 %v822, %v823
  %v825 = vsel %vm80, %v707, -inf
  %v826 = vmax.f32 %v824, %v825
  %v827 = vsel %vm80, %v708, -inf
  %v828 = vmax.f32 %v826, %v827
  %v829 = vsel %vm80, %v709, -inf
  %v830 = vmax.f32 %v828, %v829
  %v831 = vsel %vm80, %v710, -inf
  %v832 = vmax.f32 %v830, %v831
  %v833 = vsel %vm80, %v711, -inf
  %v834 = vmax.f32 %v832, %v833
  %v835 = vrot.slane %v834, 4
  %v836 = vmax.f32 %v834, %v835
  %v837 = vrot.slane %v836, 2
  %v838 = vmax.f32 %v836, %v837
  %v839 = vrot.slane %v838, 1
  %v840 = vmax.f32 %v838, %v839
  %v841 = vsel %vm80, %v712, -inf
  %v842 = vsel %vm80, %v713, -inf
  %v843 = vmax.f32 %v841, %v842
  %v844 = vsel %vm80, %v714, -inf
  %v845 = vmax.f32 %v843, %v844
  %v846 = vsel %vm80, %v715, -inf
  %v847 = vmax.f32 %v845, %v846
  %v848 = vsel %vm80, %v716, -inf
  %v849 = vmax.f32 %v847, %v848
  %v850 = vsel %vm80, %v717, -inf
  %v851 = vmax.f32 %v849, %v850
  %v852 = vsel %vm80, %v718, -inf
  %v853 = vmax.f32 %v851, %v852
  %v854 = vsel %vm80, %v719, -inf
  %v855 = vmax.f32 %v853, %v854
  %v856 = vrot.slane %v855, 4
  %v857 = vmax.f32 %v855, %v856
  %v858 = vrot.slane %v857, 2
  %v859 = vmax.f32 %v857, %v858
  %v860 = vrot.slane %v859, 1
  %v861 = vmax.f32 %v859, %v860
  %v862 = vsel %vm80, %v720, -inf
  %v863 = vsel %vm80, %v721, -inf
  %v864 = vmax.f32 %v862, %v863
  %v865 = vsel %vm80, %v722, -inf
  %v866 = vmax.f32 %v864, %v865
  %v867 = vsel %vm80, %v723, -inf
  %v868 = vmax.f32 %v866, %v867
  %v869 = vsel %vm80, %v724, -inf
  %v870 = vmax.f32 %v868, %v869
  %v871 = vsel %vm80, %v725, -inf
  %v872 = vmax.f32 %v870, %v871
  %v873 = vsel %vm80, %v726, -inf
  %v874 = vmax.f32 %v872, %v873
  %v875 = vsel %vm80, %v727, -inf
  %v876 = vmax.f32 %v874, %v875
  %v877 = vrot.slane %v876, 4
  %v878 = vmax.f32 %v876, %v877
  %v879 = vrot.slane %v878, 2
  %v880 = vmax.f32 %v878, %v879
  %v881 = vrot.slane %v880, 1
  %v882 = vmax.f32 %v880, %v881
  %v883 = vsel %vm80, %v728, -inf
  %v884 = vsel %vm80, %v729, -inf
  %v885 = vmax.f32 %v883, %v884
  %v886 = vsel %vm80, %v730, -inf
  %v887 = vmax.f32 %v885, %v886
  %v888 = vsel %vm80, %v731, -inf
  %v889 = vmax.f32 %v887, %v888
  %v890 = vsel %vm80, %v732, -inf
  %v891 = vmax.f32 %v889, %v890
  %v892 = vsel %vm80, %v733, -inf
  %v893 = vmax.f32 %v891, %v892
  %v894 = vsel %vm80, %v734, -inf
  %v895 = vmax.f32 %v893, %v894
  %v896 = vsel %vm80, %v735, -inf
  %v897 = vmax.f32 %v895, %v896
  %v898 = vrot.slane %v897, 4
  %v899 = vmax.f32 %v897, %v898
  %v900 = vrot.slane %v899, 2
  %v901 = vmax.f32 %v899, %v900
  %v902 = vrot.slane %v901, 1
  %v903 = vmax.f32 %v901, %v902
  %v904 = vmax.f32 %v756, -3e+38
  %v905 = vmax.f32 %v777, -3e+38
  %v906 = vmax.f32 %v798, -3e+38
  %v907 = vmax.f32 %v819, -3e+38
  %v908 = vmax.f32 %v840, -3e+38
  %v909 = vmax.f32 %v861, -3e+38
  %v910 = vmax.f32 %v882, -3e+38
  %v911 = vmax.f32 %v903, -3e+38
  %v912 = vlaneseq
  %v913 = vshrl.u32 %v912, 7
  %v914 = vadd.s32 %v913, 64
  %915 = vset.pattern.permute.xlu0 %v914
  %916 = vperm.xlu0 %915, %v88
  %v917 = vpop.permute.xlu0 %916
  %v918 = vlaneseq
  %v919 = vshrl.u32 %v918, 7
  %v920 = vadd.s32 %v919, 72
  %921 = vset.pattern.permute.xlu0 %v920
  %922 = vperm.xlu0 %921, %v88
  %v923 = vpop.permute.xlu0 %922
  %v924 = vlaneseq
  %v925 = vshrl.u32 %v924, 7
  %v926 = vadd.s32 %v925, 80
  %927 = vset.pattern.permute.xlu0 %v926
  %928 = vperm.xlu0 %927, %v88
  %v929 = vpop.permute.xlu0 %928
  %v930 = vlaneseq
  %v931 = vshrl.u32 %v930, 7
  %v932 = vadd.s32 %v931, 88
  %933 = vset.pattern.permute.xlu0 %v932
  %934 = vperm.xlu0 %933, %v88
  %v935 = vpop.permute.xlu0 %934
  %v936 = vlaneseq
  %v937 = vshrl.u32 %v936, 7
  %v938 = vadd.s32 %v937, 96
  %939 = vset.pattern.permute.xlu0 %v938
  %940 = vperm.xlu0 %939, %v88
  %v941 = vpop.permute.xlu0 %940
  %v942 = vlaneseq
  %v943 = vshrl.u32 %v942, 7
  %v944 = vadd.s32 %v943, 104
  %945 = vset.pattern.permute.xlu0 %v944
  %946 = vperm.xlu0 %945, %v88
  %v947 = vpop.permute.xlu0 %946
  %v948 = vlaneseq
  %v949 = vshrl.u32 %v948, 7
  %v950 = vadd.s32 %v949, 112
  %951 = vset.pattern.permute.xlu0 %v950
  %952 = vperm.xlu0 %951, %v88
  %v953 = vpop.permute.xlu0 %952
  %v954 = vlaneseq
  %v955 = vshrl.u32 %v954, 7
  %v956 = vadd.s32 %v955, 120
  %957 = vset.pattern.permute.xlu0 %v956
  %958 = vperm.xlu0 %957, %v88
  %v959 = vpop.permute.xlu0 %958
  %v960 = vlaneseq
  %v961 = vshrl.u32 %v960, 7
  %v962 = vadd.s32 %v961, 64
  %963 = vset.pattern.permute.xlu0 %v962
  %964 = vperm.xlu0 %963, %v137
  %v965 = vpop.permute.xlu0 %964
  %v966 = vlaneseq
  %v967 = vshrl.u32 %v966, 7
  %v968 = vadd.s32 %v967, 72
  %969 = vset.pattern.permute.xlu0 %v968
  %970 = vperm.xlu0 %969, %v137
  %v971 = vpop.permute.xlu0 %970
  %v972 = vlaneseq
  %v973 = vshrl.u32 %v972, 7
  %v974 = vadd.s32 %v973, 80
  %975 = vset.pattern.permute.xlu0 %v974
  %976 = vperm.xlu0 %975, %v137
  %v977 = vpop.permute.xlu0 %976
  %v978 = vlaneseq
  %v979 = vshrl.u32 %v978, 7
  %v980 = vadd.s32 %v979, 88
  %981 = vset.pattern.permute.xlu0 %v980
  %982 = vperm.xlu0 %981, %v137
  %v983 = vpop.permute.xlu0 %982
  %v984 = vlaneseq
  %v985 = vshrl.u32 %v984, 7
  %v986 = vadd.s32 %v985, 96
  %987 = vset.pattern.permute.xlu0 %v986
  %988 = vperm.xlu0 %987, %v137
  %v989 = vpop.permute.xlu0 %988
  %v990 = vlaneseq
  %v991 = vshrl.u32 %v990, 7
  %v992 = vadd.s32 %v991, 104
  %993 = vset.pattern.permute.xlu0 %v992
  %994 = vperm.xlu0 %993, %v137
  %v995 = vpop.permute.xlu0 %994
  %v996 = vlaneseq
  %v997 = vshrl.u32 %v996, 7
  %v998 = vadd.s32 %v997, 112
  %999 = vset.pattern.permute.xlu0 %v998
  %1000 = vperm.xlu0 %999, %v137
  %v1001 = vpop.permute.xlu0 %1000
  %v1002 = vlaneseq
  %v1003 = vshrl.u32 %v1002, 7
  %v1004 = vadd.s32 %v1003, 120
  %1005 = vset.pattern.permute.xlu0 %v1004
  %1006 = vperm.xlu0 %1005, %v137
  %v1007 = vpop.permute.xlu0 %1006
  %v1008 = vlaneseq
  %v1009 = vshrl.u32 %v1008, 7
  %v1010 = vadd.s32 %v1009, 64
  %1011 = vset.pattern.permute.xlu0 %v1010
  %1012 = vperm.xlu0 %1011, %v186
  %v1013 = vpop.permute.xlu0 %1012
  %v1014 = vlaneseq
  %v1015 = vshrl.u32 %v1014, 7
  %v1016 = vadd.s32 %v1015, 72
  %1017 = vset.pattern.permute.xlu0 %v1016
  %1018 = vperm.xlu0 %1017, %v186
  %v1019 = vpop.permute.xlu0 %1018
  %v1020 = vlaneseq
  %v1021 = vshrl.u32 %v1020, 7
  %v1022 = vadd.s32 %v1021, 80
  %1023 = vset.pattern.permute.xlu0 %v1022
  %1024 = vperm.xlu0 %1023, %v186
  %v1025 = vpop.permute.xlu0 %1024
  %v1026 = vlaneseq
  %v1027 = vshrl.u32 %v1026, 7
  %v1028 = vadd.s32 %v1027, 88
  %1029 = vset.pattern.permute.xlu0 %v1028
  %1030 = vperm.xlu0 %1029, %v186
  %v1031 = vpop.permute.xlu0 %1030
  %v1032 = vlaneseq
  %v1033 = vshrl.u32 %v1032, 7
  %v1034 = vadd.s32 %v1033, 96
  %1035 = vset.pattern.permute.xlu0 %v1034
  %1036 = vperm.xlu0 %1035, %v186
  %v1037 = vpop.permute.xlu0 %1036
  %v1038 = vlaneseq
  %v1039 = vshrl.u32 %v1038, 7
  %v1040 = vadd.s32 %v1039, 104
  %1041 = vset.pattern.permute.xlu0 %v1040
  %1042 = vperm.xlu0 %1041, %v186
  %v1043 = vpop.permute.xlu0 %1042
  %v1044 = vlaneseq
  %v1045 = vshrl.u32 %v1044, 7
  %v1046 = vadd.s32 %v1045, 112
  %1047 = vset.pattern.permute.xlu0 %v1046
  %1048 = vperm.xlu0 %1047, %v186
  %v1049 = vpop.permute.xlu0 %1048
  %v1050 = vlaneseq
  %v1051 = vshrl.u32 %v1050, 7
  %v1052 = vadd.s32 %v1051, 120
  %1053 = vset.pattern.permute.xlu0 %v1052
  %1054 = vperm.xlu0 %1053, %v186
  %v1055 = vpop.permute.xlu0 %1054
  %v1056 = vlaneseq
  %v1057 = vshrl.u32 %v1056, 7
  %v1058 = vadd.s32 %v1057, 64
  %1059 = vset.pattern.permute.xlu0 %v1058
  %1060 = vperm.xlu0 %1059, %v235
  %v1061 = vpop.permute.xlu0 %1060
  %v1062 = vlaneseq
  %v1063 = vshrl.u32 %v1062, 7
  %v1064 = vadd.s32 %v1063, 72
  %1065 = vset.pattern.permute.xlu0 %v1064
  %1066 = vperm.xlu0 %1065, %v235
  %v1067 = vpop.permute.xlu0 %1066
  %v1068 = vlaneseq
  %v1069 = vshrl.u32 %v1068, 7
  %v1070 = vadd.s32 %v1069, 80
  %1071 = vset.pattern.permute.xlu0 %v1070
  %1072 = vperm.xlu0 %1071, %v235
  %v1073 = vpop.permute.xlu0 %1072
  %v1074 = vlaneseq
  %v1075 = vshrl.u32 %v1074, 7
  %v1076 = vadd.s32 %v1075, 88
  %1077 = vset.pattern.permute.xlu0 %v1076
  %1078 = vperm.xlu0 %1077, %v235
  %v1079 = vpop.permute.xlu0 %1078
  %v1080 = vlaneseq
  %v1081 = vshrl.u32 %v1080, 7
  %v1082 = vadd.s32 %v1081, 96
  %1083 = vset.pattern.permute.xlu0 %v1082
  %1084 = vperm.xlu0 %1083, %v235
  %v1085 = vpop.permute.xlu0 %1084
  %v1086 = vlaneseq
  %v1087 = vshrl.u32 %v1086, 7
  %v1088 = vadd.s32 %v1087, 104
  %1089 = vset.pattern.permute.xlu0 %v1088
  %1090 = vperm.xlu0 %1089, %v235
  %v1091 = vpop.permute.xlu0 %1090
  %v1092 = vlaneseq
  %v1093 = vshrl.u32 %v1092, 7
  %v1094 = vadd.s32 %v1093, 112
  %1095 = vset.pattern.permute.xlu0 %v1094
  %1096 = vperm.xlu0 %1095, %v235
  %v1097 = vpop.permute.xlu0 %1096
  %v1098 = vlaneseq
  %v1099 = vshrl.u32 %v1098, 7
  %v1100 = vadd.s32 %v1099, 120
  %1101 = vset.pattern.permute.xlu0 %v1100
  %1102 = vperm.xlu0 %1101, %v235
  %v1103 = vpop.permute.xlu0 %1102
  %v1104 = vlaneseq
  %v1105 = vshrl.u32 %v1104, 7
  %v1106 = vadd.s32 %v1105, 64
  %1107 = vset.pattern.permute.xlu0 %v1106
  %1108 = vperm.xlu0 %1107, %v284
  %v1109 = vpop.permute.xlu0 %1108
  %v1110 = vlaneseq
  %v1111 = vshrl.u32 %v1110, 7
  %v1112 = vadd.s32 %v1111, 72
  %1113 = vset.pattern.permute.xlu0 %v1112
  %1114 = vperm.xlu0 %1113, %v284
  %v1115 = vpop.permute.xlu0 %1114
  %v1116 = vlaneseq
  %v1117 = vshrl.u32 %v1116, 7
  %v1118 = vadd.s32 %v1117, 80
  %1119 = vset.pattern.permute.xlu0 %v1118
  %1120 = vperm.xlu0 %1119, %v284
  %v1121 = vpop.permute.xlu0 %1120
  %v1122 = vlaneseq
  %v1123 = vshrl.u32 %v1122, 7
  %v1124 = vadd.s32 %v1123, 88
  %1125 = vset.pattern.permute.xlu0 %v1124
  %1126 = vperm.xlu0 %1125, %v284
  %v1127 = vpop.permute.xlu0 %1126
  %v1128 = vlaneseq
  %v1129 = vshrl.u32 %v1128, 7
  %v1130 = vadd.s32 %v1129, 96
  %1131 = vset.pattern.permute.xlu0 %v1130
  %1132 = vperm.xlu0 %1131, %v284
  %v1133 = vpop.permute.xlu0 %1132
  %v1134 = vlaneseq
  %v1135 = vshrl.u32 %v1134, 7
  %v1136 = vadd.s32 %v1135, 104
  %1137 = vset.pattern.permute.xlu0 %v1136
  %1138 = vperm.xlu0 %1137, %v284
  %v1139 = vpop.permute.xlu0 %1138
  %v1140 = vlaneseq
  %v1141 = vshrl.u32 %v1140, 7
  %v1142 = vadd.s32 %v1141, 112
  %1143 = vset.pattern.permute.xlu0 %v1142
  %1144 = vperm.xlu0 %1143, %v284
  %v1145 = vpop.permute.xlu0 %1144
  %v1146 = vlaneseq
  %v1147 = vshrl.u32 %v1146, 7
  %v1148 = vadd.s32 %v1147, 120
  %1149 = vset.pattern.permute.xlu0 %v1148
  %1150 = vperm.xlu0 %1149, %v284
  %v1151 = vpop.permute.xlu0 %1150
  %v1152 = vlaneseq
  %v1153 = vshrl.u32 %v1152, 7
  %v1154 = vadd.s32 %v1153, 64
  %1155 = vset.pattern.permute.xlu0 %v1154
  %1156 = vperm.xlu0 %1155, %v333
  %v1157 = vpop.permute.xlu0 %1156
  %v1158 = vlaneseq
  %v1159 = vshrl.u32 %v1158, 7
  %v1160 = vadd.s32 %v1159, 72
  %1161 = vset.pattern.permute.xlu0 %v1160
  %1162 = vperm.xlu0 %1161, %v333
  %v1163 = vpop.permute.xlu0 %1162
  %v1164 = vlaneseq
  %v1165 = vshrl.u32 %v1164, 7
  %v1166 = vadd.s32 %v1165, 80
  %1167 = vset.pattern.permute.xlu0 %v1166
  %1168 = vperm.xlu0 %1167, %v333
  %v1169 = vpop.permute.xlu0 %1168
  %v1170 = vlaneseq
  %v1171 = vshrl.u32 %v1170, 7
  %v1172 = vadd.s32 %v1171, 88
  %1173 = vset.pattern.permute.xlu0 %v1172
  %1174 = vperm.xlu0 %1173, %v333
  %v1175 = vpop.permute.xlu0 %1174
  %v1176 = vlaneseq
  %v1177 = vshrl.u32 %v1176, 7
  %v1178 = vadd.s32 %v1177, 96
  %1179 = vset.pattern.permute.xlu0 %v1178
  %1180 = vperm.xlu0 %1179, %v333
  %v1181 = vpop.permute.xlu0 %1180
  %v1182 = vlaneseq
  %v1183 = vshrl.u32 %v1182, 7
  %v1184 = vadd.s32 %v1183, 104
  %1185 = vset.pattern.permute.xlu0 %v1184
  %1186 = vperm.xlu0 %1185, %v333
  %v1187 = vpop.permute.xlu0 %1186
  %v1188 = vlaneseq
  %v1189 = vshrl.u32 %v1188, 7
  %v1190 = vadd.s32 %v1189, 112
  %1191 = vset.pattern.permute.xlu0 %v1190
  %1192 = vperm.xlu0 %1191, %v333
  %v1193 = vpop.permute.xlu0 %1192
  %v1194 = vlaneseq
  %v1195 = vshrl.u32 %v1194, 7
  %v1196 = vadd.s32 %v1195, 120
  %1197 = vset.pattern.permute.xlu0 %v1196
  %1198 = vperm.xlu0 %1197, %v333
  %v1199 = vpop.permute.xlu0 %1198
  %v1200 = vlaneseq
  %v1201 = vshrl.u32 %v1200, 7
  %v1202 = vadd.s32 %v1201, 64
  %1203 = vset.pattern.permute.xlu0 %v1202
  %1204 = vperm.xlu0 %1203, %v382
  %v1205 = vpop.permute.xlu0 %1204
  %v1206 = vlaneseq
  %v1207 = vshrl.u32 %v1206, 7
  %v1208 = vadd.s32 %v1207, 72
  %1209 = vset.pattern.permute.xlu0 %v1208
  %1210 = vperm.xlu0 %1209, %v382
  %v1211 = vpop.permute.xlu0 %1210
  %v1212 = vlaneseq
  %v1213 = vshrl.u32 %v1212, 7
  %v1214 = vadd.s32 %v1213, 80
  %1215 = vset.pattern.permute.xlu0 %v1214
  %1216 = vperm.xlu0 %1215, %v382
  %v1217 = vpop.permute.xlu0 %1216
  %v1218 = vlaneseq
  %v1219 = vshrl.u32 %v1218, 7
  %v1220 = vadd.s32 %v1219, 88
  %1221 = vset.pattern.permute.xlu0 %v1220
  %1222 = vperm.xlu0 %1221, %v382
  %v1223 = vpop.permute.xlu0 %1222
  %v1224 = vlaneseq
  %v1225 = vshrl.u32 %v1224, 7
  %v1226 = vadd.s32 %v1225, 96
  %1227 = vset.pattern.permute.xlu0 %v1226
  %1228 = vperm.xlu0 %1227, %v382
  %v1229 = vpop.permute.xlu0 %1228
  %v1230 = vlaneseq
  %v1231 = vshrl.u32 %v1230, 7
  %v1232 = vadd.s32 %v1231, 104
  %1233 = vset.pattern.permute.xlu0 %v1232
  %1234 = vperm.xlu0 %1233, %v382
  %v1235 = vpop.permute.xlu0 %1234
  %v1236 = vlaneseq
  %v1237 = vshrl.u32 %v1236, 7
  %v1238 = vadd.s32 %v1237, 112
  %1239 = vset.pattern.permute.xlu0 %v1238
  %1240 = vperm.xlu0 %1239, %v382
  %v1241 = vpop.permute.xlu0 %1240
  %v1242 = vlaneseq
  %v1243 = vshrl.u32 %v1242, 7
  %v1244 = vadd.s32 %v1243, 120
  %1245 = vset.pattern.permute.xlu0 %v1244
  %1246 = vperm.xlu0 %1245, %v382
  %v1247 = vpop.permute.xlu0 %1246
  %v1248 = vlaneseq
  %v1249 = vshrl.u32 %v1248, 7
  %v1250 = vadd.s32 %v1249, 64
  %1251 = vset.pattern.permute.xlu0 %v1250
  %1252 = vperm.xlu0 %1251, %v431
  %v1253 = vpop.permute.xlu0 %1252
  %v1254 = vlaneseq
  %v1255 = vshrl.u32 %v1254, 7
  %v1256 = vadd.s32 %v1255, 72
  %1257 = vset.pattern.permute.xlu0 %v1256
  %1258 = vperm.xlu0 %1257, %v431
  %v1259 = vpop.permute.xlu0 %1258
  %v1260 = vlaneseq
  %v1261 = vshrl.u32 %v1260, 7
  %v1262 = vadd.s32 %v1261, 80
  %1263 = vset.pattern.permute.xlu0 %v1262
  %1264 = vperm.xlu0 %1263, %v431
  %v1265 = vpop.permute.xlu0 %1264
  %v1266 = vlaneseq
  %v1267 = vshrl.u32 %v1266, 7
  %v1268 = vadd.s32 %v1267, 88
  %1269 = vset.pattern.permute.xlu0 %v1268
  %1270 = vperm.xlu0 %1269, %v431
  %v1271 = vpop.permute.xlu0 %1270
  %v1272 = vlaneseq
  %v1273 = vshrl.u32 %v1272, 7
  %v1274 = vadd.s32 %v1273, 96
  %1275 = vset.pattern.permute.xlu0 %v1274
  %1276 = vperm.xlu0 %1275, %v431
  %v1277 = vpop.permute.xlu0 %1276
  %v1278 = vlaneseq
  %v1279 = vshrl.u32 %v1278, 7
  %v1280 = vadd.s32 %v1279, 104
  %1281 = vset.pattern.permute.xlu0 %v1280
  %1282 = vperm.xlu0 %1281, %v431
  %v1283 = vpop.permute.xlu0 %1282
  %v1284 = vlaneseq
  %v1285 = vshrl.u32 %v1284, 7
  %v1286 = vadd.s32 %v1285, 112
  %1287 = vset.pattern.permute.xlu0 %v1286
  %1288 = vperm.xlu0 %1287, %v431
  %v1289 = vpop.permute.xlu0 %1288
  %v1290 = vlaneseq
  %v1291 = vshrl.u32 %v1290, 7
  %v1292 = vadd.s32 %v1291, 120
  %1293 = vset.pattern.permute.xlu0 %v1292
  %1294 = vperm.xlu0 %1293, %v431
  %v1295 = vpop.permute.xlu0 %1294
  %vm1296 = vcmp.gt.f32.partialorder %v917, 0.0
  %vm1297 = vcmp.gt.f32.partialorder %v923, 0.0
  %vm1298 = vcmp.gt.f32.partialorder %v929, 0.0
  %vm1299 = vcmp.gt.f32.partialorder %v935, 0.0
  %vm1300 = vcmp.gt.f32.partialorder %v941, 0.0
  %vm1301 = vcmp.gt.f32.partialorder %v947, 0.0
  %vm1302 = vcmp.gt.f32.partialorder %v953, 0.0
  %vm1303 = vcmp.gt.f32.partialorder %v959, 0.0
  %vm1304 = vcmp.gt.f32.partialorder %v965, 0.0
  %vm1305 = vcmp.gt.f32.partialorder %v971, 0.0
  %vm1306 = vcmp.gt.f32.partialorder %v977, 0.0
  %vm1307 = vcmp.gt.f32.partialorder %v983, 0.0
  %vm1308 = vcmp.gt.f32.partialorder %v989, 0.0
  %vm1309 = vcmp.gt.f32.partialorder %v995, 0.0
  %vm1310 = vcmp.gt.f32.partialorder %v1001, 0.0
  %vm1311 = vcmp.gt.f32.partialorder %v1007, 0.0
  %vm1312 = vcmp.gt.f32.partialorder %v1013, 0.0
  %vm1313 = vcmp.gt.f32.partialorder %v1019, 0.0
  %vm1314 = vcmp.gt.f32.partialorder %v1025, 0.0
  %vm1315 = vcmp.gt.f32.partialorder %v1031, 0.0
  %vm1316 = vcmp.gt.f32.partialorder %v1037, 0.0
  %vm1317 = vcmp.gt.f32.partialorder %v1043, 0.0
  %vm1318 = vcmp.gt.f32.partialorder %v1049, 0.0
  %vm1319 = vcmp.gt.f32.partialorder %v1055, 0.0
  %vm1320 = vcmp.gt.f32.partialorder %v1061, 0.0
  %vm1321 = vcmp.gt.f32.partialorder %v1067, 0.0
  %vm1322 = vcmp.gt.f32.partialorder %v1073, 0.0
  %vm1323 = vcmp.gt.f32.partialorder %v1079, 0.0
  %vm1324 = vcmp.gt.f32.partialorder %v1085, 0.0
  %vm1325 = vcmp.gt.f32.partialorder %v1091, 0.0
  %vm1326 = vcmp.gt.f32.partialorder %v1097, 0.0
  %vm1327 = vcmp.gt.f32.partialorder %v1103, 0.0
  %vm1328 = vcmp.gt.f32.partialorder %v1109, 0.0
  %vm1329 = vcmp.gt.f32.partialorder %v1115, 0.0
  %vm1330 = vcmp.gt.f32.partialorder %v1121, 0.0
  %vm1331 = vcmp.gt.f32.partialorder %v1127, 0.0
  %vm1332 = vcmp.gt.f32.partialorder %v1133, 0.0
  %vm1333 = vcmp.gt.f32.partialorder %v1139, 0.0
  %vm1334 = vcmp.gt.f32.partialorder %v1145, 0.0
  %vm1335 = vcmp.gt.f32.partialorder %v1151, 0.0
  %vm1336 = vcmp.gt.f32.partialorder %v1157, 0.0
  %vm1337 = vcmp.gt.f32.partialorder %v1163, 0.0
  %vm1338 = vcmp.gt.f32.partialorder %v1169, 0.0
  %vm1339 = vcmp.gt.f32.partialorder %v1175, 0.0
  %vm1340 = vcmp.gt.f32.partialorder %v1181, 0.0
  %vm1341 = vcmp.gt.f32.partialorder %v1187, 0.0
  %vm1342 = vcmp.gt.f32.partialorder %v1193, 0.0
  %vm1343 = vcmp.gt.f32.partialorder %v1199, 0.0
  %vm1344 = vcmp.gt.f32.partialorder %v1205, 0.0
  %vm1345 = vcmp.gt.f32.partialorder %v1211, 0.0
  %vm1346 = vcmp.gt.f32.partialorder %v1217, 0.0
  %vm1347 = vcmp.gt.f32.partialorder %v1223, 0.0
  %vm1348 = vcmp.gt.f32.partialorder %v1229, 0.0
  %vm1349 = vcmp.gt.f32.partialorder %v1235, 0.0
  %vm1350 = vcmp.gt.f32.partialorder %v1241, 0.0
  %vm1351 = vcmp.gt.f32.partialorder %v1247, 0.0
  %vm1352 = vcmp.gt.f32.partialorder %v1253, 0.0
  %vm1353 = vcmp.gt.f32.partialorder %v1259, 0.0
  %vm1354 = vcmp.gt.f32.partialorder %v1265, 0.0
  %vm1355 = vcmp.gt.f32.partialorder %v1271, 0.0
  %vm1356 = vcmp.gt.f32.partialorder %v1277, 0.0
  %vm1357 = vcmp.gt.f32.partialorder %v1283, 0.0
  %vm1358 = vcmp.gt.f32.partialorder %v1289, 0.0
  %vm1359 = vcmp.gt.f32.partialorder %v1295, 0.0
  %v1360 = vsel %vm1296, 1, 0
  %v1361 = vsel %vm1297, 1, 0
  %v1362 = vsel %vm1298, 1, 0
  %v1363 = vsel %vm1299, 1, 0
  %v1364 = vsel %vm1300, 1, 0
  %v1365 = vsel %vm1301, 1, 0
  %v1366 = vsel %vm1302, 1, 0
  %v1367 = vsel %vm1303, 1, 0
  %v1368 = vsel %vm1304, 1, 0
  %v1369 = vsel %vm1305, 1, 0
  %v1370 = vsel %vm1306, 1, 0
  %v1371 = vsel %vm1307, 1, 0
  %v1372 = vsel %vm1308, 1, 0
  %v1373 = vsel %vm1309, 1, 0
  %v1374 = vsel %vm1310, 1, 0
  %v1375 = vsel %vm1311, 1, 0
  %v1376 = vsel %vm1312, 1, 0
  %v1377 = vsel %vm1313, 1, 0
  %v1378 = vsel %vm1314, 1, 0
  %v1379 = vsel %vm1315, 1, 0
  %v1380 = vsel %vm1316, 1, 0
  %v1381 = vsel %vm1317, 1, 0
  %v1382 = vsel %vm1318, 1, 0
  %v1383 = vsel %vm1319, 1, 0
  %v1384 = vsel %vm1320, 1, 0
  %v1385 = vsel %vm1321, 1, 0
  %v1386 = vsel %vm1322, 1, 0
  %v1387 = vsel %vm1323, 1, 0
  %v1388 = vsel %vm1324, 1, 0
  %v1389 = vsel %vm1325, 1, 0
  %v1390 = vsel %vm1326, 1, 0
  %v1391 = vsel %vm1327, 1, 0
  %v1392 = vsel %vm1328, 1, 0
  %v1393 = vsel %vm1329, 1, 0
  %v1394 = vsel %vm1330, 1, 0
  %v1395 = vsel %vm1331, 1, 0
  %v1396 = vsel %vm1332, 1, 0
  %v1397 = vsel %vm1333, 1, 0
  %v1398 = vsel %vm1334, 1, 0
  %v1399 = vsel %vm1335, 1, 0
  %v1400 = vsel %vm1336, 1, 0
  %v1401 = vsel %vm1337, 1, 0
  %v1402 = vsel %vm1338, 1, 0
  %v1403 = vsel %vm1339, 1, 0
  %v1404 = vsel %vm1340, 1, 0
  %v1405 = vsel %vm1341, 1, 0
  %v1406 = vsel %vm1342, 1, 0
  %v1407 = vsel %vm1343, 1, 0
  %v1408 = vsel %vm1344, 1, 0
  %v1409 = vsel %vm1345, 1, 0
  %v1410 = vsel %vm1346, 1, 0
  %v1411 = vsel %vm1347, 1, 0
  %v1412 = vsel %vm1348, 1, 0
  %v1413 = vsel %vm1349, 1, 0
  %v1414 = vsel %vm1350, 1, 0
  %v1415 = vsel %vm1351, 1, 0
  %v1416 = vsel %vm1352, 1, 0
  %v1417 = vsel %vm1353, 1, 0
  %v1418 = vsel %vm1354, 1, 0
  %v1419 = vsel %vm1355, 1, 0
  %v1420 = vsel %vm1356, 1, 0
  %v1421 = vsel %vm1357, 1, 0
  %v1422 = vsel %vm1358, 1, 0
  %v1423 = vsel %vm1359, 1, 0
  %vm1424 = vcmp.eq.s32.totalorder %v1360, 1
  %vm1425 = vcmp.eq.s32.totalorder %v1361, 1
  %vm1426 = vcmp.eq.s32.totalorder %v1362, 1
  %vm1427 = vcmp.eq.s32.totalorder %v1363, 1
  %vm1428 = vcmp.eq.s32.totalorder %v1364, 1
  %vm1429 = vcmp.eq.s32.totalorder %v1365, 1
  %vm1430 = vcmp.eq.s32.totalorder %v1366, 1
  %vm1431 = vcmp.eq.s32.totalorder %v1367, 1
  %vm1432 = vcmp.eq.s32.totalorder %v1368, 1
  %vm1433 = vcmp.eq.s32.totalorder %v1369, 1
  %vm1434 = vcmp.eq.s32.totalorder %v1370, 1
  %vm1435 = vcmp.eq.s32.totalorder %v1371, 1
  %vm1436 = vcmp.eq.s32.totalorder %v1372, 1
  %vm1437 = vcmp.eq.s32.totalorder %v1373, 1
  %vm1438 = vcmp.eq.s32.totalorder %v1374, 1
  %vm1439 = vcmp.eq.s32.totalorder %v1375, 1
  %vm1440 = vcmp.eq.s32.totalorder %v1376, 1
  %vm1441 = vcmp.eq.s32.totalorder %v1377, 1
  %vm1442 = vcmp.eq.s32.totalorder %v1378, 1
  %vm1443 = vcmp.eq.s32.totalorder %v1379, 1
  %vm1444 = vcmp.eq.s32.totalorder %v1380, 1
  %vm1445 = vcmp.eq.s32.totalorder %v1381, 1
  %vm1446 = vcmp.eq.s32.totalorder %v1382, 1
  %vm1447 = vcmp.eq.s32.totalorder %v1383, 1
  %vm1448 = vcmp.eq.s32.totalorder %v1384, 1
  %vm1449 = vcmp.eq.s32.totalorder %v1385, 1
  %vm1450 = vcmp.eq.s32.totalorder %v1386, 1
  %vm1451 = vcmp.eq.s32.totalorder %v1387, 1
  %vm1452 = vcmp.eq.s32.totalorder %v1388, 1
  %vm1453 = vcmp.eq.s32.totalorder %v1389, 1
  %vm1454 = vcmp.eq.s32.totalorder %v1390, 1
  %vm1455 = vcmp.eq.s32.totalorder %v1391, 1
  %vm1456 = vcmp.eq.s32.totalorder %v1392, 1
  %vm1457 = vcmp.eq.s32.totalorder %v1393, 1
  %vm1458 = vcmp.eq.s32.totalorder %v1394, 1
  %vm1459 = vcmp.eq.s32.totalorder %v1395, 1
  %vm1460 = vcmp.eq.s32.totalorder %v1396, 1
  %vm1461 = vcmp.eq.s32.totalorder %v1397, 1
  %vm1462 = vcmp.eq.s32.totalorder %v1398, 1
  %vm1463 = vcmp.eq.s32.totalorder %v1399, 1
  %vm1464 = vcmp.eq.s32.totalorder %v1400, 1
  %vm1465 = vcmp.eq.s32.totalorder %v1401, 1
  %vm1466 = vcmp.eq.s32.totalorder %v1402, 1
  %vm1467 = vcmp.eq.s32.totalorder %v1403, 1
  %vm1468 = vcmp.eq.s32.totalorder %v1404, 1
  %vm1469 = vcmp.eq.s32.totalorder %v1405, 1
  %vm1470 = vcmp.eq.s32.totalorder %v1406, 1
  %vm1471 = vcmp.eq.s32.totalorder %v1407, 1
  %vm1472 = vcmp.eq.s32.totalorder %v1408, 1
  %vm1473 = vcmp.eq.s32.totalorder %v1409, 1
  %vm1474 = vcmp.eq.s32.totalorder %v1410, 1
  %vm1475 = vcmp.eq.s32.totalorder %v1411, 1
  %vm1476 = vcmp.eq.s32.totalorder %v1412, 1
  %vm1477 = vcmp.eq.s32.totalorder %v1413, 1
  %vm1478 = vcmp.eq.s32.totalorder %v1414, 1
  %vm1479 = vcmp.eq.s32.totalorder %v1415, 1
  %vm1480 = vcmp.eq.s32.totalorder %v1416, 1
  %vm1481 = vcmp.eq.s32.totalorder %v1417, 1
  %vm1482 = vcmp.eq.s32.totalorder %v1418, 1
  %vm1483 = vcmp.eq.s32.totalorder %v1419, 1
  %vm1484 = vcmp.eq.s32.totalorder %v1420, 1
  %vm1485 = vcmp.eq.s32.totalorder %v1421, 1
  %vm1486 = vcmp.eq.s32.totalorder %v1422, 1
  %vm1487 = vcmp.eq.s32.totalorder %v1423, 1
  %v1488 = vsel %vm1424, %v49, -3e+38
  %v1489 = vsel %vm1425, %v50, -3e+38
  %v1490 = vsel %vm1426, %v51, -3e+38
  %v1491 = vsel %vm1427, %v52, -3e+38
  %v1492 = vsel %vm1428, %v53, -3e+38
  %v1493 = vsel %vm1429, %v54, -3e+38
  %v1494 = vsel %vm1430, %v55, -3e+38
  %v1495 = vsel %vm1431, %v56, -3e+38
  %v1496 = vsel %vm1432, %v49, -3e+38
  %v1497 = vsel %vm1433, %v50, -3e+38
  %v1498 = vsel %vm1434, %v51, -3e+38
  %v1499 = vsel %vm1435, %v52, -3e+38
  %v1500 = vsel %vm1436, %v53, -3e+38
  %v1501 = vsel %vm1437, %v54, -3e+38
  %v1502 = vsel %vm1438, %v55, -3e+38
  %v1503 = vsel %vm1439, %v56, -3e+38
  %v1504 = vsel %vm1440, %v49, -3e+38
  %v1505 = vsel %vm1441, %v50, -3e+38
  %v1506 = vsel %vm1442, %v51, -3e+38
  %v1507 = vsel %vm1443, %v52, -3e+38
  %v1508 = vsel %vm1444, %v53, -3e+38
  %v1509 = vsel %vm1445, %v54, -3e+38
  %v1510 = vsel %vm1446, %v55, -3e+38
  %v1511 = vsel %vm1447, %v56, -3e+38
  %v1512 = vsel %vm1448, %v49, -3e+38
  %v1513 = vsel %vm1449, %v50, -3e+38
  %v1514 = vsel %vm1450, %v51, -3e+38
  %v1515 = vsel %vm1451, %v52, -3e+38
  %v1516 = vsel %vm1452, %v53, -3e+38
  %v1517 = vsel %vm1453, %v54, -3e+38
  %v1518 = vsel %vm1454, %v55, -3e+38
  %v1519 = vsel %vm1455, %v56, -3e+38
  %v1520 = vsel %vm1456, %v49, -3e+38
  %v1521 = vsel %vm1457, %v50, -3e+38
  %v1522 = vsel %vm1458, %v51, -3e+38
  %v1523 = vsel %vm1459, %v52, -3e+38
  %v1524 = vsel %vm1460, %v53, -3e+38
  %v1525 = vsel %vm1461, %v54, -3e+38
  %v1526 = vsel %vm1462, %v55, -3e+38
  %v1527 = vsel %vm1463, %v56, -3e+38
  %v1528 = vsel %vm1464, %v49, -3e+38
  %v1529 = vsel %vm1465, %v50, -3e+38
  %v1530 = vsel %vm1466, %v51, -3e+38
  %v1531 = vsel %vm1467, %v52, -3e+38
  %v1532 = vsel %vm1468, %v53, -3e+38
  %v1533 = vsel %vm1469, %v54, -3e+38
  %v1534 = vsel %vm1470, %v55, -3e+38
  %v1535 = vsel %vm1471, %v56, -3e+38
  %v1536 = vsel %vm1472, %v49, -3e+38
  %v1537 = vsel %vm1473, %v50, -3e+38
  %v1538 = vsel %vm1474, %v51, -3e+38
  %v1539 = vsel %vm1475, %v52, -3e+38
  %v1540 = vsel %vm1476, %v53, -3e+38
  %v1541 = vsel %vm1477, %v54, -3e+38
  %v1542 = vsel %vm1478, %v55, -3e+38
  %v1543 = vsel %vm1479, %v56, -3e+38
  %v1544 = vsel %vm1480, %v49, -3e+38
  %v1545 = vsel %vm1481, %v50, -3e+38
  %v1546 = vsel %vm1482, %v51, -3e+38
  %v1547 = vsel %vm1483, %v52, -3e+38
  %v1548 = vsel %vm1484, %v53, -3e+38
  %v1549 = vsel %vm1485, %v54, -3e+38
  %v1550 = vsel %vm1486, %v55, -3e+38
  %v1551 = vsel %vm1487, %v56, -3e+38
  %v1552 = vsel %vm80, %v1488, -inf
  %v1553 = vsel %vm80, %v1489, -inf
  %v1554 = vmax.f32 %v1552, %v1553
  %v1555 = vsel %vm80, %v1490, -inf
  %v1556 = vmax.f32 %v1554, %v1555
  %v1557 = vsel %vm80, %v1491, -inf
  %v1558 = vmax.f32 %v1556, %v1557
  %v1559 = vsel %vm80, %v1492, -inf
  %v1560 = vmax.f32 %v1558, %v1559
  %v1561 = vsel %vm80, %v1493, -inf
  %v1562 = vmax.f32 %v1560, %v1561
  %v1563 = vsel %vm80, %v1494, -inf
  %v1564 = vmax.f32 %v1562, %v1563
  %v1565 = vsel %vm80, %v1495, -inf
  %v1566 = vmax.f32 %v1564, %v1565
  %v1567 = vrot.slane %v1566, 4
  %v1568 = vmax.f32 %v1566, %v1567
  %v1569 = vrot.slane %v1568, 2
  %v1570 = vmax.f32 %v1568, %v1569
  %v1571 = vrot.slane %v1570, 1
  %v1572 = vmax.f32 %v1570, %v1571
  %v1573 = vsel %vm80, %v1496, -inf
  %v1574 = vsel %vm80, %v1497, -inf
  %v1575 = vmax.f32 %v1573, %v1574
  %v1576 = vsel %vm80, %v1498, -inf
  %v1577 = vmax.f32 %v1575, %v1576
  %v1578 = vsel %vm80, %v1499, -inf
  %v1579 = vmax.f32 %v1577, %v1578
  %v1580 = vsel %vm80, %v1500, -inf
  %v1581 = vmax.f32 %v1579, %v1580
  %v1582 = vsel %vm80, %v1501, -inf
  %v1583 = vmax.f32 %v1581, %v1582
  %v1584 = vsel %vm80, %v1502, -inf
  %v1585 = vmax.f32 %v1583, %v1584
  %v1586 = vsel %vm80, %v1503, -inf
  %v1587 = vmax.f32 %v1585, %v1586
  %v1588 = vrot.slane %v1587, 4
  %v1589 = vmax.f32 %v1587, %v1588
  %v1590 = vrot.slane %v1589, 2
  %v1591 = vmax.f32 %v1589, %v1590
  %v1592 = vrot.slane %v1591, 1
  %v1593 = vmax.f32 %v1591, %v1592
  %v1594 = vsel %vm80, %v1504, -inf
  %v1595 = vsel %vm80, %v1505, -inf
  %v1596 = vmax.f32 %v1594, %v1595
  %v1597 = vsel %vm80, %v1506, -inf
  %v1598 = vmax.f32 %v1596, %v1597
  %v1599 = vsel %vm80, %v1507, -inf
  %v1600 = vmax.f32 %v1598, %v1599
  %v1601 = vsel %vm80, %v1508, -inf
  %v1602 = vmax.f32 %v1600, %v1601
  %v1603 = vsel %vm80, %v1509, -inf
  %v1604 = vmax.f32 %v1602, %v1603
  %v1605 = vsel %vm80, %v1510, -inf
  %v1606 = vmax.f32 %v1604, %v1605
  %v1607 = vsel %vm80, %v1511, -inf
  %v1608 = vmax.f32 %v1606, %v1607
  %v1609 = vrot.slane %v1608, 4
  %v1610 = vmax.f32 %v1608, %v1609
  %v1611 = vrot.slane %v1610, 2
  %v1612 = vmax.f32 %v1610, %v1611
  %v1613 = vrot.slane %v1612, 1
  %v1614 = vmax.f32 %v1612, %v1613
  %v1615 = vsel %vm80, %v1512, -inf
  %v1616 = vsel %vm80, %v1513, -inf
  %v1617 = vmax.f32 %v1615, %v1616
  %v1618 = vsel %vm80, %v1514, -inf
  %v1619 = vmax.f32 %v1617, %v1618
  %v1620 = vsel %vm80, %v1515, -inf
  %v1621 = vmax.f32 %v1619, %v1620
  %v1622 = vsel %vm80, %v1516, -inf
  %v1623 = vmax.f32 %v1621, %v1622
  %v1624 = vsel %vm80, %v1517, -inf
  %v1625 = vmax.f32 %v1623, %v1624
  %v1626 = vsel %vm80, %v1518, -inf
  %v1627 = vmax.f32 %v1625, %v1626
  %v1628 = vsel %vm80, %v1519, -inf
  %v1629 = vmax.f32 %v1627, %v1628
  %v1630 = vrot.slane %v1629, 4
  %v1631 = vmax.f32 %v1629, %v1630
  %v1632 = vrot.slane %v1631, 2
  %v1633 = vmax.f32 %v1631, %v1632
  %v1634 = vrot.slane %v1633, 1
  %v1635 = vmax.f32 %v1633, %v1634
  %v1636 = vsel %vm80, %v1520, -inf
  %v1637 = vsel %vm80, %v1521, -inf
  %v1638 = vmax.f32 %v1636, %v1637
  %v1639 = vsel %vm80, %v1522, -inf
  %v1640 = vmax.f32 %v1638, %v1639
  %v1641 = vsel %vm80, %v1523, -inf
  %v1642 = vmax.f32 %v1640, %v1641
  %v1643 = vsel %vm80, %v1524, -inf
  %v1644 = vmax.f32 %v1642, %v1643
  %v1645 = vsel %vm80, %v1525, -inf
  %v1646 = vmax.f32 %v1644, %v1645
  %v1647 = vsel %vm80, %v1526, -inf
  %v1648 = vmax.f32 %v1646, %v1647
  %v1649 = vsel %vm80, %v1527, -inf
  %v1650 = vmax.f32 %v1648, %v1649
  %v1651 = vrot.slane %v1650, 4
  %v1652 = vmax.f32 %v1650, %v1651
  %v1653 = vrot.slane %v1652, 2
  %v1654 = vmax.f32 %v1652, %v1653
  %v1655 = vrot.slane %v1654, 1
  %v1656 = vmax.f32 %v1654, %v1655
  %v1657 = vsel %vm80, %v1528, -inf
  %v1658 = vsel %vm80, %v1529, -inf
  %v1659 = vmax.f32 %v1657, %v1658
  %v1660 = vsel %vm80, %v1530, -inf
  %v1661 = vmax.f32 %v1659, %v1660
  %v1662 = vsel %vm80, %v1531, -inf
  %v1663 = vmax.f32 %v1661, %v1662
  %v1664 = vsel %vm80, %v1532, -inf
  %v1665 = vmax.f32 %v1663, %v1664
  %v1666 = vsel %vm80, %v1533, -inf
  %v1667 = vmax.f32 %v1665, %v1666
  %v1668 = vsel %vm80, %v1534, -inf
  %v1669 = vmax.f32 %v1667, %v1668
  %v1670 = vsel %vm80, %v1535, -inf
  %v1671 = vmax.f32 %v1669, %v1670
  %v1672 = vrot.slane %v1671, 4
  %v1673 = vmax.f32 %v1671, %v1672
  %v1674 = vrot.slane %v1673, 2
  %v1675 = vmax.f32 %v1673, %v1674
  %v1676 = vrot.slane %v1675, 1
  %v1677 = vmax.f32 %v1675, %v1676
  %v1678 = vsel %vm80, %v1536, -inf
  %v1679 = vsel %vm80, %v1537, -inf
  %v1680 = vmax.f32 %v1678, %v1679
  %v1681 = vsel %vm80, %v1538, -inf
  %v1682 = vmax.f32 %v1680, %v1681
  %v1683 = vsel %vm80, %v1539, -inf
  %v1684 = vmax.f32 %v1682, %v1683
  %v1685 = vsel %vm80, %v1540, -inf
  %v1686 = vmax.f32 %v1684, %v1685
  %v1687 = vsel %vm80, %v1541, -inf
  %v1688 = vmax.f32 %v1686, %v1687
  %v1689 = vsel %vm80, %v1542, -inf
  %v1690 = vmax.f32 %v1688, %v1689
  %v1691 = vsel %vm80, %v1543, -inf
  %v1692 = vmax.f32 %v1690, %v1691
  %v1693 = vrot.slane %v1692, 4
  %v1694 = vmax.f32 %v1692, %v1693
  %v1695 = vrot.slane %v1694, 2
  %v1696 = vmax.f32 %v1694, %v1695
  %v1697 = vrot.slane %v1696, 1
  %v1698 = vmax.f32 %v1696, %v1697
  %v1699 = vsel %vm80, %v1544, -inf
  %v1700 = vsel %vm80, %v1545, -inf
  %v1701 = vmax.f32 %v1699, %v1700
  %v1702 = vsel %vm80, %v1546, -inf
  %v1703 = vmax.f32 %v1701, %v1702
  %v1704 = vsel %vm80, %v1547, -inf
  %v1705 = vmax.f32 %v1703, %v1704
  %v1706 = vsel %vm80, %v1548, -inf
  %v1707 = vmax.f32 %v1705, %v1706
  %v1708 = vsel %vm80, %v1549, -inf
  %v1709 = vmax.f32 %v1707, %v1708
  %v1710 = vsel %vm80, %v1550, -inf
  %v1711 = vmax.f32 %v1709, %v1710
  %v1712 = vsel %vm80, %v1551, -inf
  %v1713 = vmax.f32 %v1711, %v1712
  %v1714 = vrot.slane %v1713, 4
  %v1715 = vmax.f32 %v1713, %v1714
  %v1716 = vrot.slane %v1715, 2
  %v1717 = vmax.f32 %v1715, %v1716
  %v1718 = vrot.slane %v1717, 1
  %v1719 = vmax.f32 %v1717, %v1718
  %v1720 = vmax.f32 %v904, %v1572
  %v1721 = vmax.f32 %v905, %v1593
  %v1722 = vmax.f32 %v906, %v1614
  %v1723 = vmax.f32 %v907, %v1635
  %v1724 = vmax.f32 %v908, %v1656
  %v1725 = vmax.f32 %v909, %v1677
  %v1726 = vmax.f32 %v910, %v1698
  %v1727 = vmax.f32 %v911, %v1719
  %v1728 = vld [vmem:[#allocation2] sm:$0xff]
  %vm1737 = vcmask 1041409
  %v1738 = vsel %vm1737, %v1721, %v1720
  %vm1739 = vcmask 1042434
  %v1740 = vsel %vm1739, %v1722, %v1738
  %vm1741 = vcmask 1043459
  %v1742 = vsel %vm1741, %v1723, %v1740
  %vm1743 = vcmask 1044484
  %v1744 = vsel %vm1743, %v1724, %v1742
  %vm1745 = vcmask 1045509
  %v1746 = vsel %vm1745, %v1725, %v1744
  %vm1747 = vcmask 1046534
  %v1748 = vsel %vm1747, %v1726, %v1746
  %vm1749 = vcmask 1047559
  %v1750 = vsel %vm1749, %v1727, %v1748
  %v1752 = vmax.f32 %v1728, %v1750
  %1753 = vst.msk [vmem:[#allocation2] sm:$0xff] %vm80, %v1752
  // Predicated region
  $region42: #{sagpool_net_forward.3} parent=0 // pred_check
    %p1754 = pneg %p32
  $region43: #{sagpool_net_forward.3} parent=0 // pred_check_branch
    %1756 = sbr.rel (%p1754) target = $region45
  $region44: #{sagpool_net_forward.3} parent=0 // pred_region
    %v1757 = vld [vmem:[#allocation4] sm:$0xff]
    %v1758 = vld [vmem:[#allocation3] sm:$0xff]
    %v1759 = vmax.f32 %v1757, 1.0
    %1761 = vset.pattern.permute.xlu0 0
    %1762 = vperm.xlu0 %1761, %v1759
    %v1763 = vpop.permute.xlu0 %1762
    %v1765 = vrcp.pop %v1763
    %v1766 = vmul.f32 %v1763, %v1765
    %v1767 = vsub.f32 1.0, %v1766
    %v1768 = vmul.f32 %v1765, %v1767
    %v1769 = vadd.f32 %v1765, %v1768
    %vm1770 = vweird.f32 %v1763
    %vm1771 = vweird.f32 %v1765
    %vm1772 = vmor %vm1770, %vm1771
    %v1773 = vsel %vm1772, %v1765, %v1769
    %v1774 = vand.u32 2147483647, %v1763
    %vm1775 = vcmp.eq.f32.partialorder %v1774, 8.507059e+37
    %v1776 = vand.u32 %v1763, 2147483648
    %v1777 = vor.u32 1.1754944e-38, %v1776
    %v1778 = vsel %vm1775, %v1777, %v1773
    %v1779 = vmul.f32 %v1758, %v1778
    %vm1780 = vcmp.gt.f32.partialorder %v1757, 0.0
    %v1781 = vld [vmem:[#allocation2] sm:$0xff]
    %v1782 = vsel %vm1780, 1, 0
    %1783 = vset.pattern.permute.xlu0 0
    %1784 = vperm.xlu0 %1783, %v1782
    %v1785 = vpop.permute.xlu0 %1784
    %vm1786 = vcmp.eq.s32.totalorder %v1785, 1
    %v1787 = vsel %vm1786, %v1781, 0.0
    %v1788 = vld [vmem:[%s2] sm:$0xff]
    %v1789 = vld [vmem:[%s2 + $0x8] sm:$0xff]
    %v1790 = vld [vmem:[%s2 + $0x10] sm:$0xff]
    %v1791 = vld [vmem:[%s2 + $0x18] sm:$0xff]
    %v1792 = vld [vmem:[%s2 + $0x20] sm:$0xff]
    %v1793 = vld [vmem:[%s2 + $0x28] sm:$0xff]
    %v1794 = vld [vmem:[%s2 + $0x30] sm:$0xff]
    %v1795 = vld [vmem:[%s2 + $0x38] sm:$0xff]
    %v1796 = vld [vmem:[%s2 + $0x40] sm:$0xff]
    %v1797 = vld [vmem:[%s2 + $0x48] sm:$0xff]
    %v1798 = vld [vmem:[%s2 + $0x50] sm:$0xff]
    %v1799 = vld [vmem:[%s2 + $0x58] sm:$0xff]
    %v1800 = vld [vmem:[%s3] sm:$0xff]
    %v1801 = vld [vmem:[%s3 + $0x8] sm:$0xff]
    %v1802 = vld [vmem:[%s3 + $0x10] sm:$0xff]
    %v1803 = vld [vmem:[%s3 + $0x18] sm:$0xff]
    %v1804 = vld [vmem:[%s3 + $0x20] sm:$0xff]
    %v1805 = vld [vmem:[%s3 + $0x28] sm:$0xff]
    %v1806 = vld [vmem:[%s3 + $0x30] sm:$0xff]
    %v1807 = vld [vmem:[%s3 + $0x38] sm:$0xff]
    %v1808 = vld [vmem:[%s3 + $0x40] sm:$0xff]
    %v1809 = vld [vmem:[%s3 + $0x48] sm:$0xff]
    %v1810 = vld [vmem:[%s3 + $0x50] sm:$0xff]
    %v1811 = vld [vmem:[%s3 + $0x58] sm:$0xff]
    %v1813 = vsel %vm80, %v1779, 0
    %1815 = vmatpush.msra.mxu0 0.0
    %1816 = vmatpush.msra.mxu0 0.0
    %1817 = vmatpush.msra.mxu0 0.0
    %1818 = vmatpush.msra.mxu0 0.0
    %1819 = vmatpush.msra.mxu0 %v1811
    %1820 = vmatpush.msra.mxu0 %v1810
    %1821 = vmatpush.msra.mxu0 %v1809
    %1822 = vmatpush.msra.mxu0 %v1808
    %1823 = vmatpush.msra.mxu0 %v1807
    %1824 = vmatpush.msra.mxu0 %v1806
    %1825 = vmatpush.msra.mxu0 %v1805
    %1826 = vmatpush.msra.mxu0 %v1804
    %1827 = vmatpush.msra.mxu0 %v1803
    %1828 = vmatpush.msra.mxu0 %v1802
    %1829 = vmatpush.msra.mxu0 %v1801
    %1830 = vmatpush.msra.mxu0 %v1800
    %1831 = vmatmul.f32.gmra.mxu0 %v1813
    %v1832 = vpop.f32.mrf.mxu0
    %v1833 = vadd.f32 0.0, %v1832
    %1834 = vdwg.mxu0
    %v1836 = vsel %vm80, %v1787, 0
    %1838 = vmatpush.msra.mxu0 0.0
    %1839 = vmatpush.msra.mxu0 0.0
    %1840 = vmatpush.msra.mxu0 0.0
    %1841 = vmatpush.msra.mxu0 0.0
    %1842 = vmatpush.msra.mxu0 %v1799
    %1843 = vmatpush.msra.mxu0 %v1798
    %1844 = vmatpush.msra.mxu0 %v1797
    %1845 = vmatpush.msra.mxu0 %v1796
    %1846 = vmatpush.msra.mxu0 %v1795
    %1847 = vmatpush.msra.mxu0 %v1794
    %1848 = vmatpush.msra.mxu0 %v1793
    %1849 = vmatpush.msra.mxu0 %v1792
    %1850 = vmatpush.msra.mxu0 %v1791
    %1851 = vmatpush.msra.mxu0 %v1790
    %1852 = vmatpush.msra.mxu0 %v1789
    %1853 = vmatpush.msra.mxu0 %v1788
    %1854 = vmatmul.f32.gmra.mxu0 %v1836
    %v1855 = vpop.f32.mrf.mxu0
    %v1856 = vadd.f32 %v1833, %v1855
    %1857 = vdwg.mxu0
    %v1858 = vld [vmem:[%s4] sm:$0x1]
    %v1860 = vperm.slane %v1858, 0
    %v1862 = vadd.f32 %v1856, %v1860
    %v1863 = vmax.f32 %v1862, 0.0
    %v1864 = vld [vmem:[%s5] sm:$0xff]
    %v1865 = vld [vmem:[%s5 + $0x8] sm:$0xff]
    %v1866 = vld [vmem:[%s5 + $0x10] sm:$0xff]
    %v1867 = vld [vmem:[%s5 + $0x18] sm:$0xff]
    %v1868 = vld [vmem:[%s6] sm:$0x1]
    %v1870 = vperm.slane %v1868, 0
    %vm1872 = vcmask 261120
    %v1874 = vsel %vm1872, %v1863, 0
    %1876 = vmatpush.msra.mxu0 0.0
    %1877 = vmatpush.msra.mxu0 0.0
    %1878 = vmatpush.msra.mxu0 0.0
    %1879 = vmatpush.msra.mxu0 0.0
    %1880 = vmatpush.msra.mxu0 0.0
    %1881 = vmatpush.msra.mxu0 0.0
    %1882 = vmatpush.msra.mxu0 0.0
    %1883 = vmatpush.msra.mxu0 0.0
    %1884 = vmatpush.msra.mxu0 0.0
    %1885 = vmatpush.msra.mxu0 0.0
    %1886 = vmatpush.msra.mxu0 0.0
    %1887 = vmatpush.msra.mxu0 0.0
    %1888 = vmatpush.msra.mxu0 %v1867
    %1889 = vmatpush.msra.mxu0 %v1866
    %1890 = vmatpush.msra.mxu0 %v1865
    %1891 = vmatpush.msra.mxu0 %v1864
    %1892 = vmatmul.f32.gmra.mxu0 %v1874
    %v1893 = vpop.f32.mrf.mxu0
    %v1894 = vadd.f32 %v1870, %v1893
    %1895 = vdwg.mxu0
    %v1896 = vmax.f32 %v1894, 0.0
    %v1897 = vld [vmem:[%s7] sm:$0xff]
    %v1898 = vld [vmem:[%s7 + $0x8] sm:$0xff]
    %v1899 = vld [vmem:[%s8] sm:$0x1]
    %v1901 = vperm.slane %v1899, 0
    %vm1903 = vcmask 130048
    %v1905 = vsel %vm1903, %v1896, 0
    %1907 = vmatpush.msra.mxu0 0.0
    %1908 = vmatpush.msra.mxu0 0.0
    %1909 = vmatpush.msra.mxu0 0.0
    %1910 = vmatpush.msra.mxu0 0.0
    %1911 = vmatpush.msra.mxu0 0.0
    %1912 = vmatpush.msra.mxu0 0.0
    %1913 = vmatpush.msra.mxu0 0.0
    %1914 = vmatpush.msra.mxu0 0.0
    %1915 = vmatpush.msra.mxu0 0.0
    %1916 = vmatpush.msra.mxu0 0.0
    %1917 = vmatpush.msra.mxu0 0.0
    %1918 = vmatpush.msra.mxu0 0.0
    %1919 = vmatpush.msra.mxu0 0.0
    %1920 = vmatpush.msra.mxu0 0.0
    %1921 = vmatpush.msra.mxu0 %v1898
    %1922 = vmatpush.msra.mxu0 %v1897
    %1923 = vmatmul.f32.gmra.mxu0 %v1905
    %v1924 = vpop.f32.mrf.mxu0
    %v1925 = vadd.f32 %v1901, %v1924
    %1926 = vdwg.mxu0
    %1927 = vmax.xlane.f32.xlu0 %v1925
    %v1928 = vpop.xlane.xlu0 %1927
    %v1929 = vsub.f32 %v1925, %v1928
    %v1930 = vmul.f32 %v1929, 1.442695
    %v1931 = vpow.pop %v1930
    %1932 = vadd.xlane.f32.xlu0 %v1931
    %v1933 = vpop.xlane.xlu0 %1932
    %v1934 = vlog2.pop %v1933
    %v1935 = vmul.f32 %v1934, 0.6931472
    %v1936 = vadd.f32 %v1928, %v1935
    %v1937 = vsub.f32 %v1925, %v1936
    %1938 = vst [vmem:[%s9] sm:$0xff] %v1937
  $region45: #{sagpool_net_forward.3} parent=0 // pred_fallthru
    _
  // Predicated region
  $region46: #{sagpool_net_forward.3} parent=0 // pred_check
    _
  $region47: #{sagpool_net_forward.3} parent=0 // pred_check_branch
    %1940 = sbr.rel (0) target = $region49
  $region48: #{sagpool_net_forward.3} parent=0 // pred_region
    _
  $region49: #{sagpool_net_forward.3} parent=0 // pred_fallthru
    _
  // Predicated region
  $region50: #{sagpool_net_forward.3} parent=0 // pred_check
    _
  $region51: #{sagpool_net_forward.3} parent=0 // pred_check_branch
    %1942 = sbr.rel (0) target = $region53
  $region52: #{sagpool_net_forward.3} parent=0 // pred_region
    _
  $region53: #{sagpool_net_forward.3} parent=0 // pred_fallthru
    _

</llo_original>
